<compile_context>
chip_gen: v6e
topology: v6e:2x2x1
jax: 0.10.0
libtpu: 0.0.40
codegen_flags: <defaults>
</compile_context>

<pallas_src>
import functools

import numpy as np
import jax
import jax.numpy as jnp
from jax.experimental import pallas as pl
from jax.experimental.pallas import tpu as pltpu

EPS = 1e-5
NEG_SLOPE = 0.2


# --------------------------------------------------------------------------- #
# Pallas kernel: fused multi-layer FiLM network                                #
# --------------------------------------------------------------------------- #
def film_network_kernel(encT_ref, w0_ref, wrest_ref, b_ref, gamma_ref, beta_ref,
                        cond_ref, gmat_ref, gmat_ts_ref, o_ref, *,
                        n_layers, hidden):
    # Per grid step (tb = batch tile on the lane axis):
    #   encT_ref:    (Denc, tb)        bf16  encoded inputs, batch on lanes
    #   w0_ref:      (H, Denc)         bf16  first Linear weight (resident)
    #   wrest_ref:   (max(L-1,1),H,H)  bf16  remaining Linear weights (resident)
    #   b/gamma/beta_ref: (L, H, 1)    f32   Linear bias / GroupNorm affine
    #   cond_ref:    (L, 2H, tb)       bf16  FiLM conditioning, scale || shift
    #   gmat_ref:    (H, G)            f32   one-hot channel->group
    #   gmat_ts_ref: (G, H)            f32   gmat.T / group_size (precomputed)
    #   o_ref:       (H, tb)           bf16  last-layer activation
    gmat = gmat_ref[...]
    gmat_ts = gmat_ts_ref[...]

    def gn_film_lrelu(h, layer):
        # GroupNorm statistics via small one-hot MXU matmuls (all f32).
        # Variance is the centered E[(x-mean)^2] -> robust numerics.
        mean_g = jnp.dot(gmat_ts, h, preferred_element_type=jnp.float32)     # (G, tb)
        mean_c = jnp.dot(gmat, mean_g, preferred_element_type=jnp.float32)   # (H, tb)
        hc = h - mean_c
        var_g = jnp.dot(gmat_ts, hc * hc, preferred_element_type=jnp.float32)
        inv_g = jax.lax.rsqrt(var_g + EPS)
        inv_c = jnp.dot(gmat, inv_g, preferred_element_type=jnp.float32)     # (H, tb)

        # Folded GroupNorm affine + FiLM:
        #   y = hc * (inv*gamma*(scale+1)) + (beta*(scale+1) + shift)
        cond = cond_ref[layer].astype(jnp.float32)                           # (2H, tb)
        sp1 = cond[:hidden, :] + 1.0                                         # scale + 1
        shift = cond[hidden:, :]
        mul = inv_c * gamma_ref[layer] * sp1
        add = beta_ref[layer] * sp1 + shift
        y = hc * mul + add
        return jnp.maximum(y, NEG_SLOPE * y)                                 # LeakyReLU(0.2)

    # Layer 0: (H, Denc) @ (Denc, tb) on the MXU, f32 accumulation.
    h = jnp.dot(w0_ref[...], encT_ref[...], preferred_element_type=jnp.float32)
    h = gn_film_lrelu(h + b_ref[0], 0)

    # Layers 1..L-1: activation stays resident; only cast to bf16 for the MXU.
    for l in range(1, n_layers):
        h = jnp.dot(wrest_ref[l - 1], h.astype(jnp.bfloat16),
                    preferred_element_type=jnp.float32)
        h = gn_film_lrelu(h + b_ref[l], l)

    o_ref[...] = h.astype(o_ref.dtype)


# --------------------------------------------------------------------------- #
# Helpers                                                                      #
# --------------------------------------------------------------------------- #
@functools.lru_cache(maxsize=None)
def _group_matrices(hidden_dim, groups):
    gs = hidden_dim // groups
    ch = np.arange(hidden_dim)
    gmat = (ch[:, None] // gs == np.arange(groups)[None, :]).astype(np.float32)
    gmat_ts = (gmat.T / gs).astype(np.float32)           # (G, H), pre-scaled by 1/gs
    return gmat, gmat_ts


def _round_up(x, m):
    return (x + m - 1) // m * m


def _pick_tb(batch):
    # batch is already padded to a multiple of 128 (and >= 256).  Prefer lane-dense tiles
    # with >= 4 pipelined "parallel" steps, fall back to >= 2 (v7x has 2 TensorCores);
    # cap at 4096 to stay well inside v7x's 64 MiB VMEM.
    for cand in (4096, 2048, 1024, 512, 256, 128):
        if batch % cand == 0 and batch // cand >= 4:
            return cand
    for cand in (2048, 1024, 512, 256, 128):
        if batch % cand == 0 and batch // cand >= 2:
            return cand
    return 128


# --------------------------------------------------------------------------- #
# Wrappers                                                                     #
# --------------------------------------------------------------------------- #
def frequency_encoding_T(x, n_freqs):
    """NeRF/tcnn-style frequency encoding, emitted directly in the transposed
    (Denc, B) bf16 layout the network kernel consumes (batch on lanes)."""
    in_dim = x.shape[1]
    xT = x.T.astype(jnp.float32)                                           # (in_dim, B), tiny
    freqs = (2.0 ** jnp.arange(n_freqs, dtype=jnp.float32)) * jnp.pi
    ang = (freqs[:, None, None] * xT[None, :, :]).reshape(n_freqs * in_dim, -1)
    enc = jnp.concatenate([jnp.sin(ang), jnp.cos(ang)], axis=0)            # (2*nf*in_dim, B)
    return enc.astype(jnp.bfloat16)


def film_network_T(encT, w0, wrest, b_all, gamma_all, beta_all, condT, *,
                   groups, tb=None):
    """Fused FiLM network in one pallas_call, transposed (feature, batch) layout.

    encT:      (Denc, B)    encoding output (bf16/f32), batch on lanes
    w0:        (H, Denc)    first Linear weight (nn.Linear layout)
    wrest:     (L-1, H, H)  remaining Linear weights (None if L == 1)
    b_all:     (L, H)       Linear biases
    gamma_all: (L, H)       GroupNorm weight
    beta_all:  (L, H)       GroupNorm bias
    condT:     (L, 2H, B)   FiLM conditioning, scale || shift, pre-packed upstream
    returns:   (H, B) bf16  last activation (kept transposed/bf16 for chaining)
    """
    d_enc, B = encT.shape
    H = w0.shape[0]
    L, two_h, b_cond = condT.shape
    assert two_h == 2 * H and b_cond == B
    assert H % groups == 0
    assert b_all.shape == (L, H)

    # Lane-dense batch: pad to a multiple of 128 with at least 2 grid steps.
    b_pad = max(_round_up(B, 128), 256)
    encT_bf = encT.astype(jnp.bfloat16)
    condT_bf = condT.astype(jnp.bfloat16)
    if b_pad != B:
        encT_bf = jnp.pad(encT_bf, ((0, 0), (0, b_pad - B)))
        condT_bf = jnp.pad(condT_bf, ((0, 0), (0, 0), (0, b_pad - B)))
    if tb is None:
        tb = _pick_tb(b_pad)
    assert b_pad % tb == 0 and tb % 128 == 0, (b_pad, tb)

    gmat_np, gmat_ts_np = _group_matrices(H, groups)
    gmat = jnp.asarray(gmat_np)
    gmat_ts = jnp.asarray(gmat_ts_np)

    w0_bf = w0.astype(jnp.bfloat16)
    if L > 1:
        assert wrest.shape == (L - 1, H, H)
        wrest_bf = wrest.astype(jnp.bfloat16)
    else:
        wrest_bf = jnp.zeros((1, H, H), jnp.bfloat16)     # unused dummy (keeps arity fixed)
    n_wrest = wrest_bf.shape[0]
    b3 = b_all.reshape(L, H, 1).astype(jnp.float32)
    g3 = gamma_all.reshape(L, H, 1).astype(jnp.float32)
    be3 = beta_all.reshape(L, H, 1).astype(jnp.float32)

    flops = (2 * b_pad * H * d_enc + 2 * b_pad * H * H * (L - 1)
             + L * 8 * b_pad * groups * H + L * 14 * b_pad * H)
    bytes_accessed = (2 * d_enc * b_pad + 4 * L * H * b_pad + 2 * H * b_pad
                      + 2 * H * d_enc + 2 * n_wrest * H * H
                      + 12 * L * H + 8 * H * groups)
    cost = pl.CostEstimate(flops=flops, transcendentals=L * b_pad * groups,
                           bytes_accessed=bytes_accessed)

    # Streamed tiles are double-buffered by the pipeline; keep the scoped limit
    # <= 48 MiB so the same tiling also fits v7x's 64 MiB physical VMEM.
    streamed = tb * 2 * (d_enc + 2 * L * H + H)
    vmem_limit = int(min(48 << 20, max(16 << 20, 4 * streamed + (1 << 20))))

    outT = pl.pallas_call(
        functools.partial(film_network_kernel, n_layers=L, hidden=H),
        out_shape=jax.ShapeDtypeStruct((H, b_pad), jnp.bfloat16),
        grid_spec=pltpu.PrefetchScalarGridSpec(
            num_scalar_prefetch=0,
            grid=(b_pad // tb,),
            in_specs=[
                pl.BlockSpec((d_enc, tb), lambda i: (0, i)),          # enc^T (streamed)
                pl.BlockSpec((H, d_enc), lambda i: (0, 0)),           # W0 (resident)
                pl.BlockSpec((n_wrest, H, H), lambda i: (0, 0, 0)),   # W1.. (resident)
                pl.BlockSpec((L, H, 1), lambda i: (0, 0, 0)),         # bias
                pl.BlockSpec((L, H, 1), lambda i: (0, 0, 0)),         # gamma
                pl.BlockSpec((L, H, 1), lambda i: (0, 0, 0)),         # beta
                pl.BlockSpec((L, 2 * H, tb), lambda i: (0, 0, i)),    # cond^T (streamed)
                pl.BlockSpec((H, groups), lambda i: (0, 0)),          # one-hot gmat
                pl.BlockSpec((groups, H), lambda i: (0, 0)),          # gmat^T / gs
            ],
            out_specs=pl.BlockSpec((H, tb), lambda i: (0, i)),
        ),
        compiler_params=pltpu.CompilerParams(
            dimension_semantics=("parallel",),
            vmem_limit_bytes=vmem_limit,
        ),
        cost_estimate=cost,
    )(encT_bf, w0_bf, wrest_bf, b3, g3, be3, condT_bf, gmat, gmat_ts)

    if b_pad != B:
        outT = outT[:, :B]
    return outT


def network_with_input_encoding(x, w0, wrest, b_all, gamma_all, beta_all, condT,
                                *, groups, n_freqs, tb=None):
    """forward(x) = network(encoding(x)).  Output stays in the transposed bf16 (H, B)
    layout so a downstream layer can chain it without an HBM transpose/cast round trip."""
    # TODO(synk): hash-grid / tcnn encodings are config-dependent (gather) and not
    # implemented; the frequency-encoding sin/cos stage runs as plain JAX (XLA) here.
    encT = frequency_encoding_T(x, n_freqs)
    return film_network_T(encT, w0, wrest, b_all, gamma_all, beta_all, condT,
                          groups=groups, tb=tb)


# --------------------------------------------------------------------------- #
# Pure-JAX reference (mirrors PyTorch semantics)                               #
# --------------------------------------------------------------------------- #
def network_reference(x, w0, wrest, b_all, gamma_all, beta_all, condT, *,
                      groups, n_freqs, matmul_dtype=jnp.float32):
    B, in_dim = x.shape
    H = w0.shape[0]
    L = condT.shape[0]
    freqs = (2.0 ** jnp.arange(n_freqs, dtype=jnp.float32)) * jnp.pi
    ang = x[:, None, :] * freqs[None, :, None]                              # (B, nf, in_dim)
    enc = jnp.concatenate([jnp.sin(ang).reshape(B, -1),
                           jnp.cos(ang).reshape(B, -1)], axis=-1)           # (B, Denc)
    h = enc
    for l in range(L):
        w = w0 if l == 0 else wrest[l - 1]
        z = jnp.dot(h.astype(matmul_dtype), w.T.astype(matmul_dtype),
                    preferred_element_type=jnp.float32) + b_all[l]
        zg = z.reshape(B, groups, H // groups)
        mean = zg.mean(axis=-1, keepdims=True)
        var = zg.var(axis=-1, keepdims=True)                                # biased (torch GN)
        zn = ((zg - mean) / jnp.sqrt(var + EPS)).reshape(B, H)
        zn = zn * gamma_all[l] + beta_all[l]
        scale = condT[l, :H, :].T.astype(matmul_dtype).astype(jnp.float32)
        shift = condT[l, H:, :].T.astype(matmul_dtype).astype(jnp.float32)
        y = zn * (scale + 1.0) + shift
        h = jnp.maximum(y, NEG_SLOPE * y)
    return h


if __name__ == "__main__":
    key = jax.random.PRNGKey(0)
    batch, in_dim, hidden, groups, n_layers, n_freqs = 1024, 3, 32, 8, 4, 8
    d_enc = 2 * n_freqs * in_dim                                            # 48

    keys = jax.random.split(key, 6)
    x = jax.random.normal(keys[0], (batch, in_dim), dtype=jnp.float32)
    bound0 = 1.0 / (d_enc ** 0.5)
    w0 = jax.random.uniform(keys[1], (hidden, d_enc), minval=-bound0, maxval=bound0,
                            dtype=jnp.float32)
    bound = 1.0 / (hidden ** 0.5)
    wrest = jax.random.uniform(keys[2], (n_layers - 1, hidden, hidden),
                               minval=-bound, maxval=bound, dtype=jnp.float32)
    b_all = jax.random.uniform(keys[3], (n_layers, hidden), minval=-bound, maxval=bound,
                               dtype=jnp.float32)
    gamma_all = jnp.ones((n_layers, hidden), jnp.float32)                   # torch GN defaults
    beta_all = jnp.zeros((n_layers, hidden), jnp.float32)
    # FiLM conditioning already packed / pre-transposed as (L, 2H, B) = scale || shift —
    # the layout the upstream mapping network should emit (perf feedback #1).
    condT = jax.random.normal(keys[4], (n_layers, 2 * hidden, batch), dtype=jnp.float32)

    fwd = jax.jit(network_with_input_encoding, static_argnames=("groups", "n_freqs", "tb"))
    outT = fwd(x, w0, wrest, b_all, gamma_all, beta_all, condT,
               groups=groups, n_freqs=n_freqs)
    outT = jax.block_until_ready(outT)                                       # (H, B) bf16
    out = jnp.asarray(outT, jnp.float32).T                                   # (B, H), check only

    # Matched reference (bf16 streams / inter-layer casts like the kernel, bf16-quantized
    # output): tolerance covers rare one-ulp bf16 rounding flips propagating across layers.
    ref_m = network_reference(x, w0, wrest, b_all, gamma_all, beta_all, condT,
                              groups=groups, n_freqs=n_freqs, matmul_dtype=jnp.bfloat16)
    ref_m_q = ref_m.astype(jnp.bfloat16).astype(jnp.float32)
    max_err = float(jnp.max(jnp.abs(out - ref_m_q)))
    assert jnp.allclose(out, ref_m_q, atol=1e-1, rtol=2e-2), \
        f"mismatch vs bf16-matched reference: max|diff|={max_err}"

    # Full-f32 reference: difference is dominated by bf16 quantization of the streamed
    # inputs; use a robust relative-L2 criterion.
    ref_f32 = network_reference(x, w0, wrest, b_all, gamma_all, beta_all, condT,
                                groups=groups, n_freqs=n_freqs, matmul_dtype=jnp.float32)
    rel = float(jnp.linalg.norm(out - ref_f32) / jnp.linalg.norm(ref_f32))
    assert rel < 5e-2, f"relative L2 error vs f32 reference too large: {rel}"

    print("KERNEL_OK")
</pallas_src>

<mosaic_0001>
module attributes {stable_mosaic.version = 11 : i64} {
  func.func @film_network_kernel(%arg0: i32, %arg1: memref<48x256xbf16, #tpu.memory_space<vmem>>, %arg2: memref<32x48xbf16, #tpu.memory_space<vmem>>, %arg3: memref<3x32x32xbf16, #tpu.memory_space<vmem>>, %arg4: memref<4x32x1xf32, #tpu.memory_space<vmem>>, %arg5: memref<4x32x1xf32, #tpu.memory_space<vmem>>, %arg6: memref<4x32x1xf32, #tpu.memory_space<vmem>>, %arg7: memref<4x64x256xbf16, #tpu.memory_space<vmem>>, %arg8: memref<32x8xf32, #tpu.memory_space<vmem>>, %arg9: memref<8x32xf32, #tpu.memory_space<vmem>>, %arg10: memref<32x256xbf16, #tpu.memory_space<vmem>>) attributes {dimension_semantics = [#tpu.dimension_semantics<parallel>], iteration_bounds = array<i64: 4>, scalar_prefetch = 0 : i64, scratch_operands = 0 : i64, tpu.core_type = #tpu.core_type<tc>, window_params = [{transform_indices = @transform_0, window_bounds = array<i64: 48, 256>}, {pipeline_mode = #tpu.pipeline_mode<synchronous>, transform_indices = @transform_1, window_bounds = array<i64: 32, 48>}, {pipeline_mode = #tpu.pipeline_mode<synchronous>, transform_indices = @transform_2, window_bounds = array<i64: 3, 32, 32>}, {pipeline_mode = #tpu.pipeline_mode<synchronous>, transform_indices = @transform_3, window_bounds = array<i64: 4, 32, 1>}, {pipeline_mode = #tpu.pipeline_mode<synchronous>, transform_indices = @transform_4, window_bounds = array<i64: 4, 32, 1>}, {pipeline_mode = #tpu.pipeline_mode<synchronous>, transform_indices = @transform_5, window_bounds = array<i64: 4, 32, 1>}, {transform_indices = @transform_6, window_bounds = array<i64: 4, 64, 256>}, {pipeline_mode = #tpu.pipeline_mode<synchronous>, transform_indices = @transform_7, window_bounds = array<i64: 32, 8>}, {pipeline_mode = #tpu.pipeline_mode<synchronous>, transform_indices = @transform_8, window_bounds = array<i64: 8, 32>}, {transform_indices = @transform_9, window_bounds = array<i64: 32, 256>}]} {
    %c0 = arith.constant 0 : index
    %c0_0 = arith.constant 0 : index
    %0 = vector.load %arg8[%c0, %c0_0] : memref<32x8xf32, #tpu.memory_space<vmem>>, vector<32x8xf32>
    %c0_1 = arith.constant 0 : index
    %c0_2 = arith.constant 0 : index
    %1 = vector.load %arg9[%c0_1, %c0_2] : memref<8x32xf32, #tpu.memory_space<vmem>>, vector<8x32xf32>
    %c0_3 = arith.constant 0 : index
    %c0_4 = arith.constant 0 : index
    %2 = vector.load %arg2[%c0_3, %c0_4] : memref<32x48xbf16, #tpu.memory_space<vmem>>, vector<32x48xbf16>
    %c0_5 = arith.constant 0 : index
    %c0_6 = arith.constant 0 : index
    %3 = vector.load %arg1[%c0_5, %c0_6] : memref<48x256xbf16, #tpu.memory_space<vmem>>, vector<48x256xbf16>
    %cst = arith.constant dense<0.000000e+00> : vector<32x256xf32>
    %4 = tpu.matmul %2, %3, %cst {dimension_numbers = #tpu.dot_dimension_numbers<[1], [0], [0], [1], [0, 0, 1, 1], [], []>} : vector<32x48xbf16>, vector<48x256xbf16>, vector<32x256xf32> -> vector<32x256xf32>
    %c0_7 = arith.constant 0 : index
    %c0_8 = arith.constant 0 : index
    %c0_9 = arith.constant 0 : index
    %5 = vector.load %arg4[%c0_7, %c0_8, %c0_9] : memref<4x32x1xf32, #tpu.memory_space<vmem>>, vector<1x32x1xf32>
    %6 = vector.shape_cast %5 : vector<1x32x1xf32> to vector<32x1xf32>
    %7 = vector.broadcast %6 : vector<32x1xf32> to vector<32x256xf32>
    %8 = arith.addf %4, %7 : vector<32x256xf32>
    %cst_10 = arith.constant dense<0.000000e+00> : vector<8x256xf32>
    %9 = tpu.matmul %1, %8, %cst_10 {dimension_numbers = #tpu.dot_dimension_numbers<[1], [0], [0], [1], [0, 0, 1, 1], [], []>} : vector<8x32xf32>, vector<32x256xf32>, vector<8x256xf32> -> vector<8x256xf32>
    %cst_11 = arith.constant dense<0.000000e+00> : vector<32x256xf32>
    %10 = tpu.matmul %0, %9, %cst_11 {dimension_numbers = #tpu.dot_dimension_numbers<[1], [0], [0], [1], [0, 0, 1, 1], [], []>} : vector<32x8xf32>, vector<8x256xf32>, vector<32x256xf32> -> vector<32x256xf32>
    %11 = arith.subf %8, %10 : vector<32x256xf32>
    %12 = arith.mulf %11, %11 : vector<32x256xf32>
    %cst_12 = arith.constant dense<0.000000e+00> : vector<8x256xf32>
    %13 = tpu.matmul %1, %12, %cst_12 {dimension_numbers = #tpu.dot_dimension_numbers<[1], [0], [0], [1], [0, 0, 1, 1], [], []>} : vector<8x32xf32>, vector<32x256xf32>, vector<8x256xf32> -> vector<8x256xf32>
    %cst_13 = arith.constant 9.99999974E-6 : f32
    %14 = vector.broadcast %cst_13 : f32 to vector<8x256xf32>
    %15 = arith.addf %13, %14 : vector<8x256xf32>
    %16 = math.rsqrt %15 : vector<8x256xf32>
    %cst_14 = arith.constant dense<0.000000e+00> : vector<32x256xf32>
    %17 = tpu.matmul %0, %16, %cst_14 {dimension_numbers = #tpu.dot_dimension_numbers<[1], [0], [0], [1], [0, 0, 1, 1], [], []>} : vector<32x8xf32>, vector<8x256xf32>, vector<32x256xf32> -> vector<32x256xf32>
    %c0_15 = arith.constant 0 : index
    %c0_16 = arith.constant 0 : index
    %c0_17 = arith.constant 0 : index
    %18 = vector.load %arg7[%c0_15, %c0_16, %c0_17] : memref<4x64x256xbf16, #tpu.memory_space<vmem>>, vector<1x64x256xbf16>
    %19 = vector.shape_cast %18 : vector<1x64x256xbf16> to vector<64x256xbf16>
    %20 = arith.extf %19 : vector<64x256xbf16> to vector<64x256xf32>
    %21 = vector.extract_strided_slice %20 {offsets = [0, 0], sizes = [32, 256], strides = [1, 1]} : vector<64x256xf32> to vector<32x256xf32>
    %cst_18 = arith.constant 1.000000e+00 : f32
    %22 = vector.broadcast %cst_18 : f32 to vector<32x256xf32>
    %23 = arith.addf %21, %22 : vector<32x256xf32>
    %24 = vector.extract_strided_slice %20 {offsets = [32, 0], sizes = [32, 256], strides = [1, 1]} : vector<64x256xf32> to vector<32x256xf32>
    %c0_19 = arith.constant 0 : index
    %c0_20 = arith.constant 0 : index
    %c0_21 = arith.constant 0 : index
    %25 = vector.load %arg5[%c0_19, %c0_20, %c0_21] : memref<4x32x1xf32, #tpu.memory_space<vmem>>, vector<1x32x1xf32>
    %26 = vector.shape_cast %25 : vector<1x32x1xf32> to vector<32x1xf32>
    %27 = vector.broadcast %26 : vector<32x1xf32> to vector<32x256xf32>
    %28 = arith.mulf %17, %27 : vector<32x256xf32>
    %29 = arith.mulf %28, %23 : vector<32x256xf32>
    %c0_22 = arith.constant 0 : index
    %c0_23 = arith.constant 0 : index
    %c0_24 = arith.constant 0 : index
    %30 = vector.load %arg6[%c0_22, %c0_23, %c0_24] : memref<4x32x1xf32, #tpu.memory_space<vmem>>, vector<1x32x1xf32>
    %31 = vector.shape_cast %30 : vector<1x32x1xf32> to vector<32x1xf32>
    %32 = vector.broadcast %31 : vector<32x1xf32> to vector<32x256xf32>
    %33 = arith.mulf %32, %23 : vector<32x256xf32>
    %34 = arith.addf %33, %24 : vector<32x256xf32>
    %35 = arith.mulf %11, %29 : vector<32x256xf32>
    %36 = arith.addf %35, %34 : vector<32x256xf32>
    %cst_25 = arith.constant 2.000000e-01 : f32
    %37 = vector.broadcast %cst_25 : f32 to vector<32x256xf32>
    %38 = arith.mulf %37, %36 : vector<32x256xf32>
    %39 = arith.maximumf %36, %38 : vector<32x256xf32>
    %c0_26 = arith.constant 0 : index
    %c0_27 = arith.constant 0 : index
    %c0_28 = arith.constant 0 : index
    %40 = vector.load %arg3[%c0_26, %c0_27, %c0_28] : memref<3x32x32xbf16, #tpu.memory_space<vmem>>, vector<1x32x32xbf16>
    %41 = vector.shape_cast %40 : vector<1x32x32xbf16> to vector<32x32xbf16>
    %42 = arith.truncf %39 : vector<32x256xf32> to vector<32x256xbf16>
    %cst_29 = arith.constant dense<0.000000e+00> : vector<32x256xf32>
    %43 = tpu.matmul %41, %42, %cst_29 {dimension_numbers = #tpu.dot_dimension_numbers<[1], [0], [0], [1], [0, 0, 1, 1], [], []>} : vector<32x32xbf16>, vector<32x256xbf16>, vector<32x256xf32> -> vector<32x256xf32>
    %c1 = arith.constant 1 : index
    %c0_30 = arith.constant 0 : index
    %c0_31 = arith.constant 0 : index
    %44 = vector.load %arg4[%c1, %c0_30, %c0_31] : memref<4x32x1xf32, #tpu.memory_space<vmem>>, vector<1x32x1xf32>
    %45 = vector.shape_cast %44 : vector<1x32x1xf32> to vector<32x1xf32>
    %46 = vector.broadcast %45 : vector<32x1xf32> to vector<32x256xf32>
    %47 = arith.addf %43, %46 : vector<32x256xf32>
    %cst_32 = arith.constant dense<0.000000e+00> : vector<8x256xf32>
    %48 = tpu.matmul %1, %47, %cst_32 {dimension_numbers = #tpu.dot_dimension_numbers<[1], [0], [0], [1], [0, 0, 1, 1], [], []>} : vector<8x32xf32>, vector<32x256xf32>, vector<8x256xf32> -> vector<8x256xf32>
    %cst_33 = arith.constant dense<0.000000e+00> : vector<32x256xf32>
    %49 = tpu.matmul %0, %48, %cst_33 {dimension_numbers = #tpu.dot_dimension_numbers<[1], [0], [0], [1], [0, 0, 1, 1], [], []>} : vector<32x8xf32>, vector<8x256xf32>, vector<32x256xf32> -> vector<32x256xf32>
    %50 = arith.subf %47, %49 : vector<32x256xf32>
    %51 = arith.mulf %50, %50 : vector<32x256xf32>
    %cst_34 = arith.constant dense<0.000000e+00> : vector<8x256xf32>
    %52 = tpu.matmul %1, %51, %cst_34 {dimension_numbers = #tpu.dot_dimension_numbers<[1], [0], [0], [1], [0, 0, 1, 1], [], []>} : vector<8x32xf32>, vector<32x256xf32>, vector<8x256xf32> -> vector<8x256xf32>
    %cst_35 = arith.constant 9.99999974E-6 : f32
    %53 = vector.broadcast %cst_35 : f32 to vector<8x256xf32>
    %54 = arith.addf %52, %53 : vector<8x256xf32>
    %55 = math.rsqrt %54 : vector<8x256xf32>
    %cst_36 = arith.constant dense<0.000000e+00> : vector<32x256xf32>
    %56 = tpu.matmul %0, %55, %cst_36 {dimension_numbers = #tpu.dot_dimension_numbers<[1], [0], [0], [1], [0, 0, 1, 1], [], []>} : vector<32x8xf32>, vector<8x256xf32>, vector<32x256xf32> -> vector<32x256xf32>
    %c1_37 = arith.constant 1 : index
    %c0_38 = arith.constant 0 : index
    %c0_39 = arith.constant 0 : index
    %57 = vector.load %arg7[%c1_37, %c0_38, %c0_39] : memref<4x64x256xbf16, #tpu.memory_space<vmem>>, vector<1x64x256xbf16>
    %58 = vector.shape_cast %57 : vector<1x64x256xbf16> to vector<64x256xbf16>
    %59 = arith.extf %58 : vector<64x256xbf16> to vector<64x256xf32>
    %60 = vector.extract_strided_slice %59 {offsets = [0, 0], sizes = [32, 256], strides = [1, 1]} : vector<64x256xf32> to vector<32x256xf32>
    %cst_40 = arith.constant 1.000000e+00 : f32
    %61 = vector.broadcast %cst_40 : f32 to vector<32x256xf32>
    %62 = arith.addf %60, %61 : vector<32x256xf32>
    %63 = vector.extract_strided_slice %59 {offsets = [32, 0], sizes = [32, 256], strides = [1, 1]} : vector<64x256xf32> to vector<32x256xf32>
    %c1_41 = arith.constant 1 : index
    %c0_42 = arith.constant 0 : index
    %c0_43 = arith.constant 0 : index
    %64 = vector.load %arg5[%c1_41, %c0_42, %c0_43] : memref<4x32x1xf32, #tpu.memory_space<vmem>>, vector<1x32x1xf32>
    %65 = vector.shape_cast %64 : vector<1x32x1xf32> to vector<32x1xf32>
    %66 = vector.broadcast %65 : vector<32x1xf32> to vector<32x256xf32>
    %67 = arith.mulf %56, %66 : vector<32x256xf32>
    %68 = arith.mulf %67, %62 : vector<32x256xf32>
    %c1_44 = arith.constant 1 : index
    %c0_45 = arith.constant 0 : index
    %c0_46 = arith.constant 0 : index
    %69 = vector.load %arg6[%c1_44, %c0_45, %c0_46] : memref<4x32x1xf32, #tpu.memory_space<vmem>>, vector<1x32x1xf32>
    %70 = vector.shape_cast %69 : vector<1x32x1xf32> to vector<32x1xf32>
    %71 = vector.broadcast %70 : vector<32x1xf32> to vector<32x256xf32>
    %72 = arith.mulf %71, %62 : vector<32x256xf32>
    %73 = arith.addf %72, %63 : vector<32x256xf32>
    %74 = arith.mulf %50, %68 : vector<32x256xf32>
    %75 = arith.addf %74, %73 : vector<32x256xf32>
    %cst_47 = arith.constant 2.000000e-01 : f32
    %76 = vector.broadcast %cst_47 : f32 to vector<32x256xf32>
    %77 = arith.mulf %76, %75 : vector<32x256xf32>
    %78 = arith.maximumf %75, %77 : vector<32x256xf32>
    %c1_48 = arith.constant 1 : index
    %c0_49 = arith.constant 0 : index
    %c0_50 = arith.constant 0 : index
    %79 = vector.load %arg3[%c1_48, %c0_49, %c0_50] : memref<3x32x32xbf16, #tpu.memory_space<vmem>>, vector<1x32x32xbf16>
    %80 = vector.shape_cast %79 : vector<1x32x32xbf16> to vector<32x32xbf16>
    %81 = arith.truncf %78 : vector<32x256xf32> to vector<32x256xbf16>
    %cst_51 = arith.constant dense<0.000000e+00> : vector<32x256xf32>
    %82 = tpu.matmul %80, %81, %cst_51 {dimension_numbers = #tpu.dot_dimension_numbers<[1], [0], [0], [1], [0, 0, 1, 1], [], []>} : vector<32x32xbf16>, vector<32x256xbf16>, vector<32x256xf32> -> vector<32x256xf32>
    %c2 = arith.constant 2 : index
    %c0_52 = arith.constant 0 : index
    %c0_53 = arith.constant 0 : index
    %83 = vector.load %arg4[%c2, %c0_52, %c0_53] : memref<4x32x1xf32, #tpu.memory_space<vmem>>, vector<1x32x1xf32>
    %84 = vector.shape_cast %83 : vector<1x32x1xf32> to vector<32x1xf32>
    %85 = vector.broadcast %84 : vector<32x1xf32> to vector<32x256xf32>
    %86 = arith.addf %82, %85 : vector<32x256xf32>
    %cst_54 = arith.constant dense<0.000000e+00> : vector<8x256xf32>
    %87 = tpu.matmul %1, %86, %cst_54 {dimension_numbers = #tpu.dot_dimension_numbers<[1], [0], [0], [1], [0, 0, 1, 1], [], []>} : vector<8x32xf32>, vector<32x256xf32>, vector<8x256xf32> -> vector<8x256xf32>
    %cst_55 = arith.constant dense<0.000000e+00> : vector<32x256xf32>
    %88 = tpu.matmul %0, %87, %cst_55 {dimension_numbers = #tpu.dot_dimension_numbers<[1], [0], [0], [1], [0, 0, 1, 1], [], []>} : vector<32x8xf32>, vector<8x256xf32>, vector<32x256xf32> -> vector<32x256xf32>
    %89 = arith.subf %86, %88 : vector<32x256xf32>
    %90 = arith.mulf %89, %89 : vector<32x256xf32>
    %cst_56 = arith.constant dense<0.000000e+00> : vector<8x256xf32>
    %91 = tpu.matmul %1, %90, %cst_56 {dimension_numbers = #tpu.dot_dimension_numbers<[1], [0], [0], [1], [0, 0, 1, 1], [], []>} : vector<8x32xf32>, vector<32x256xf32>, vector<8x256xf32> -> vector<8x256xf32>
    %cst_57 = arith.constant 9.99999974E-6 : f32
    %92 = vector.broadcast %cst_57 : f32 to vector<8x256xf32>
    %93 = arith.addf %91, %92 : vector<8x256xf32>
    %94 = math.rsqrt %93 : vector<8x256xf32>
    %cst_58 = arith.constant dense<0.000000e+00> : vector<32x256xf32>
    %95 = tpu.matmul %0, %94, %cst_58 {dimension_numbers = #tpu.dot_dimension_numbers<[1], [0], [0], [1], [0, 0, 1, 1], [], []>} : vector<32x8xf32>, vector<8x256xf32>, vector<32x256xf32> -> vector<32x256xf32>
    %c2_59 = arith.constant 2 : index
    %c0_60 = arith.constant 0 : index
    %c0_61 = arith.constant 0 : index
    %96 = vector.load %arg7[%c2_59, %c0_60, %c0_61] : memref<4x64x256xbf16, #tpu.memory_space<vmem>>, vector<1x64x256xbf16>
    %97 = vector.shape_cast %96 : vector<1x64x256xbf16> to vector<64x256xbf16>
    %98 = arith.extf %97 : vector<64x256xbf16> to vector<64x256xf32>
    %99 = vector.extract_strided_slice %98 {offsets = [0, 0], sizes = [32, 256], strides = [1, 1]} : vector<64x256xf32> to vector<32x256xf32>
    %cst_62 = arith.constant 1.000000e+00 : f32
    %100 = vector.broadcast %cst_62 : f32 to vector<32x256xf32>
    %101 = arith.addf %99, %100 : vector<32x256xf32>
    %102 = vector.extract_strided_slice %98 {offsets = [32, 0], sizes = [32, 256], strides = [1, 1]} : vector<64x256xf32> to vector<32x256xf32>
    %c2_63 = arith.constant 2 : index
    %c0_64 = arith.constant 0 : index
    %c0_65 = arith.constant 0 : index
    %103 = vector.load %arg5[%c2_63, %c0_64, %c0_65] : memref<4x32x1xf32, #tpu.memory_space<vmem>>, vector<1x32x1xf32>
    %104 = vector.shape_cast %103 : vector<1x32x1xf32> to vector<32x1xf32>
    %105 = vector.broadcast %104 : vector<32x1xf32> to vector<32x256xf32>
    %106 = arith.mulf %95, %105 : vector<32x256xf32>
    %107 = arith.mulf %106, %101 : vector<32x256xf32>
    %c2_66 = arith.constant 2 : index
    %c0_67 = arith.constant 0 : index
    %c0_68 = arith.constant 0 : index
    %108 = vector.load %arg6[%c2_66, %c0_67, %c0_68] : memref<4x32x1xf32, #tpu.memory_space<vmem>>, vector<1x32x1xf32>
    %109 = vector.shape_cast %108 : vector<1x32x1xf32> to vector<32x1xf32>
    %110 = vector.broadcast %109 : vector<32x1xf32> to vector<32x256xf32>
    %111 = arith.mulf %110, %101 : vector<32x256xf32>
    %112 = arith.addf %111, %102 : vector<32x256xf32>
    %113 = arith.mulf %89, %107 : vector<32x256xf32>
    %114 = arith.addf %113, %112 : vector<32x256xf32>
    %cst_69 = arith.constant 2.000000e-01 : f32
    %115 = vector.broadcast %cst_69 : f32 to vector<32x256xf32>
    %116 = arith.mulf %115, %114 : vector<32x256xf32>
    %117 = arith.maximumf %114, %116 : vector<32x256xf32>
    %c2_70 = arith.constant 2 : index
    %c0_71 = arith.constant 0 : index
    %c0_72 = arith.constant 0 : index
    %118 = vector.load %arg3[%c2_70, %c0_71, %c0_72] : memref<3x32x32xbf16, #tpu.memory_space<vmem>>, vector<1x32x32xbf16>
    %119 = vector.shape_cast %118 : vector<1x32x32xbf16> to vector<32x32xbf16>
    %120 = arith.truncf %117 : vector<32x256xf32> to vector<32x256xbf16>
    %cst_73 = arith.constant dense<0.000000e+00> : vector<32x256xf32>
    %121 = tpu.matmul %119, %120, %cst_73 {dimension_numbers = #tpu.dot_dimension_numbers<[1], [0], [0], [1], [0, 0, 1, 1], [], []>} : vector<32x32xbf16>, vector<32x256xbf16>, vector<32x256xf32> -> vector<32x256xf32>
    %c3 = arith.constant 3 : index
    %c0_74 = arith.constant 0 : index
    %c0_75 = arith.constant 0 : index
    %122 = vector.load %arg4[%c3, %c0_74, %c0_75] : memref<4x32x1xf32, #tpu.memory_space<vmem>>, vector<1x32x1xf32>
    %123 = vector.shape_cast %122 : vector<1x32x1xf32> to vector<32x1xf32>
    %124 = vector.broadcast %123 : vector<32x1xf32> to vector<32x256xf32>
    %125 = arith.addf %121, %124 : vector<32x256xf32>
    %cst_76 = arith.constant dense<0.000000e+00> : vector<8x256xf32>
    %126 = tpu.matmul %1, %125, %cst_76 {dimension_numbers = #tpu.dot_dimension_numbers<[1], [0], [0], [1], [0, 0, 1, 1], [], []>} : vector<8x32xf32>, vector<32x256xf32>, vector<8x256xf32> -> vector<8x256xf32>
    %cst_77 = arith.constant dense<0.000000e+00> : vector<32x256xf32>
    %127 = tpu.matmul %0, %126, %cst_77 {dimension_numbers = #tpu.dot_dimension_numbers<[1], [0], [0], [1], [0, 0, 1, 1], [], []>} : vector<32x8xf32>, vector<8x256xf32>, vector<32x256xf32> -> vector<32x256xf32>
    %128 = arith.subf %125, %127 : vector<32x256xf32>
    %129 = arith.mulf %128, %128 : vector<32x256xf32>
    %cst_78 = arith.constant dense<0.000000e+00> : vector<8x256xf32>
    %130 = tpu.matmul %1, %129, %cst_78 {dimension_numbers = #tpu.dot_dimension_numbers<[1], [0], [0], [1], [0, 0, 1, 1], [], []>} : vector<8x32xf32>, vector<32x256xf32>, vector<8x256xf32> -> vector<8x256xf32>
    %cst_79 = arith.constant 9.99999974E-6 : f32
    %131 = vector.broadcast %cst_79 : f32 to vector<8x256xf32>
    %132 = arith.addf %130, %131 : vector<8x256xf32>
    %133 = math.rsqrt %132 : vector<8x256xf32>
    %cst_80 = arith.constant dense<0.000000e+00> : vector<32x256xf32>
    %134 = tpu.matmul %0, %133, %cst_80 {dimension_numbers = #tpu.dot_dimension_numbers<[1], [0], [0], [1], [0, 0, 1, 1], [], []>} : vector<32x8xf32>, vector<8x256xf32>, vector<32x256xf32> -> vector<32x256xf32>
    %c3_81 = arith.constant 3 : index
    %c0_82 = arith.constant 0 : index
    %c0_83 = arith.constant 0 : index
    %135 = vector.load %arg7[%c3_81, %c0_82, %c0_83] : memref<4x64x256xbf16, #tpu.memory_space<vmem>>, vector<1x64x256xbf16>
    %136 = vector.shape_cast %135 : vector<1x64x256xbf16> to vector<64x256xbf16>
    %137 = arith.extf %136 : vector<64x256xbf16> to vector<64x256xf32>
    %138 = vector.extract_strided_slice %137 {offsets = [0, 0], sizes = [32, 256], strides = [1, 1]} : vector<64x256xf32> to vector<32x256xf32>
    %cst_84 = arith.constant 1.000000e+00 : f32
    %139 = vector.broadcast %cst_84 : f32 to vector<32x256xf32>
    %140 = arith.addf %138, %139 : vector<32x256xf32>
    %141 = vector.extract_strided_slice %137 {offsets = [32, 0], sizes = [32, 256], strides = [1, 1]} : vector<64x256xf32> to vector<32x256xf32>
    %c3_85 = arith.constant 3 : index
    %c0_86 = arith.constant 0 : index
    %c0_87 = arith.constant 0 : index
    %142 = vector.load %arg5[%c3_85, %c0_86, %c0_87] : memref<4x32x1xf32, #tpu.memory_space<vmem>>, vector<1x32x1xf32>
    %143 = vector.shape_cast %142 : vector<1x32x1xf32> to vector<32x1xf32>
    %144 = vector.broadcast %143 : vector<32x1xf32> to vector<32x256xf32>
    %145 = arith.mulf %134, %144 : vector<32x256xf32>
    %146 = arith.mulf %145, %140 : vector<32x256xf32>
    %c3_88 = arith.constant 3 : index
    %c0_89 = arith.constant 0 : index
    %c0_90 = arith.constant 0 : index
    %147 = vector.load %arg6[%c3_88, %c0_89, %c0_90] : memref<4x32x1xf32, #tpu.memory_space<vmem>>, vector<1x32x1xf32>
    %148 = vector.shape_cast %147 : vector<1x32x1xf32> to vector<32x1xf32>
    %149 = vector.broadcast %148 : vector<32x1xf32> to vector<32x256xf32>
    %150 = arith.mulf %149, %140 : vector<32x256xf32>
    %151 = arith.addf %150, %141 : vector<32x256xf32>
    %152 = arith.mulf %128, %146 : vector<32x256xf32>
    %153 = arith.addf %152, %151 : vector<32x256xf32>
    %cst_91 = arith.constant 2.000000e-01 : f32
    %154 = vector.broadcast %cst_91 : f32 to vector<32x256xf32>
    %155 = arith.mulf %154, %153 : vector<32x256xf32>
    %156 = arith.maximumf %153, %155 : vector<32x256xf32>
    %157 = arith.truncf %156 : vector<32x256xf32> to vector<32x256xbf16>
    %c0_92 = arith.constant 0 : index
    %c0_93 = arith.constant 0 : index
    %158 = vector.load %arg10[%c0_92, %c0_93] : memref<32x256xbf16, #tpu.memory_space<vmem>>, vector<32x256xbf16>
    tpu.vector_store %arg10[%c0_92, %c0_93], %157 {strides = array<i32>} : memref<32x256xbf16, #tpu.memory_space<vmem>>, vector<32x256xbf16>,
    return
  }
  func.func @transform_0(%arg0: i32) -> (i32, i32) {
    %c0_i32 = arith.constant 0 : i32
    %c0_i32_0 = arith.constant 0 : i32
    return %c0_i32, %arg0 : i32, i32
  }
  func.func @transform_1(%arg0: i32) -> (i32, i32) {
    %c0_i32 = arith.constant 0 : i32
    %c0_i32_0 = arith.constant 0 : i32
    %c0_i32_1 = arith.constant 0 : i32
    return %c0_i32, %c0_i32_0 : i32, i32
  }
  func.func @transform_2(%arg0: i32) -> (i32, i32, i32) {
    %c0_i32 = arith.constant 0 : i32
    %c0_i32_0 = arith.constant 0 : i32
    %c0_i32_1 = arith.constant 0 : i32
    %c0_i32_2 = arith.constant 0 : i32
    return %c0_i32, %c0_i32_0, %c0_i32_1 : i32, i32, i32
  }
  func.func @transform_3(%arg0: i32) -> (i32, i32, i32) {
    %c0_i32 = arith.constant 0 : i32
    %c0_i32_0 = arith.constant 0 : i32
    %c0_i32_1 = arith.constant 0 : i32
    %c0_i32_2 = arith.constant 0 : i32
    return %c0_i32, %c0_i32_0, %c0_i32_1 : i32, i32, i32
  }
  func.func @transform_4(%arg0: i32) -> (i32, i32, i32) {
    %c0_i32 = arith.constant 0 : i32
    %c0_i32_0 = arith.constant 0 : i32
    %c0_i32_1 = arith.constant 0 : i32
    %c0_i32_2 = arith.constant 0 : i32
    return %c0_i32, %c0_i32_0, %c0_i32_1 : i32, i32, i32
  }
  func.func @transform_5(%arg0: i32) -> (i32, i32, i32) {
    %c0_i32 = arith.constant 0 : i32
    %c0_i32_0 = arith.constant 0 : i32
    %c0_i32_1 = arith.constant 0 : i32
    %c0_i32_2 = arith.constant 0 : i32
    return %c0_i32, %c0_i32_0, %c0_i32_1 : i32, i32, i32
  }
  func.func @transform_6(%arg0: i32) -> (i32, i32, i32) {
    %c0_i32 = arith.constant 0 : i32
    %c0_i32_0 = arith.constant 0 : i32
    %c0_i32_1 = arith.constant 0 : i32
    return %c0_i32, %c0_i32_0, %arg0 : i32, i32, i32
  }
  func.func @transform_7(%arg0: i32) -> (i32, i32) {
    %c0_i32 = arith.constant 0 : i32
    %c0_i32_0 = arith.constant 0 : i32
    %c0_i32_1 = arith.constant 0 : i32
    return %c0_i32, %c0_i32_0 : i32, i32
  }
  func.func @transform_8(%arg0: i32) -> (i32, i32) {
    %c0_i32 = arith.constant 0 : i32
    %c0_i32_0 = arith.constant 0 : i32
    %c0_i32_1 = arith.constant 0 : i32
    return %c0_i32, %c0_i32_0 : i32, i32
  }
  func.func @transform_9(%arg0: i32) -> (i32, i32) {
    %c0_i32 = arith.constant 0 : i32
    %c0_i32_0 = arith.constant 0 : i32
    return %c0_i32, %arg0 : i32, i32
  }
}

</mosaic_0001>

<llo_original>
// kernel: network_with_input_encoding.1
$region0: #{network_with_input_encoding.1}
  #allocation0 [shape = 'u32[]', space=smem, size = 0x4, offset = 0x4, fixed_abs, tag = 'smem constant byte address 0x4 - core index']
  #allocation1 [shape = 'u32[144,128]{1,0:T(1,128)}', space=vmem, size = 0x12000, scoped, tag = 'internal scratch']
  %s0 = inlined_call_operand.vmem [shape: bf16[48,1024], index: 0, kind: input, shape index: {}]
  %s1 = inlined_call_operand.vmem [shape: bf16[32,48], index: 1, kind: input, shape index: {}]
  %s2 = inlined_call_operand.vmem [shape: bf16[3,32,32], index: 2, kind: input, shape index: {}]
  %s3 = inlined_call_operand.vmem [shape: f32[4,32,1], index: 3, kind: input, shape index: {}]
  %s4 = inlined_call_operand.vmem [shape: f32[4,32,1], index: 4, kind: input, shape index: {}]
  %s5 = inlined_call_operand.vmem [shape: f32[4,32,1], index: 5, kind: input, shape index: {}]
  %s6 = inlined_call_operand.vmem [shape: bf16[4,64,1024], index: 6, kind: input, shape index: {}]
  %s7 = inlined_call_operand.vmem [shape: f32[32,8], index: 7, kind: input, shape index: {}]
  %s8 = inlined_call_operand.vmem [shape: f32[8,32], index: 8, kind: input, shape index: {}]
  %s9 = inlined_call_operand.hbm [shape: bf16[32,1024], index: 9, kind: output, shape index: {}]
  %s10 = sld [smem:[#allocation0]]
  $region145: #{network_with_input_encoding.1} parent=0
    _
  %s12 = ssub.s32 1, %s10
  %s13 = scalar_select 0, %s12, %s10
  $region1: #{network_with_input_encoding.1} parent=0
    #allocation2 [shape = 'u8[49152]{0}', space=vmem, size = 0xc000, scoped, tag = 'input window, operand 0']
    #allocation3 [shape = 'u8[262144]{0}', space=vmem, size = 0x40000, scoped, tag = 'input window, operand 6']
    #allocation4 [shape = 'u8[32768]{0}', space=vmem, size = 0x8000, scoped, tag = 'output window, operand 0']
    #allocation5 [shape = 's32[2]{0}', space=sflag, size = 0x8, scoped, tag = 'scoped memory for network_with_input_encoding.1']
    %14 = vsyncpa [#allocation5], 0
    %s15 = scalar_lea.sflag [#allocation5], 1
    %16 = vsyncpa %s15, 0
    loop: start=0, step=1, limit=6
    $region2: #{network_with_input_encoding.1} parent=1 // loop_pre_header
      _
    $region3: #{network_with_input_encoding.1} parent=1 // loop_header
      %s18 = sphi 0, %s22
      %p19 = scmp.ge.s32.totalorder %s18, 6
      %s28 = sphi 0, %s30
      %s31 = sphi 0, %s28
      %s32 = sphi 0, %s31
      %s48 = sphi 0, %s32
      %s52 = sphi 0, %s52
      %s54 = sphi 0, %s52
      %s55 = sphi 0, %s54
      %s69 = sphi 0, %s55
      %s73 = sphi 0, %s73
      %s75 = sphi 0, %s73
      %s76 = sphi 0, %s75
      %s90 = sphi 0, %s76
      %s94 = sphi 0, %s94
      %s96 = sphi 0, %s94
      %s97 = sphi 0, %s96
      %s111 = sphi 0, %s97
      %s115 = sphi 0, %s115
      %s117 = sphi 0, %s115
      %s118 = sphi 0, %s117
      %s132 = sphi 0, %s118
      %s136 = sphi 0, %s136
      %s138 = sphi 0, %s136
      %s139 = sphi 0, %s138
      %s153 = sphi 0, %s139
      %s159 = sphi 0, %s161
      %s162 = sphi 0, %s159
      %s163 = sphi 0, %s162
      %s179 = sphi 0, %s163
      %s183 = sphi 0, %s183
      %s185 = sphi 0, %s183
      %s186 = sphi 0, %s185
      %s200 = sphi 0, %s186
      %s204 = sphi 0, %s204
      %s206 = sphi 0, %s204
      %s207 = sphi 0, %s206
      %s221 = sphi 0, %s207
      %s227 = sphi 0, %s229
      %s230 = sphi 0, %s227
      %s231 = sphi 0, %s230
      %s247 = sphi 0, %s231
    $region4: #{network_with_input_encoding.1} parent=1 // loop_header_branch
      %21 = sbr.rel (%p19) target = $region8
    $region5: #{network_with_input_encoding.1} parent=1 // loop_body
      %s23 = ssub.s32 %s18, 1
      %s24 = ssub.s32 %s18, 2
      %s25 = sadd.s32 %s18, 1
      %s26 = ssub.s32 %s18, %s25
      %p27 = scmp.eq.s32.totalorder %s26, 0
      %s29 = sadd.s32 %s28, 1
      %s30 = scalar_select %p27, %s28, %s29
      %p33 = pneg %p27
      %p34 = scmp.eq.s32.totalorder %s18, 3
      %p35 = por %p33, %p34
      %p36 = scmp.ne.s32.totalorder %s28, %s31
      %p37 = scmp.eq.s32.totalorder %s18, 0
      %p38 = por %p36, %p37
      %p39 = scmp.ne.s32.totalorder %s28, %s31
      %p40 = scmp.eq.s32.totalorder %s23, 3
      %p41 = por %p39, %p40
      %p42 = scmp.ne.s32.totalorder %s31, %s32
      %p43 = scmp.eq.s32.totalorder %s23, 0
      %p44 = por %p42, %p43
      %p45 = scmp.ne.s32.totalorder %s31, %s32
      %p46 = scmp.eq.s32.totalorder %s24, 3
      %p47 = por %p45, %p46
      %p49 = scmp.ne.s32.totalorder %s32, %s48
      %p50 = scmp.eq.s32.totalorder %s24, 0
      %p51 = por %p49, %p50
      %s53 = sadd.s32 %s52, 1
      %p56 = scmp.eq.s32.totalorder %s18, 3
      %p57 = scmp.ne.s32.totalorder %s52, %s54
      %p58 = scmp.eq.s32.totalorder %s18, 0
      %p59 = por %p57, %p58
      %p60 = scmp.ne.s32.totalorder %s52, %s54
      %p61 = scmp.eq.s32.totalorder %s23, 3
      %p62 = por %p60, %p61
      %p63 = scmp.ne.s32.totalorder %s54, %s55
      %p64 = scmp.eq.s32.totalorder %s23, 0
      %p65 = por %p63, %p64
      %p66 = scmp.ne.s32.totalorder %s54, %s55
      %p67 = scmp.eq.s32.totalorder %s24, 3
      %p68 = por %p66, %p67
      %p70 = scmp.ne.s32.totalorder %s55, %s69
      %p71 = scmp.eq.s32.totalorder %s24, 0
      %p72 = por %p70, %p71
      %s74 = sadd.s32 %s73, 1
      %p77 = scmp.eq.s32.totalorder %s18, 3
      %p78 = scmp.ne.s32.totalorder %s73, %s75
      %p79 = scmp.eq.s32.totalorder %s18, 0
      %p80 = por %p78, %p79
      %p81 = scmp.ne.s32.totalorder %s73, %s75
      %p82 = scmp.eq.s32.totalorder %s23, 3
      %p83 = por %p81, %p82
      %p84 = scmp.ne.s32.totalorder %s75, %s76
      %p85 = scmp.eq.s32.totalorder %s23, 0
      %p86 = por %p84, %p85
      %p87 = scmp.ne.s32.totalorder %s75, %s76
      %p88 = scmp.eq.s32.totalorder %s24, 3
      %p89 = por %p87, %p88
      %p91 = scmp.ne.s32.totalorder %s76, %s90
      %p92 = scmp.eq.s32.totalorder %s24, 0
      %p93 = por %p91, %p92
      %s95 = sadd.s32 %s94, 1
      %p98 = scmp.eq.s32.totalorder %s18, 3
      %p99 = scmp.ne.s32.totalorder %s94, %s96
      %p100 = scmp.eq.s32.totalorder %s18, 0
      %p101 = por %p99, %p100
      %p102 = scmp.ne.s32.totalorder %s94, %s96
      %p103 = scmp.eq.s32.totalorder %s23, 3
      %p104 = por %p102, %p103
      %p105 = scmp.ne.s32.totalorder %s96, %s97
      %p106 = scmp.eq.s32.totalorder %s23, 0
      %p107 = por %p105, %p106
      %p108 = scmp.ne.s32.totalorder %s96, %s97
      %p109 = scmp.eq.s32.totalorder %s24, 3
      %p110 = por %p108, %p109
      %p112 = scmp.ne.s32.totalorder %s97, %s111
      %p113 = scmp.eq.s32.totalorder %s24, 0
      %p114 = por %p112, %p113
      %s116 = sadd.s32 %s115, 1
      %p119 = scmp.eq.s32.totalorder %s18, 3
      %p120 = scmp.ne.s32.totalorder %s115, %s117
      %p121 = scmp.eq.s32.totalorder %s18, 0
      %p122 = por %p120, %p121
      %p123 = scmp.ne.s32.totalorder %s115, %s117
      %p124 = scmp.eq.s32.totalorder %s23, 3
      %p125 = por %p123, %p124
      %p126 = scmp.ne.s32.totalorder %s117, %s118
      %p127 = scmp.eq.s32.totalorder %s23, 0
      %p128 = por %p126, %p127
      %p129 = scmp.ne.s32.totalorder %s117, %s118
      %p130 = scmp.eq.s32.totalorder %s24, 3
      %p131 = por %p129, %p130
      %p133 = scmp.ne.s32.totalorder %s118, %s132
      %p134 = scmp.eq.s32.totalorder %s24, 0
      %p135 = por %p133, %p134
      %s137 = sadd.s32 %s136, 1
      %p140 = scmp.eq.s32.totalorder %s18, 3
      %p141 = scmp.ne.s32.totalorder %s136, %s138
      %p142 = scmp.eq.s32.totalorder %s18, 0
      %p143 = por %p141, %p142
      %p144 = scmp.ne.s32.totalorder %s136, %s138
      %p145 = scmp.eq.s32.totalorder %s23, 3
      %p146 = por %p144, %p145
      %p147 = scmp.ne.s32.totalorder %s138, %s139
      %p148 = scmp.eq.s32.totalorder %s23, 0
      %p149 = por %p147, %p148
      %p150 = scmp.ne.s32.totalorder %s138, %s139
      %p151 = scmp.eq.s32.totalorder %s24, 3
      %p152 = por %p150, %p151
      %p154 = scmp.ne.s32.totalorder %s139, %s153
      %p155 = scmp.eq.s32.totalorder %s24, 0
      %p156 = por %p154, %p155
      %s157 = ssub.s32 %s18, %s25
      %p158 = scmp.eq.s32.totalorder %s157, 0
      %s160 = sadd.s32 %s159, 1
      %s161 = scalar_select %p158, %s159, %s160
      %p164 = pneg %p158
      %p165 = scmp.eq.s32.totalorder %s18, 3
      %p166 = por %p164, %p165
      %p167 = scmp.ne.s32.totalorder %s159, %s162
      %p168 = scmp.eq.s32.totalorder %s18, 0
      %p169 = por %p167, %p168
      %p170 = scmp.ne.s32.totalorder %s159, %s162
      %p171 = scmp.eq.s32.totalorder %s23, 3
      %p172 = por %p170, %p171
      %p173 = scmp.ne.s32.totalorder %s162, %s163
      %p174 = scmp.eq.s32.totalorder %s23, 0
      %p175 = por %p173, %p174
      %p176 = scmp.ne.s32.totalorder %s162, %s163
      %p177 = scmp.eq.s32.totalorder %s24, 3
      %p178 = por %p176, %p177
      %p180 = scmp.ne.s32.totalorder %s163, %s179
      %p181 = scmp.eq.s32.totalorder %s24, 0
      %p182 = por %p180, %p181
      %s184 = sadd.s32 %s183, 1
      %p187 = scmp.eq.s32.totalorder %s18, 3
      %p188 = scmp.ne.s32.totalorder %s183, %s185
      %p189 = scmp.eq.s32.totalorder %s18, 0
      %p190 = por %p188, %p189
      %p191 = scmp.ne.s32.totalorder %s183, %s185
      %p192 = scmp.eq.s32.totalorder %s23, 3
      %p193 = por %p191, %p192
      %p194 = scmp.ne.s32.totalorder %s185, %s186
      %p195 = scmp.eq.s32.totalorder %s23, 0
      %p196 = por %p194, %p195
      %p197 = scmp.ne.s32.totalorder %s185, %s186
      %p198 = scmp.eq.s32.totalorder %s24, 3
      %p199 = por %p197, %p198
      %p201 = scmp.ne.s32.totalorder %s186, %s200
      %p202 = scmp.eq.s32.totalorder %s24, 0
      %p203 = por %p201, %p202
      %s205 = sadd.s32 %s204, 1
      %p208 = scmp.eq.s32.totalorder %s18, 3
      %p209 = scmp.ne.s32.totalorder %s204, %s206
      %p210 = scmp.eq.s32.totalorder %s18, 0
      %p211 = por %p209, %p210
      %p212 = scmp.ne.s32.totalorder %s204, %s206
      %p213 = scmp.eq.s32.totalorder %s23, 3
      %p214 = por %p212, %p213
      %p215 = scmp.ne.s32.totalorder %s206, %s207
      %p216 = scmp.eq.s32.totalorder %s23, 0
      %p217 = por %p215, %p216
      %p218 = scmp.ne.s32.totalorder %s206, %s207
      %p219 = scmp.eq.s32.totalorder %s24, 3
      %p220 = por %p218, %p219
      %p222 = scmp.ne.s32.totalorder %s207, %s221
      %p223 = scmp.eq.s32.totalorder %s24, 0
      %p224 = por %p222, %p223
      %s225 = ssub.s32 %s18, %s25
      %p226 = scmp.eq.s32.totalorder %s225, 0
      %s228 = sadd.s32 %s227, 1
      %s229 = scalar_select %p226, %s227, %s228
      %p232 = pneg %p226
      %p233 = scmp.eq.s32.totalorder %s18, 3
      %p234 = por %p232, %p233
      %p235 = scmp.ne.s32.totalorder %s227, %s230
      %p236 = scmp.eq.s32.totalorder %s18, 0
      %p237 = por %p235, %p236
      %p238 = scmp.ne.s32.totalorder %s227, %s230
      %p239 = scmp.eq.s32.totalorder %s23, 3
      %p240 = por %p238, %p239
      %p241 = scmp.ne.s32.totalorder %s230, %s231
      %p242 = scmp.eq.s32.totalorder %s23, 0
      %p243 = por %p241, %p242
      %p244 = scmp.ne.s32.totalorder %s230, %s231
      %p245 = scmp.eq.s32.totalorder %s24, 3
      %p246 = por %p244, %p245
      %p248 = scmp.ne.s32.totalorder %s231, %s247
      %p249 = scmp.eq.s32.totalorder %s24, 0
      %p250 = por %p248, %p249
      %p251 = scmp.le.s32.totalorder 1, %s18
      %p252 = scmp.lt.s32.totalorder %s18, 5
      %p253 = pnand %p251, %p252
      %p254 = pneg %p253
      // Predicated region
      $region9: #{network_with_input_encoding.1} parent=5 // pred_check
        _
      $region10: #{network_with_input_encoding.1} parent=5 // pred_check_branch
        %256 = sbr.rel (%p253) target = $region12
      $region11: #{network_with_input_encoding.1} parent=5 // pred_region
        %s257 = ssub.s32 %s18, 1
        // Predicated region
        $region13: #{network_with_input_encoding.1} parent=11 // pred_check
          %p258 = pneg %p65
        $region14: #{network_with_input_encoding.1} parent=11 // pred_check_branch
          %260 = sbr.rel (%p258) target = $region16
        $region15: #{network_with_input_encoding.1} parent=11 // pred_region
          _
        $region16: #{network_with_input_encoding.1} parent=11 // pred_fallthru
          _
        // Predicated region
        $region17: #{network_with_input_encoding.1} parent=11 // pred_check
          %p261 = pneg %p86
        $region18: #{network_with_input_encoding.1} parent=11 // pred_check_branch
          %263 = sbr.rel (%p261) target = $region20
        $region19: #{network_with_input_encoding.1} parent=11 // pred_region
          _
        $region20: #{network_with_input_encoding.1} parent=11 // pred_fallthru
          _
        // Predicated region
        $region21: #{network_with_input_encoding.1} parent=11 // pred_check
          %p264 = pneg %p107
        $region22: #{network_with_input_encoding.1} parent=11 // pred_check_branch
          %266 = sbr.rel (%p264) target = $region24
        $region23: #{network_with_input_encoding.1} parent=11 // pred_region
          _
        $region24: #{network_with_input_encoding.1} parent=11 // pred_fallthru
          _
        // Predicated region
        $region25: #{network_with_input_encoding.1} parent=11 // pred_check
          %p267 = pneg %p128
        $region26: #{network_with_input_encoding.1} parent=11 // pred_check_branch
          %269 = sbr.rel (%p267) target = $region28
        $region27: #{network_with_input_encoding.1} parent=11 // pred_region
          _
        $region28: #{network_with_input_encoding.1} parent=11 // pred_fallthru
          _
        // Predicated region
        $region29: #{network_with_input_encoding.1} parent=11 // pred_check
          %p270 = pneg %p149
        $region30: #{network_with_input_encoding.1} parent=11 // pred_check_branch
          %272 = sbr.rel (%p270) target = $region32
        $region31: #{network_with_input_encoding.1} parent=11 // pred_region
          _
        $region32: #{network_with_input_encoding.1} parent=11 // pred_fallthru
          _
        // Predicated region
        $region33: #{network_with_input_encoding.1} parent=11 // pred_check
          %p273 = pneg %p196
        $region34: #{network_with_input_encoding.1} parent=11 // pred_check_branch
          %275 = sbr.rel (%p273) target = $region36
        $region35: #{network_with_input_encoding.1} parent=11 // pred_region
          _
        $region36: #{network_with_input_encoding.1} parent=11 // pred_fallthru
          _
        // Predicated region
        $region37: #{network_with_input_encoding.1} parent=11 // pred_check
          %p276 = pneg %p217
        $region38: #{network_with_input_encoding.1} parent=11 // pred_check_branch
          %278 = sbr.rel (%p276) target = $region40
        $region39: #{network_with_input_encoding.1} parent=11 // pred_region
          _
        $region40: #{network_with_input_encoding.1} parent=11 // pred_fallthru
          _
      $region12: #{network_with_input_encoding.1} parent=5 // pred_fallthru
        _
      %p279 = scmp.lt.s32.totalorder %s18, 4
      // Predicated region
      $region41: #{network_with_input_encoding.1} parent=5 // pred_check
        %p280 = pneg %p279
      $region42: #{network_with_input_encoding.1} parent=5 // pred_check_branch
        %282 = sbr.rel (%p280) target = $region44
      $region43: #{network_with_input_encoding.1} parent=5 // pred_region
        // Predicated region
        $region45: #{network_with_input_encoding.1} parent=43 // pred_check
          %p283 = pneg %p38
        $region46: #{network_with_input_encoding.1} parent=43 // pred_check_branch
          %285 = sbr.rel (%p283) target = $region48
        $region47: #{network_with_input_encoding.1} parent=43 // pred_region
          %s286 = sand.u32 %s28, 1
          %s287 = sand.u32 %s28, 1
          %s288 = smul.addr %s287, 48
          %s289 = scalar_lea.vmem [#allocation2], %s288
          %s290 = smul.u32 2, %s18
          %s291 = smul.addr %s290, 4
          %s292 = scalar_lea.vmem %s0, %s291
          // Predicated region
          $region49: #{network_with_input_encoding.1} parent=47 // pred_check
            _
          $region50: #{network_with_input_encoding.1} parent=47 // pred_check_branch
            %294 = sbr.rel (0) target = $region52
          $region51: #{network_with_input_encoding.1} parent=47 // pred_region
            // Predicated region
            $region53: #{network_with_input_encoding.1} parent=51 // pred_check
              _
            $region54: #{network_with_input_encoding.1} parent=51 // pred_check_branch
              %296 = sbr.rel (0) target = $region56
            $region55: #{network_with_input_encoding.1} parent=51 // pred_region
              // Predicated region
              $region68: #{network_with_input_encoding.1} parent=55 // pred_check
                _
              $region69: #{network_with_input_encoding.1} parent=55 // pred_check_branch
                %322 = sbr.rel (0) target = $region71
              $region70: #{network_with_input_encoding.1} parent=55 // pred_region
                loop: start=0, step=1, limit=1
                $region72: #{network_with_input_encoding.1} parent=70 // loop_pre_header
                  _
                $region73: #{network_with_input_encoding.1} parent=70 // loop_header
                  %s324 = sphi 0, %s328
                  %p325 = scmp.ge.s32.totalorder %s324, 1
                  %s329 = sphi %s292, %s292
                  %s330 = sphi %s289, %s289
                $region74: #{network_with_input_encoding.1} parent=70 // loop_header_branch
                  %327 = sbr.rel (%p325) target = $region78
                $region75: #{network_with_input_encoding.1} parent=70 // loop_body
                  %v331 = vld [vmem:[%s329] sm:$0xff]
                  %332 = vst [vmem:[%s330] sm:$0xff] %v331
                  %v333 = vld [vmem:[%s329 + $0x20] sm:$0xff]
                  %334 = vst [vmem:[%s330 + $0x8] sm:$0xff] %v333
                  %v335 = vld [vmem:[%s329 + $0x40] sm:$0xff]
                  %336 = vst [vmem:[%s330 + $0x10] sm:$0xff] %v335
                  %v337 = vld [vmem:[%s329 + $0x60] sm:$0xff]
                  %338 = vst [vmem:[%s330 + $0x18] sm:$0xff] %v337
                  %v339 = vld [vmem:[%s329 + $0x80] sm:$0xff]
                  %340 = vst [vmem:[%s330 + $0x20] sm:$0xff] %v339
                  %v341 = vld [vmem:[%s329 + $0xa0] sm:$0xff]
                  %342 = vst [vmem:[%s330 + $0x28] sm:$0xff] %v341
                $region76: #{network_with_input_encoding.1} parent=70 // loop_footer
                  %s328 = sadd.s32 1, %s324
                $region77: #{network_with_input_encoding.1} parent=70 // loop_footer_branch
                  %323 = sbr.rel target = $region73
                $region78: #{network_with_input_encoding.1} parent=70 // loop_exit
                  _
              $region71: #{network_with_input_encoding.1} parent=55 // pred_fallthru
                _
              // Predicated region
              $region79: #{network_with_input_encoding.1} parent=55 // pred_check
                _
              $region80: #{network_with_input_encoding.1} parent=55 // pred_check_branch
                %344 = sbr.rel target = $region82
              $region81: #{network_with_input_encoding.1} parent=55 // pred_region
                _
              $region82: #{network_with_input_encoding.1} parent=55 // pred_fallthru
                _
            $region56: #{network_with_input_encoding.1} parent=51 // pred_fallthru
              _
            // Predicated region
            $region57: #{network_with_input_encoding.1} parent=51 // pred_check
              _
            $region58: #{network_with_input_encoding.1} parent=51 // pred_check_branch
              %298 = sbr.rel target = $region60
            $region59: #{network_with_input_encoding.1} parent=51 // pred_region
              %s300 = ssub.s32 256, 1
              loop: start=0, step=1, limit=1
              $region61: #{network_with_input_encoding.1} parent=59 // loop_pre_header
                _
              $region62: #{network_with_input_encoding.1} parent=59 // loop_header
                %s302 = sphi 0, %s306
                %p303 = scmp.ge.s32.totalorder %s302, 1
                %s307 = sphi %s292, %s292
                %s308 = sphi %s289, %s289
              $region63: #{network_with_input_encoding.1} parent=59 // loop_header_branch
                %305 = sbr.rel (%p303) target = $region67
              $region64: #{network_with_input_encoding.1} parent=59 // loop_body
                %v309 = vld [vmem:[%s307] sm:%s300]
                %310 = vst [vmem:[%s308] sm:%s300] %v309
                %v311 = vld [vmem:[%s307 + $0x20] sm:%s300]
                %312 = vst [vmem:[%s308 + $0x8] sm:%s300] %v311
                %v313 = vld [vmem:[%s307 + $0x40] sm:%s300]
                %314 = vst [vmem:[%s308 + $0x10] sm:%s300] %v313
                %v315 = vld [vmem:[%s307 + $0x60] sm:%s300]
                %316 = vst [vmem:[%s308 + $0x18] sm:%s300] %v315
                %v317 = vld [vmem:[%s307 + $0x80] sm:%s300]
                %318 = vst [vmem:[%s308 + $0x20] sm:%s300] %v317
                %v319 = vld [vmem:[%s307 + $0xa0] sm:%s300]
                %320 = vst [vmem:[%s308 + $0x28] sm:%s300] %v319
              $region65: #{network_with_input_encoding.1} parent=59 // loop_footer
                %s306 = sadd.s32 1, %s302
              $region66: #{network_with_input_encoding.1} parent=59 // loop_footer_branch
                %301 = sbr.rel target = $region62
              $region67: #{network_with_input_encoding.1} parent=59 // loop_exit
                _
            $region60: #{network_with_input_encoding.1} parent=51 // pred_fallthru
              _
          $region52: #{network_with_input_encoding.1} parent=47 // pred_fallthru
            _
          %345 = vnop
        $region48: #{network_with_input_encoding.1} parent=43 // pred_fallthru
          _
        // Predicated region
        $region83: #{network_with_input_encoding.1} parent=43 // pred_check
          %p346 = pneg %p169
        $region84: #{network_with_input_encoding.1} parent=43 // pred_check_branch
          %348 = sbr.rel (%p346) target = $region86
        $region85: #{network_with_input_encoding.1} parent=43 // pred_region
          %s349 = sand.u32 %s159, 1
          %s350 = sand.u32 %s159, 1
          %s351 = smul.addr %s350, 256
          %s352 = scalar_lea.vmem [#allocation3], %s351
          %s353 = smul.u32 2, %s18
          %s354 = smul.addr %s353, 4
          %s355 = scalar_lea.vmem %s6, %s354
          // Predicated region
          $region87: #{network_with_input_encoding.1} parent=85 // pred_check
            _
          $region88: #{network_with_input_encoding.1} parent=85 // pred_check_branch
            %357 = sbr.rel (0) target = $region90
          $region89: #{network_with_input_encoding.1} parent=85 // pred_region
            // Predicated region
            $region91: #{network_with_input_encoding.1} parent=89 // pred_check
              _
            $region92: #{network_with_input_encoding.1} parent=89 // pred_check_branch
              %359 = sbr.rel (0) target = $region94
            $region93: #{network_with_input_encoding.1} parent=89 // pred_region
              // Predicated region
              $region106: #{network_with_input_encoding.1} parent=93 // pred_check
                _
              $region107: #{network_with_input_encoding.1} parent=93 // pred_check_branch
                %437 = sbr.rel (0) target = $region109
              $region108: #{network_with_input_encoding.1} parent=93 // pred_region
                loop: start=0, step=1, limit=1
                $region110: #{network_with_input_encoding.1} parent=108 // loop_pre_header
                  _
                $region111: #{network_with_input_encoding.1} parent=108 // loop_header
                  %s439 = sphi 0, %s443
                  %p440 = scmp.ge.s32.totalorder %s439, 1
                  %s444 = sphi %s355, %s355
                  %s445 = sphi %s352, %s352
                $region112: #{network_with_input_encoding.1} parent=108 // loop_header_branch
                  %442 = sbr.rel (%p440) target = $region116
                $region113: #{network_with_input_encoding.1} parent=108 // loop_body
                  %v446 = vld [vmem:[%s444] sm:$0xff]
                  %447 = vst [vmem:[%s445] sm:$0xff] %v446
                  %v448 = vld [vmem:[%s444 + $0x20] sm:$0xff]
                  %449 = vst [vmem:[%s445 + $0x8] sm:$0xff] %v448
                  %v450 = vld [vmem:[%s444 + $0x40] sm:$0xff]
                  %451 = vst [vmem:[%s445 + $0x10] sm:$0xff] %v450
                  %v452 = vld [vmem:[%s444 + $0x60] sm:$0xff]
                  %453 = vst [vmem:[%s445 + $0x18] sm:$0xff] %v452
                  %v454 = vld [vmem:[%s444 + $0x80] sm:$0xff]
                  %455 = vst [vmem:[%s445 + $0x20] sm:$0xff] %v454
                  %v456 = vld [vmem:[%s444 + $0xa0] sm:$0xff]
                  %457 = vst [vmem:[%s445 + $0x28] sm:$0xff] %v456
                  %v458 = vld [vmem:[%s444 + $0xc0] sm:$0xff]
                  %459 = vst [vmem:[%s445 + $0x30] sm:$0xff] %v458
                  %v460 = vld [vmem:[%s444 + $0xe0] sm:$0xff]
                  %461 = vst [vmem:[%s445 + $0x38] sm:$0xff] %v460
                  %v462 = vld [vmem:[%s444 + $0x100] sm:$0xff]
                  %463 = vst [vmem:[%s445 + $0x40] sm:$0xff] %v462
                  %v464 = vld [vmem:[%s444 + $0x120] sm:$0xff]
                  %465 = vst [vmem:[%s445 + $0x48] sm:$0xff] %v464
                  %v466 = vld [vmem:[%s444 + $0x140] sm:$0xff]
                  %467 = vst [vmem:[%s445 + $0x50] sm:$0xff] %v466
                  %v468 = vld [vmem:[%s444 + $0x160] sm:$0xff]
                  %469 = vst [vmem:[%s445 + $0x58] sm:$0xff] %v468
                  %v470 = vld [vmem:[%s444 + $0x180] sm:$0xff]
                  %471 = vst [vmem:[%s445 + $0x60] sm:$0xff] %v470
                  %v472 = vld [vmem:[%s444 + $0x1a0] sm:$0xff]
                  %473 = vst [vmem:[%s445 + $0x68] sm:$0xff] %v472
                  %v474 = vld [vmem:[%s444 + $0x1c0] sm:$0xff]
                  %475 = vst [vmem:[%s445 + $0x70] sm:$0xff] %v474
                  %v476 = vld [vmem:[%s444 + $0x1e0] sm:$0xff]
                  %477 = vst [vmem:[%s445 + $0x78] sm:$0xff] %v476
                  %v478 = vld [vmem:[%s444 + $0x200] sm:$0xff]
                  %479 = vst [vmem:[%s445 + $0x80] sm:$0xff] %v478
                  %v480 = vld [vmem:[%s444 + $0x220] sm:$0xff]
                  %481 = vst [vmem:[%s445 + $0x88] sm:$0xff] %v480
                  %v482 = vld [vmem:[%s444 + $0x240] sm:$0xff]
                  %483 = vst [vmem:[%s445 + $0x90] sm:$0xff] %v482
                  %v484 = vld [vmem:[%s444 + $0x260] sm:$0xff]
                  %485 = vst [vmem:[%s445 + $0x98] sm:$0xff] %v484
                  %v486 = vld [vmem:[%s444 + $0x280] sm:$0xff]
                  %487 = vst [vmem:[%s445 + $0xa0] sm:$0xff] %v486
                  %v488 = vld [vmem:[%s444 + $0x2a0] sm:$0xff]
                  %489 = vst [vmem:[%s445 + $0xa8] sm:$0xff] %v488
                  %v490 = vld [vmem:[%s444 + $0x2c0] sm:$0xff]
                  %491 = vst [vmem:[%s445 + $0xb0] sm:$0xff] %v490
                  %v492 = vld [vmem:[%s444 + $0x2e0] sm:$0xff]
                  %493 = vst [vmem:[%s445 + $0xb8] sm:$0xff] %v492
                  %v494 = vld [vmem:[%s444 + $0x300] sm:$0xff]
                  %495 = vst [vmem:[%s445 + $0xc0] sm:$0xff] %v494
                  %v496 = vld [vmem:[%s444 + $0x320] sm:$0xff]
                  %497 = vst [vmem:[%s445 + $0xc8] sm:$0xff] %v496
                  %v498 = vld [vmem:[%s444 + $0x340] sm:$0xff]
                  %499 = vst [vmem:[%s445 + $0xd0] sm:$0xff] %v498
                  %v500 = vld [vmem:[%s444 + $0x360] sm:$0xff]
                  %501 = vst [vmem:[%s445 + $0xd8] sm:$0xff] %v500
                  %v502 = vld [vmem:[%s444 + $0x380] sm:$0xff]
                  %503 = vst [vmem:[%s445 + $0xe0] sm:$0xff] %v502
                  %v504 = vld [vmem:[%s444 + $0x3a0] sm:$0xff]
                  %505 = vst [vmem:[%s445 + $0xe8] sm:$0xff] %v504
                  %v506 = vld [vmem:[%s444 + $0x3c0] sm:$0xff]
                  %507 = vst [vmem:[%s445 + $0xf0] sm:$0xff] %v506
                  %v508 = vld [vmem:[%s444 + $0x3e0] sm:$0xff]
                  %509 = vst [vmem:[%s445 + $0xf8] sm:$0xff] %v508
                $region114: #{network_with_input_encoding.1} parent=108 // loop_footer
                  %s443 = sadd.s32 1, %s439
                $region115: #{network_with_input_encoding.1} parent=108 // loop_footer_branch
                  %438 = sbr.rel target = $region111
                $region116: #{network_with_input_encoding.1} parent=108 // loop_exit
                  _
              $region109: #{network_with_input_encoding.1} parent=93 // pred_fallthru
                _
              // Predicated region
              $region117: #{network_with_input_encoding.1} parent=93 // pred_check
                _
              $region118: #{network_with_input_encoding.1} parent=93 // pred_check_branch
                %511 = sbr.rel target = $region120
              $region119: #{network_with_input_encoding.1} parent=93 // pred_region
                _
              $region120: #{network_with_input_encoding.1} parent=93 // pred_fallthru
                _
            $region94: #{network_with_input_encoding.1} parent=89 // pred_fallthru
              _
            // Predicated region
            $region95: #{network_with_input_encoding.1} parent=89 // pred_check
              _
            $region96: #{network_with_input_encoding.1} parent=89 // pred_check_branch
              %361 = sbr.rel target = $region98
            $region97: #{network_with_input_encoding.1} parent=89 // pred_region
              %s363 = ssub.s32 256, 1
              loop: start=0, step=1, limit=1
              $region99: #{network_with_input_encoding.1} parent=97 // loop_pre_header
                _
              $region100: #{network_with_input_encoding.1} parent=97 // loop_header
                %s365 = sphi 0, %s369
                %p366 = scmp.ge.s32.totalorder %s365, 1
                %s370 = sphi %s355, %s355
                %s371 = sphi %s352, %s352
              $region101: #{network_with_input_encoding.1} parent=97 // loop_header_branch
                %368 = sbr.rel (%p366) target = $region105
              $region102: #{network_with_input_encoding.1} parent=97 // loop_body
                %v372 = vld [vmem:[%s370] sm:%s363]
                %373 = vst [vmem:[%s371] sm:%s363] %v372
                %v374 = vld [vmem:[%s370 + $0x20] sm:%s363]
                %375 = vst [vmem:[%s371 + $0x8] sm:%s363] %v374
                %v376 = vld [vmem:[%s370 + $0x40] sm:%s363]
                %377 = vst [vmem:[%s371 + $0x10] sm:%s363] %v376
                %v378 = vld [vmem:[%s370 + $0x60] sm:%s363]
                %379 = vst [vmem:[%s371 + $0x18] sm:%s363] %v378
                %v380 = vld [vmem:[%s370 + $0x80] sm:%s363]
                %381 = vst [vmem:[%s371 + $0x20] sm:%s363] %v380
                %v382 = vld [vmem:[%s370 + $0xa0] sm:%s363]
                %383 = vst [vmem:[%s371 + $0x28] sm:%s363] %v382
                %v384 = vld [vmem:[%s370 + $0xc0] sm:%s363]
                %385 = vst [vmem:[%s371 + $0x30] sm:%s363] %v384
                %v386 = vld [vmem:[%s370 + $0xe0] sm:%s363]
                %387 = vst [vmem:[%s371 + $0x38] sm:%s363] %v386
                %v388 = vld [vmem:[%s370 + $0x100] sm:%s363]
                %389 = vst [vmem:[%s371 + $0x40] sm:%s363] %v388
                %v390 = vld [vmem:[%s370 + $0x120] sm:%s363]
                %391 = vst [vmem:[%s371 + $0x48] sm:%s363] %v390
                %v392 = vld [vmem:[%s370 + $0x140] sm:%s363]
                %393 = vst [vmem:[%s371 + $0x50] sm:%s363] %v392
                %v394 = vld [vmem:[%s370 + $0x160] sm:%s363]
                %395 = vst [vmem:[%s371 + $0x58] sm:%s363] %v394
                %v396 = vld [vmem:[%s370 + $0x180] sm:%s363]
                %397 = vst [vmem:[%s371 + $0x60] sm:%s363] %v396
                %v398 = vld [vmem:[%s370 + $0x1a0] sm:%s363]
                %399 = vst [vmem:[%s371 + $0x68] sm:%s363] %v398
                %v400 = vld [vmem:[%s370 + $0x1c0] sm:%s363]
                %401 = vst [vmem:[%s371 + $0x70] sm:%s363] %v400
                %v402 = vld [vmem:[%s370 + $0x1e0] sm:%s363]
                %403 = vst [vmem:[%s371 + $0x78] sm:%s363] %v402
                %v404 = vld [vmem:[%s370 + $0x200] sm:%s363]
                %405 = vst [vmem:[%s371 + $0x80] sm:%s363] %v404
                %v406 = vld [vmem:[%s370 + $0x220] sm:%s363]
                %407 = vst [vmem:[%s371 + $0x88] sm:%s363] %v406
                %v408 = vld [vmem:[%s370 + $0x240] sm:%s363]
                %409 = vst [vmem:[%s371 + $0x90] sm:%s363] %v408
                %v410 = vld [vmem:[%s370 + $0x260] sm:%s363]
                %411 = vst [vmem:[%s371 + $0x98] sm:%s363] %v410
                %v412 = vld [vmem:[%s370 + $0x280] sm:%s363]
                %413 = vst [vmem:[%s371 + $0xa0] sm:%s363] %v412
                %v414 = vld [vmem:[%s370 + $0x2a0] sm:%s363]
                %415 = vst [vmem:[%s371 + $0xa8] sm:%s363] %v414
                %v416 = vld [vmem:[%s370 + $0x2c0] sm:%s363]
                %417 = vst [vmem:[%s371 + $0xb0] sm:%s363] %v416
                %v418 = vld [vmem:[%s370 + $0x2e0] sm:%s363]
                %419 = vst [vmem:[%s371 + $0xb8] sm:%s363] %v418
                %v420 = vld [vmem:[%s370 + $0x300] sm:%s363]
                %421 = vst [vmem:[%s371 + $0xc0] sm:%s363] %v420
                %v422 = vld [vmem:[%s370 + $0x320] sm:%s363]
                %423 = vst [vmem:[%s371 + $0xc8] sm:%s363] %v422
                %v424 = vld [vmem:[%s370 + $0x340] sm:%s363]
                %425 = vst [vmem:[%s371 + $0xd0] sm:%s363] %v424
                %v426 = vld [vmem:[%s370 + $0x360] sm:%s363]
                %427 = vst [vmem:[%s371 + $0xd8] sm:%s363] %v426
                %v428 = vld [vmem:[%s370 + $0x380] sm:%s363]
                %429 = vst [vmem:[%s371 + $0xe0] sm:%s363] %v428
                %v430 = vld [vmem:[%s370 + $0x3a0] sm:%s363]
                %431 = vst [vmem:[%s371 + $0xe8] sm:%s363] %v430
                %v432 = vld [vmem:[%s370 + $0x3c0] sm:%s363]
                %433 = vst [vmem:[%s371 + $0xf0] sm:%s363] %v432
                %v434 = vld [vmem:[%s370 + $0x3e0] sm:%s363]
                %435 = vst [vmem:[%s371 + $0xf8] sm:%s363] %v434
              $region103: #{network_with_input_encoding.1} parent=97 // loop_footer
                %s369 = sadd.s32 1, %s365
              $region104: #{network_with_input_encoding.1} parent=97 // loop_footer_branch
                %364 = sbr.rel target = $region100
              $region105: #{network_with_input_encoding.1} parent=97 // loop_exit
                _
            $region98: #{network_with_input_encoding.1} parent=89 // pred_fallthru
              _
          $region90: #{network_with_input_encoding.1} parent=85 // pred_fallthru
            _
          %512 = vnop
        $region86: #{network_with_input_encoding.1} parent=43 // pred_fallthru
          _
      $region44: #{network_with_input_encoding.1} parent=5 // pred_fallthru
        _
      %p513 = scmp.le.s32.totalorder 1, %s18
      %p514 = scmp.lt.s32.totalorder %s18, 5
      %p515 = pnand %p513, %p514
      %p516 = pneg %p515
      // Predicated region
      $region121: #{network_with_input_encoding.1} parent=5 // pred_check
        _
      $region122: #{network_with_input_encoding.1} parent=5 // pred_check_branch
        %518 = sbr.rel (%p515) target = $region124
      $region123: #{network_with_input_encoding.1} parent=5 // pred_region
        %s519 = ssub.s32 %s18, 1
        %s520 = sand.u32 %s31, 1
        %s521 = sand.u32 %s31, 1
        %s522 = smul.addr %s521, 48
        %s523 = scalar_lea.vmem [#allocation2], %s522
        // Predicated region
        $region125: #{network_with_input_encoding.1} parent=123 // pred_check
          %p524 = pneg %p44
        $region126: #{network_with_input_encoding.1} parent=123 // pred_check_branch
          %526 = sbr.rel (%p524) target = $region128
        $region127: #{network_with_input_encoding.1} parent=123 // pred_region
          _
        $region128: #{network_with_input_encoding.1} parent=123 // pred_fallthru
          _
        %s527 = sand.u32 %s162, 1
        %s528 = sand.u32 %s162, 1
        %s529 = smul.addr %s528, 256
        %s530 = scalar_lea.vmem [#allocation3], %s529
        // Predicated region
        $region129: #{network_with_input_encoding.1} parent=123 // pred_check
          %p531 = pneg %p175
        $region130: #{network_with_input_encoding.1} parent=123 // pred_check_branch
          %533 = sbr.rel (%p531) target = $region132
        $region131: #{network_with_input_encoding.1} parent=123 // pred_region
          _
        $region132: #{network_with_input_encoding.1} parent=123 // pred_fallthru
          _
        %s534 = sand.u32 %s31, 1
        %s535 = sand.u32 %s31, 1
        %s536 = smul.addr %s535, 48
        %s537 = scalar_lea.vmem [#allocation2], %s536
        %p538 = pneg %p44
        %p539 = pneg %p41
        %p540 = pneg %p65
        %p541 = pneg %p62
        %p542 = pneg %p86
        %p543 = pneg %p83
        %p544 = pneg %p107
        %p545 = pneg %p104
        %p546 = pneg %p128
        %p547 = pneg %p125
        %p548 = pneg %p149
        %p549 = pneg %p146
        %s550 = sand.u32 %s162, 1
        %s551 = sand.u32 %s162, 1
        %s552 = smul.addr %s551, 256
        %s553 = scalar_lea.vmem [#allocation3], %s552
        %p554 = pneg %p175
        %p555 = pneg %p172
        %p556 = pneg %p196
        %p557 = pneg %p193
        %p558 = pneg %p217
        %p559 = pneg %p214
        %p560 = pneg %p243
        %p561 = pneg %p240
        %s562 = sand.u32 %s230, 1
        %s563 = scalar_lea.sflag [#allocation5], %s562
        %s564 = sand.u32 %s230, 1
        %s565 = smul.addr %s564, 32
        %s566 = scalar_lea.vmem [#allocation4], %s565
        %s567 = smul.u32 2, %s23
        %s568 = smul.u32 2, %s23
        %s569 = smul.u32 2, %s23
        %v571 = vld [vmem:[%s7] sm:$0xff]
        %v572 = vld [vmem:[%s7 + $0x8] sm:$0xff]
        %v573 = vld [vmem:[%s7 + $0x10] sm:$0xff]
        %v574 = vld [vmem:[%s7 + $0x18] sm:$0xff]
        %v575 = vld [vmem:[%s8] sm:$0xff]
        %v576 = vld [vmem:[%s1] sm:$0xf]
        %v577 = vld [vmem:[%s1 + $0x4] sm:$0xf]
        %v578 = vld [vmem:[%s1 + $0x8] sm:$0xf]
        %v579 = vld [vmem:[%s1 + $0xc] sm:$0xf]
        %v580 = vld [vmem:[%s523] sm:$0xff]
        %v581 = vld [vmem:[%s523 + $0x8] sm:$0xff]
        %v582 = vld [vmem:[%s523 + $0x10] sm:$0xff]
        %v583 = vld [vmem:[%s523 + $0x18] sm:$0xff]
        %v584 = vld [vmem:[%s523 + $0x20] sm:$0xff]
        %v585 = vld [vmem:[%s523 + $0x28] sm:$0xff]
        %v586 = vld [vmem:[%s3] sm:$0xff]
        %v587 = vld [vmem:[%s3 + $0x8] sm:$0xff]
        %v588 = vld [vmem:[%s3 + $0x10] sm:$0xff]
        %v589 = vld [vmem:[%s3 + $0x18] sm:$0xff]
        %591 = vset.pattern.permute.xlu0 0
        %592 = vperm.xlu0 %591, %v586
        %v593 = vpop.permute.xlu0 %592
        %596 = vset.pattern.permute.xlu0 0
        %597 = vperm.xlu0 %596, %v587
        %v598 = vpop.permute.xlu0 %597
        %601 = vset.pattern.permute.xlu0 0
        %602 = vperm.xlu0 %601, %v588
        %v603 = vpop.permute.xlu0 %602
        %606 = vset.pattern.permute.xlu0 0
        %607 = vperm.xlu0 %606, %v589
        %v608 = vpop.permute.xlu0 %607
        %v614 = vunpack.c.l.b16 %v576
        %v615 = vunpack.c.l.b16 %v577
        %v616 = vunpack.c.l.b16 %v578
        %v617 = vunpack.c.l.b16 %v579
        %v618 = vpack.c.b16 %v615, %v614
        %v619 = vpack.c.b16 %v617, %v616
        %v626 = vunpack.c.l.b16 %v580
        %v627 = vunpack.c.h.b16 %v580
        %v628 = vunpack.c.l.b16 %v581
        %v629 = vunpack.c.h.b16 %v581
        %v630 = vunpack.c.l.b16 %v582
        %v631 = vunpack.c.h.b16 %v582
        %v632 = vunpack.c.l.b16 %v583
        %v633 = vunpack.c.h.b16 %v583
        %v634 = vunpack.c.l.b16 %v584
        %v635 = vunpack.c.h.b16 %v584
        %v636 = vunpack.c.l.b16 %v585
        %v637 = vunpack.c.h.b16 %v585
        %v638 = vpack.c.b16 %v628, %v626
        %v639 = vpack.c.b16 %v629, %v627
        %v640 = vpack.c.b16 %v632, %v630
        %v641 = vpack.c.b16 %v633, %v631
        %v642 = vpack.c.b16 %v636, %v634
        %v643 = vpack.c.b16 %v637, %v635
        %vm650 = vcmask 392192
        %v652 = vsel %vm650, %v618, 0
        %v655 = vsel %vm650, %v619, 0
        %657 = vmatprep.subr.bf16.mxu0 0
        %658 = vmatpush1.bf16.msra.mxu0 0
        %659 = vmatprep.subr.bf16.mxu0 0
        %660 = vmatpush1.bf16.msra.mxu0 0
        %661 = vmatprep.subr.bf16.mxu0 0
        %662 = vmatpush1.bf16.msra.mxu0 0
        %663 = vmatprep.subr.bf16.mxu0 0
        %664 = vmatpush1.bf16.msra.mxu0 0
        %665 = vmatprep.subr.bf16.mxu0 0
        %666 = vmatpush1.bf16.msra.mxu0 0
        %667 = vmatprep.subr.bf16.mxu0 %v643
        %668 = vmatpush1.bf16.msra.mxu0 %v642
        %669 = vmatprep.subr.bf16.mxu0 %v641
        %670 = vmatpush1.bf16.msra.mxu0 %v640
        %671 = vmatprep.subr.bf16.mxu0 %v639
        %672 = vmatpush1.bf16.msra.mxu0 %v638
        %673 = vmatprep.subr.bf16.mxu0 0
        %674 = vmatpush2.bf16.msra.mxu0 0
        %675 = vmatprep.subr.bf16.mxu0 0
        %676 = vmatpush2.bf16.msra.mxu0 0
        %677 = vmatprep.subr.bf16.mxu0 0
        %678 = vmatpush2.bf16.msra.mxu0 0
        %679 = vmatprep.subr.bf16.mxu0 0
        %680 = vmatpush2.bf16.msra.mxu0 0
        %681 = vmatprep.subr.bf16.mxu0 0
        %682 = vmatpush2.bf16.msra.mxu0 0
        %683 = vmatprep.subr.bf16.mxu0 0
        %684 = vmatpush2.bf16.msra.mxu0 0
        %685 = vmatprep.subr.bf16.mxu0 0
        %686 = vmatpush2.bf16.msra.mxu0 0
        %687 = vmatprep.subr.bf16.mxu0 0
        %688 = vmatpush2.bf16.msra.mxu0 0
        %689 = vmatprep.mubr.bf16.mxu0 0
        %690 = vmatmul.mubr.bf16.gmra.mxu0 %v652
        %v691 = vpop.f32.mrf.mxu0
        %v692 = vadd.f32 %v593, %v691
        %v693 = vpop.f32.mrf.mxu0
        %v694 = vadd.f32 %v593, %v693
        %v695 = vpop.f32.mrf.mxu0
        %v696 = vadd.f32 %v598, %v695
        %v697 = vpop.f32.mrf.mxu0
        %v698 = vadd.f32 %v598, %v697
        %699 = vmatprep.mubr.bf16.mxu0 0
        %700 = vmatmul.mubr.bf16.gmra.mxu0 %v655
        %v701 = vpop.f32.mrf.mxu0
        %v702 = vadd.f32 %v603, %v701
        %v703 = vpop.f32.mrf.mxu0
        %v704 = vadd.f32 %v603, %v703
        %v705 = vpop.f32.mrf.mxu0
        %v706 = vadd.f32 %v608, %v705
        %v707 = vpop.f32.mrf.mxu0
        %v708 = vadd.f32 %v608, %v707
        %709 = vdwg.mxu0
        %vm710 = vcmask 261120
        %v712 = vsel %vm710, %v575, 0
        %714 = vmatprep.subr.mxu0 0.0
        %715 = vmatpush1.msra.mxu0 0.0
        %716 = vmatprep.subr.mxu0 0.0
        %717 = vmatpush1.msra.mxu0 0.0
        %718 = vmatprep.subr.mxu0 0.0
        %719 = vmatpush1.msra.mxu0 0.0
        %720 = vmatprep.subr.mxu0 0.0
        %721 = vmatpush1.msra.mxu0 0.0
        %722 = vmatprep.subr.mxu0 0.0
        %723 = vmatpush1.msra.mxu0 0.0
        %724 = vmatprep.subr.mxu0 0.0
        %725 = vmatpush1.msra.mxu0 0.0
        %726 = vmatprep.subr.mxu0 0.0
        %727 = vmatpush1.msra.mxu0 0.0
        %728 = vmatprep.subr.mxu0 0.0
        %729 = vmatpush1.msra.mxu0 0.0
        %730 = vmatprep.subr.mxu0 0.0
        %731 = vmatpush1.msra.mxu0 0.0
        %732 = vmatprep.subr.mxu0 0.0
        %733 = vmatpush1.msra.mxu0 0.0
        %734 = vmatprep.subr.mxu0 0.0
        %735 = vmatpush1.msra.mxu0 0.0
        %736 = vmatprep.subr.mxu0 0.0
        %737 = vmatpush1.msra.mxu0 0.0
        %738 = vmatprep.subr.mxu0 %v708
        %739 = vmatpush1.msra.mxu0 %v706
        %740 = vmatprep.subr.mxu0 %v704
        %741 = vmatpush1.msra.mxu0 %v702
        %742 = vmatprep.subr.mxu0 %v698
        %743 = vmatpush1.msra.mxu0 %v696
        %744 = vmatprep.subr.mxu0 %v694
        %745 = vmatpush1.msra.mxu0 %v692
        %746 = vmatprep.subr.mxu0 0.0
        %747 = vmatpush2.msra.mxu0 0.0
        %748 = vmatprep.subr.mxu0 0.0
        %749 = vmatpush2.msra.mxu0 0.0
        %750 = vmatprep.subr.mxu0 0.0
        %751 = vmatpush2.msra.mxu0 0.0
        %752 = vmatprep.subr.mxu0 0.0
        %753 = vmatpush2.msra.mxu0 0.0
        %754 = vmatprep.subr.mxu0 0.0
        %755 = vmatpush2.msra.mxu0 0.0
        %756 = vmatprep.subr.mxu0 0.0
        %757 = vmatpush2.msra.mxu0 0.0
        %758 = vmatprep.subr.mxu0 0.0
        %759 = vmatpush2.msra.mxu0 0.0
        %760 = vmatprep.subr.mxu0 0.0
        %761 = vmatpush2.msra.mxu0 0.0
        %762 = vmatprep.subr.mxu0 0.0
        %763 = vmatpush2.msra.mxu0 0.0
        %764 = vmatprep.subr.mxu0 0.0
        %765 = vmatpush2.msra.mxu0 0.0
        %766 = vmatprep.subr.mxu0 0.0
        %767 = vmatpush2.msra.mxu0 0.0
        %768 = vmatprep.subr.mxu0 0.0
        %769 = vmatpush2.msra.mxu0 0.0
        %770 = vmatprep.subr.mxu0 0.0
        %771 = vmatpush2.msra.mxu0 0.0
        %772 = vmatprep.subr.mxu0 0.0
        %773 = vmatpush2.msra.mxu0 0.0
        %774 = vmatprep.subr.mxu0 0.0
        %775 = vmatpush2.msra.mxu0 0.0
        %776 = vmatprep.subr.mxu0 0.0
        %777 = vmatpush2.msra.mxu0 0.0
        %778 = vmatprep.mubr.f32.mxu0 0.0
        %779 = vmatmul.mubr.f32.gmra.mxu0 %v712
        %v780 = vpop.f32.mrf.mxu0
        %v781 = vadd.f32 0.0, %v780
        %v782 = vpop.f32.mrf.mxu0
        %v783 = vadd.f32 0.0, %v782
        %784 = vdwg.mxu0
        %vm785 = vcmask 64512
        %v787 = vsel %vm785, %v571, 0
        %v790 = vsel %vm785, %v572, 0
        %v793 = vsel %vm785, %v573, 0
        %v796 = vsel %vm785, %v574, 0
        %798 = vmatprep.subr.mxu0 0.0
        %799 = vmatpush1.msra.mxu0 0.0
        %800 = vmatprep.subr.mxu0 0.0
        %801 = vmatpush1.msra.mxu0 0.0
        %802 = vmatprep.subr.mxu0 0.0
        %803 = vmatpush1.msra.mxu0 0.0
        %804 = vmatprep.subr.mxu0 0.0
        %805 = vmatpush1.msra.mxu0 0.0
        %806 = vmatprep.subr.mxu0 0.0
        %807 = vmatpush1.msra.mxu0 0.0
        %808 = vmatprep.subr.mxu0 0.0
        %809 = vmatpush1.msra.mxu0 0.0
        %810 = vmatprep.subr.mxu0 0.0
        %811 = vmatpush1.msra.mxu0 0.0
        %812 = vmatprep.subr.mxu0 0.0
        %813 = vmatpush1.msra.mxu0 0.0
        %814 = vmatprep.subr.mxu0 0.0
        %815 = vmatpush1.msra.mxu0 0.0
        %816 = vmatprep.subr.mxu0 0.0
        %817 = vmatpush1.msra.mxu0 0.0
        %818 = vmatprep.subr.mxu0 0.0
        %819 = vmatpush1.msra.mxu0 0.0
        %820 = vmatprep.subr.mxu0 0.0
        %821 = vmatpush1.msra.mxu0 0.0
        %822 = vmatprep.subr.mxu0 0.0
        %823 = vmatpush1.msra.mxu0 0.0
        %824 = vmatprep.subr.mxu0 0.0
        %825 = vmatpush1.msra.mxu0 0.0
        %826 = vmatprep.subr.mxu0 0.0
        %827 = vmatpush1.msra.mxu0 0.0
        %828 = vmatprep.subr.mxu0 %v783
        %829 = vmatpush1.msra.mxu0 %v781
        %830 = vmatprep.subr.mxu0 0.0
        %831 = vmatpush2.msra.mxu0 0.0
        %832 = vmatprep.subr.mxu0 0.0
        %833 = vmatpush2.msra.mxu0 0.0
        %834 = vmatprep.subr.mxu0 0.0
        %835 = vmatpush2.msra.mxu0 0.0
        %836 = vmatprep.subr.mxu0 0.0
        %837 = vmatpush2.msra.mxu0 0.0
        %838 = vmatprep.subr.mxu0 0.0
        %839 = vmatpush2.msra.mxu0 0.0
        %840 = vmatprep.subr.mxu0 0.0
        %841 = vmatpush2.msra.mxu0 0.0
        %842 = vmatprep.subr.mxu0 0.0
        %843 = vmatpush2.msra.mxu0 0.0
        %844 = vmatprep.subr.mxu0 0.0
        %845 = vmatpush2.msra.mxu0 0.0
        %846 = vmatprep.subr.mxu0 0.0
        %847 = vmatpush2.msra.mxu0 0.0
        %848 = vmatprep.subr.mxu0 0.0
        %849 = vmatpush2.msra.mxu0 0.0
        %850 = vmatprep.subr.mxu0 0.0
        %851 = vmatpush2.msra.mxu0 0.0
        %852 = vmatprep.subr.mxu0 0.0
        %853 = vmatpush2.msra.mxu0 0.0
        %854 = vmatprep.subr.mxu0 0.0
        %855 = vmatpush2.msra.mxu0 0.0
        %856 = vmatprep.subr.mxu0 0.0
        %857 = vmatpush2.msra.mxu0 0.0
        %858 = vmatprep.subr.mxu0 0.0
        %859 = vmatpush2.msra.mxu0 0.0
        %860 = vmatprep.subr.mxu0 0.0
        %861 = vmatpush2.msra.mxu0 0.0
        %862 = vmatprep.mubr.f32.mxu0 0.0
        %863 = vmatmul.mubr.f32.gmra.mxu0 %v787
        %v864 = vpop.f32.mrf.mxu0
        %v865 = vadd.f32 0.0, %v864
        %v866 = vpop.f32.mrf.mxu0
        %v867 = vadd.f32 0.0, %v866
        %868 = vmatprep.mubr.f32.mxu0 0.0
        %869 = vmatmul.mubr.f32.gmra.mxu0 %v790
        %v870 = vpop.f32.mrf.mxu0
        %v871 = vadd.f32 0.0, %v870
        %v872 = vpop.f32.mrf.mxu0
        %v873 = vadd.f32 0.0, %v872
        %874 = vmatprep.mubr.f32.mxu0 0.0
        %875 = vmatmul.mubr.f32.gmra.mxu0 %v793
        %v876 = vpop.f32.mrf.mxu0
        %v877 = vadd.f32 0.0, %v876
        %v878 = vpop.f32.mrf.mxu0
        %v879 = vadd.f32 0.0, %v878
        %880 = vmatprep.mubr.f32.mxu0 0.0
        %881 = vmatmul.mubr.f32.gmra.mxu0 %v796
        %v882 = vpop.f32.mrf.mxu0
        %v883 = vadd.f32 0.0, %v882
        %v884 = vpop.f32.mrf.mxu0
        %v885 = vadd.f32 0.0, %v884
        %886 = vdwg.mxu0
        %v887 = vsub.f32 %v692, %v865
        %v888 = vsub.f32 %v694, %v867
        %v889 = vsub.f32 %v696, %v871
        %v890 = vsub.f32 %v698, %v873
        %v891 = vsub.f32 %v702, %v877
        %v892 = vsub.f32 %v704, %v879
        %v893 = vsub.f32 %v706, %v883
        %v894 = vsub.f32 %v708, %v885
        %v895 = vmul.f32 %v887, %v887
        %v896 = vmul.f32 %v888, %v888
        %v897 = vmul.f32 %v889, %v889
        %v898 = vmul.f32 %v890, %v890
        %v899 = vmul.f32 %v891, %v891
        %v900 = vmul.f32 %v892, %v892
        %v901 = vmul.f32 %v893, %v893
        %v902 = vmul.f32 %v894, %v894
        %903 = vmatprep.subr.mxu0 0.0
        %904 = vmatpush1.msra.mxu0 0.0
        %905 = vmatprep.subr.mxu0 0.0
        %906 = vmatpush1.msra.mxu0 0.0
        %907 = vmatprep.subr.mxu0 0.0
        %908 = vmatpush1.msra.mxu0 0.0
        %909 = vmatprep.subr.mxu0 0.0
        %910 = vmatpush1.msra.mxu0 0.0
        %911 = vmatprep.subr.mxu0 0.0
        %912 = vmatpush1.msra.mxu0 0.0
        %913 = vmatprep.subr.mxu0 0.0
        %914 = vmatpush1.msra.mxu0 0.0
        %915 = vmatprep.subr.mxu0 0.0
        %916 = vmatpush1.msra.mxu0 0.0
        %917 = vmatprep.subr.mxu0 0.0
        %918 = vmatpush1.msra.mxu0 0.0
        %919 = vmatprep.subr.mxu0 0.0
        %920 = vmatpush1.msra.mxu0 0.0
        %921 = vmatprep.subr.mxu0 0.0
        %922 = vmatpush1.msra.mxu0 0.0
        %923 = vmatprep.subr.mxu0 0.0
        %924 = vmatpush1.msra.mxu0 0.0
        %925 = vmatprep.subr.mxu0 0.0
        %926 = vmatpush1.msra.mxu0 0.0
        %927 = vmatprep.subr.mxu0 %v902
        %928 = vmatpush1.msra.mxu0 %v901
        %929 = vmatprep.subr.mxu0 %v900
        %930 = vmatpush1.msra.mxu0 %v899
        %931 = vmatprep.subr.mxu0 %v898
        %932 = vmatpush1.msra.mxu0 %v897
        %933 = vmatprep.subr.mxu0 %v896
        %934 = vmatpush1.msra.mxu0 %v895
        %935 = vmatprep.subr.mxu0 0.0
        %936 = vmatpush2.msra.mxu0 0.0
        %937 = vmatprep.subr.mxu0 0.0
        %938 = vmatpush2.msra.mxu0 0.0
        %939 = vmatprep.subr.mxu0 0.0
        %940 = vmatpush2.msra.mxu0 0.0
        %941 = vmatprep.subr.mxu0 0.0
        %942 = vmatpush2.msra.mxu0 0.0
        %943 = vmatprep.subr.mxu0 0.0
        %944 = vmatpush2.msra.mxu0 0.0
        %945 = vmatprep.subr.mxu0 0.0
        %946 = vmatpush2.msra.mxu0 0.0
        %947 = vmatprep.subr.mxu0 0.0
        %948 = vmatpush2.msra.mxu0 0.0
        %949 = vmatprep.subr.mxu0 0.0
        %950 = vmatpush2.msra.mxu0 0.0
        %951 = vmatprep.subr.mxu0 0.0
        %952 = vmatpush2.msra.mxu0 0.0
        %953 = vmatprep.subr.mxu0 0.0
        %954 = vmatpush2.msra.mxu0 0.0
        %955 = vmatprep.subr.mxu0 0.0
        %956 = vmatpush2.msra.mxu0 0.0
        %957 = vmatprep.subr.mxu0 0.0
        %958 = vmatpush2.msra.mxu0 0.0
        %959 = vmatprep.subr.mxu0 0.0
        %960 = vmatpush2.msra.mxu0 0.0
        %961 = vmatprep.subr.mxu0 0.0
        %962 = vmatpush2.msra.mxu0 0.0
        %963 = vmatprep.subr.mxu0 0.0
        %964 = vmatpush2.msra.mxu0 0.0
        %965 = vmatprep.subr.mxu0 0.0
        %966 = vmatpush2.msra.mxu0 0.0
        %967 = vmatprep.mubr.f32.mxu0 0.0
        %968 = vmatmul.mubr.f32.gmra.mxu0 %v712
        %v969 = vpop.f32.mrf.mxu0
        %v970 = vadd.f32 1e-05, %v969
        %v971 = vpop.f32.mrf.mxu0
        %v972 = vadd.f32 1e-05, %v971
        %973 = vdwg.mxu0
        %v974 = vrsqrt.pop %v970
        %v975 = vrsqrt.pop %v972
        %976 = vmatprep.subr.mxu0 0.0
        %977 = vmatpush1.msra.mxu0 0.0
        %978 = vmatprep.subr.mxu0 0.0
        %979 = vmatpush1.msra.mxu0 0.0
        %980 = vmatprep.subr.mxu0 0.0
        %981 = vmatpush1.msra.mxu0 0.0
        %982 = vmatprep.subr.mxu0 0.0
        %983 = vmatpush1.msra.mxu0 0.0
        %984 = vmatprep.subr.mxu0 0.0
        %985 = vmatpush1.msra.mxu0 0.0
        %986 = vmatprep.subr.mxu0 0.0
        %987 = vmatpush1.msra.mxu0 0.0
        %988 = vmatprep.subr.mxu0 0.0
        %989 = vmatpush1.msra.mxu0 0.0
        %990 = vmatprep.subr.mxu0 0.0
        %991 = vmatpush1.msra.mxu0 0.0
        %992 = vmatprep.subr.mxu0 0.0
        %993 = vmatpush1.msra.mxu0 0.0
        %994 = vmatprep.subr.mxu0 0.0
        %995 = vmatpush1.msra.mxu0 0.0
        %996 = vmatprep.subr.mxu0 0.0
        %997 = vmatpush1.msra.mxu0 0.0
        %998 = vmatprep.subr.mxu0 0.0
        %999 = vmatpush1.msra.mxu0 0.0
        %1000 = vmatprep.subr.mxu0 0.0
        %1001 = vmatpush1.msra.mxu0 0.0
        %1002 = vmatprep.subr.mxu0 0.0
        %1003 = vmatpush1.msra.mxu0 0.0
        %1004 = vmatprep.subr.mxu0 0.0
        %1005 = vmatpush1.msra.mxu0 0.0
        %1006 = vmatprep.subr.mxu0 %v975
        %1007 = vmatpush1.msra.mxu0 %v974
        %1008 = vmatprep.subr.mxu0 0.0
        %1009 = vmatpush2.msra.mxu0 0.0
        %1010 = vmatprep.subr.mxu0 0.0
        %1011 = vmatpush2.msra.mxu0 0.0
        %1012 = vmatprep.subr.mxu0 0.0
        %1013 = vmatpush2.msra.mxu0 0.0
        %1014 = vmatprep.subr.mxu0 0.0
        %1015 = vmatpush2.msra.mxu0 0.0
        %1016 = vmatprep.subr.mxu0 0.0
        %1017 = vmatpush2.msra.mxu0 0.0
        %1018 = vmatprep.subr.mxu0 0.0
        %1019 = vmatpush2.msra.mxu0 0.0
        %1020 = vmatprep.subr.mxu0 0.0
        %1021 = vmatpush2.msra.mxu0 0.0
        %1022 = vmatprep.subr.mxu0 0.0
        %1023 = vmatpush2.msra.mxu0 0.0
        %1024 = vmatprep.subr.mxu0 0.0
        %1025 = vmatpush2.msra.mxu0 0.0
        %1026 = vmatprep.subr.mxu0 0.0
        %1027 = vmatpush2.msra.mxu0 0.0
        %1028 = vmatprep.subr.mxu0 0.0
        %1029 = vmatpush2.msra.mxu0 0.0
        %1030 = vmatprep.subr.mxu0 0.0
        %1031 = vmatpush2.msra.mxu0 0.0
        %1032 = vmatprep.subr.mxu0 0.0
        %1033 = vmatpush2.msra.mxu0 0.0
        %1034 = vmatprep.subr.mxu0 0.0
        %1035 = vmatpush2.msra.mxu0 0.0
        %1036 = vmatprep.subr.mxu0 0.0
        %1037 = vmatpush2.msra.mxu0 0.0
        %1038 = vmatprep.subr.mxu0 0.0
        %1039 = vmatpush2.msra.mxu0 0.0
        %1040 = vmatprep.mubr.f32.mxu0 0.0
        %1041 = vmatmul.mubr.f32.gmra.mxu0 %v787
        %v1042 = vpop.f32.mrf.mxu0
        %v1043 = vadd.f32 0.0, %v1042
        %v1044 = vpop.f32.mrf.mxu0
        %v1045 = vadd.f32 0.0, %v1044
        %1046 = vmatprep.mubr.f32.mxu0 0.0
        %1047 = vmatmul.mubr.f32.gmra.mxu0 %v790
        %v1048 = vpop.f32.mrf.mxu0
        %v1049 = vadd.f32 0.0, %v1048
        %v1050 = vpop.f32.mrf.mxu0
        %v1051 = vadd.f32 0.0, %v1050
        %1052 = vmatprep.mubr.f32.mxu0 0.0
        %1053 = vmatmul.mubr.f32.gmra.mxu0 %v793
        %v1054 = vpop.f32.mrf.mxu0
        %v1055 = vadd.f32 0.0, %v1054
        %v1056 = vpop.f32.mrf.mxu0
        %v1057 = vadd.f32 0.0, %v1056
        %1058 = vmatprep.mubr.f32.mxu0 0.0
        %1059 = vmatmul.mubr.f32.gmra.mxu0 %v796
        %v1060 = vpop.f32.mrf.mxu0
        %v1061 = vadd.f32 0.0, %v1060
        %v1062 = vpop.f32.mrf.mxu0
        %v1063 = vadd.f32 0.0, %v1062
        %1064 = vdwg.mxu0
        %v1065 = vld [vmem:[%s530] sm:$0xff]
        %v1066 = vld [vmem:[%s530 + $0x8] sm:$0xff]
        %v1067 = vld [vmem:[%s530 + $0x10] sm:$0xff]
        %v1068 = vld [vmem:[%s530 + $0x18] sm:$0xff]
        %v1069 = vld [vmem:[%s530 + $0x20] sm:$0xff]
        %v1070 = vld [vmem:[%s530 + $0x28] sm:$0xff]
        %v1071 = vld [vmem:[%s530 + $0x30] sm:$0xff]
        %v1072 = vld [vmem:[%s530 + $0x38] sm:$0xff]
        %v1073 = vunpack.c.l.bf16 %v1065
        %v1074 = vunpack.c.h.bf16 %v1065
        %v1075 = vunpack.c.l.bf16 %v1066
        %v1076 = vunpack.c.h.bf16 %v1066
        %v1077 = vunpack.c.l.bf16 %v1067
        %v1078 = vunpack.c.h.bf16 %v1067
        %v1079 = vunpack.c.l.bf16 %v1068
        %v1080 = vunpack.c.h.bf16 %v1068
        %v1081 = vunpack.c.l.bf16 %v1069
        %v1082 = vunpack.c.h.bf16 %v1069
        %v1083 = vunpack.c.l.bf16 %v1070
        %v1084 = vunpack.c.h.bf16 %v1070
        %v1085 = vunpack.c.l.bf16 %v1071
        %v1086 = vunpack.c.h.bf16 %v1071
        %v1087 = vunpack.c.l.bf16 %v1072
        %v1088 = vunpack.c.h.bf16 %v1072
        %v1089 = vadd.f32 %v1073, 1.0
        %v1090 = vadd.f32 %v1074, 1.0
        %v1091 = vadd.f32 %v1075, 1.0
        %v1092 = vadd.f32 %v1076, 1.0
        %v1093 = vadd.f32 %v1077, 1.0
        %v1094 = vadd.f32 %v1078, 1.0
        %v1095 = vadd.f32 %v1079, 1.0
        %v1096 = vadd.f32 %v1080, 1.0
        %v1097 = vld [vmem:[%s4] sm:$0xff]
        %v1098 = vld [vmem:[%s4 + $0x8] sm:$0xff]
        %v1099 = vld [vmem:[%s4 + $0x10] sm:$0xff]
        %v1100 = vld [vmem:[%s4 + $0x18] sm:$0xff]
        %1102 = vset.pattern.permute.xlu0 0
        %1103 = vperm.xlu0 %1102, %v1097
        %v1104 = vpop.permute.xlu0 %1103
        %1107 = vset.pattern.permute.xlu0 0
        %1108 = vperm.xlu0 %1107, %v1098
        %v1109 = vpop.permute.xlu0 %1108
        %1112 = vset.pattern.permute.xlu0 0
        %1113 = vperm.xlu0 %1112, %v1099
        %v1114 = vpop.permute.xlu0 %1113
        %1117 = vset.pattern.permute.xlu0 0
        %1118 = vperm.xlu0 %1117, %v1100
        %v1119 = vpop.permute.xlu0 %1118
        %v1121 = vmul.f32 %v1043, %v1104
        %v1122 = vmul.f32 %v1045, %v1104
        %v1123 = vmul.f32 %v1049, %v1109
        %v1124 = vmul.f32 %v1051, %v1109
        %v1125 = vmul.f32 %v1055, %v1114
        %v1126 = vmul.f32 %v1057, %v1114
        %v1127 = vmul.f32 %v1061, %v1119
        %v1128 = vmul.f32 %v1063, %v1119
        %v1129 = vmul.f32 %v1121, %v1089
        %v1130 = vmul.f32 %v1122, %v1090
        %v1131 = vmul.f32 %v1123, %v1091
        %v1132 = vmul.f32 %v1124, %v1092
        %v1133 = vmul.f32 %v1125, %v1093
        %v1134 = vmul.f32 %v1126, %v1094
        %v1135 = vmul.f32 %v1127, %v1095
        %v1136 = vmul.f32 %v1128, %v1096
        %v1137 = vld [vmem:[%s5] sm:$0xff]
        %v1138 = vld [vmem:[%s5 + $0x8] sm:$0xff]
        %v1139 = vld [vmem:[%s5 + $0x10] sm:$0xff]
        %v1140 = vld [vmem:[%s5 + $0x18] sm:$0xff]
        %1142 = vset.pattern.permute.xlu0 0
        %1143 = vperm.xlu0 %1142, %v1137
        %v1144 = vpop.permute.xlu0 %1143
        %1147 = vset.pattern.permute.xlu0 0
        %1148 = vperm.xlu0 %1147, %v1138
        %v1149 = vpop.permute.xlu0 %1148
        %1152 = vset.pattern.permute.xlu0 0
        %1153 = vperm.xlu0 %1152, %v1139
        %v1154 = vpop.permute.xlu0 %1153
        %1157 = vset.pattern.permute.xlu0 0
        %1158 = vperm.xlu0 %1157, %v1140
        %v1159 = vpop.permute.xlu0 %1158
        %v1161 = vmul.f32 %v1144, %v1089
        %v1162 = vmul.f32 %v1144, %v1090
        %v1163 = vmul.f32 %v1149, %v1091
        %v1164 = vmul.f32 %v1149, %v1092
        %v1165 = vmul.f32 %v1154, %v1093
        %v1166 = vmul.f32 %v1154, %v1094
        %v1167 = vmul.f32 %v1159, %v1095
        %v1168 = vmul.f32 %v1159, %v1096
        %v1169 = vadd.f32 %v1161, %v1081
        %v1170 = vadd.f32 %v1162, %v1082
        %v1171 = vadd.f32 %v1163, %v1083
        %v1172 = vadd.f32 %v1164, %v1084
        %v1173 = vadd.f32 %v1165, %v1085
        %v1174 = vadd.f32 %v1166, %v1086
        %v1175 = vadd.f32 %v1167, %v1087
        %v1176 = vadd.f32 %v1168, %v1088
        %v1177 = vmul.f32 %v887, %v1129
        %v1178 = vmul.f32 %v888, %v1130
        %v1179 = vmul.f32 %v889, %v1131
        %v1180 = vmul.f32 %v890, %v1132
        %v1181 = vmul.f32 %v891, %v1133
        %v1182 = vmul.f32 %v892, %v1134
        %v1183 = vmul.f32 %v893, %v1135
        %v1184 = vmul.f32 %v894, %v1136
        %v1185 = vadd.f32 %v1177, %v1169
        %v1186 = vadd.f32 %v1178, %v1170
        %v1187 = vadd.f32 %v1179, %v1171
        %v1188 = vadd.f32 %v1180, %v1172
        %v1189 = vadd.f32 %v1181, %v1173
        %v1190 = vadd.f32 %v1182, %v1174
        %v1191 = vadd.f32 %v1183, %v1175
        %v1192 = vadd.f32 %v1184, %v1176
        %v1193 = vmul.f32 %v1185, 0.2
        %v1194 = vmul.f32 %v1186, 0.2
        %v1195 = vmul.f32 %v1187, 0.2
        %v1196 = vmul.f32 %v1188, 0.2
        %v1197 = vmul.f32 %v1189, 0.2
        %v1198 = vmul.f32 %v1190, 0.2
        %v1199 = vmul.f32 %v1191, 0.2
        %v1200 = vmul.f32 %v1192, 0.2
        %v1201 = vmax.f32 %v1185, %v1193
        %v1202 = vmax.f32 %v1186, %v1194
        %v1203 = vmax.f32 %v1187, %v1195
        %v1204 = vmax.f32 %v1188, %v1196
        %v1205 = vmax.f32 %v1189, %v1197
        %v1206 = vmax.f32 %v1190, %v1198
        %v1207 = vmax.f32 %v1191, %v1199
        %v1208 = vmax.f32 %v1192, %v1200
        %v1209 = vld [vmem:[%s2] sm:$0xf]
        %v1210 = vld [vmem:[%s2 + $0x4] sm:$0xf]
        %v1211 = vld [vmem:[%s2 + $0x8] sm:$0xf]
        %v1212 = vld [vmem:[%s2 + $0xc] sm:$0xf]
        %v1213 = vpack.c.bf16 %v1203, %v1201
        %v1214 = vpack.c.bf16 %v1204, %v1202
        %v1215 = vpack.c.bf16 %v1207, %v1205
        %v1216 = vpack.c.bf16 %v1208, %v1206
        %s1217 = scalar_lea.vmem %s3, 32
        %v1218 = vld [vmem:[%s1217] sm:$0xff]
        %v1219 = vld [vmem:[%s1217 + $0x8] sm:$0xff]
        %v1220 = vld [vmem:[%s1217 + $0x10] sm:$0xff]
        %v1221 = vld [vmem:[%s1217 + $0x18] sm:$0xff]
        %1223 = vset.pattern.permute.xlu0 0
        %1224 = vperm.xlu0 %1223, %v1218
        %v1225 = vpop.permute.xlu0 %1224
        %1228 = vset.pattern.permute.xlu0 0
        %1229 = vperm.xlu0 %1228, %v1219
        %v1230 = vpop.permute.xlu0 %1229
        %1233 = vset.pattern.permute.xlu0 0
        %1234 = vperm.xlu0 %1233, %v1220
        %v1235 = vpop.permute.xlu0 %1234
        %1238 = vset.pattern.permute.xlu0 0
        %1239 = vperm.xlu0 %1238, %v1221
        %v1240 = vpop.permute.xlu0 %1239
        %v1246 = vunpack.c.l.b16 %v1209
        %v1247 = vunpack.c.l.b16 %v1210
        %v1248 = vunpack.c.l.b16 %v1211
        %v1249 = vunpack.c.l.b16 %v1212
        %v1250 = vpack.c.b16 %v1247, %v1246
        %v1251 = vpack.c.b16 %v1249, %v1248
        %v1253 = vsel %vm710, %v1250, 0
        %v1256 = vsel %vm710, %v1251, 0
        %1258 = vmatprep.subr.bf16.mxu0 0
        %1259 = vmatpush1.bf16.msra.mxu0 0
        %1260 = vmatprep.subr.bf16.mxu0 0
        %1261 = vmatpush1.bf16.msra.mxu0 0
        %1262 = vmatprep.subr.bf16.mxu0 0
        %1263 = vmatpush1.bf16.msra.mxu0 0
        %1264 = vmatprep.subr.bf16.mxu0 0
        %1265 = vmatpush1.bf16.msra.mxu0 0
        %1266 = vmatprep.subr.bf16.mxu0 0
        %1267 = vmatpush1.bf16.msra.mxu0 0
        %1268 = vmatprep.subr.bf16.mxu0 0
        %1269 = vmatpush1.bf16.msra.mxu0 0
        %1270 = vmatprep.subr.bf16.mxu0 %v1216
        %1271 = vmatpush1.bf16.msra.mxu0 %v1215
        %1272 = vmatprep.subr.bf16.mxu0 %v1214
        %1273 = vmatpush1.bf16.msra.mxu0 %v1213
        %1274 = vmatprep.subr.bf16.mxu0 0
        %1275 = vmatpush2.bf16.msra.mxu0 0
        %1276 = vmatprep.subr.bf16.mxu0 0
        %1277 = vmatpush2.bf16.msra.mxu0 0
        %1278 = vmatprep.subr.bf16.mxu0 0
        %1279 = vmatpush2.bf16.msra.mxu0 0
        %1280 = vmatprep.subr.bf16.mxu0 0
        %1281 = vmatpush2.bf16.msra.mxu0 0
        %1282 = vmatprep.subr.bf16.mxu0 0
        %1283 = vmatpush2.bf16.msra.mxu0 0
        %1284 = vmatprep.subr.bf16.mxu0 0
        %1285 = vmatpush2.bf16.msra.mxu0 0
        %1286 = vmatprep.subr.bf16.mxu0 0
        %1287 = vmatpush2.bf16.msra.mxu0 0
        %1288 = vmatprep.subr.bf16.mxu0 0
        %1289 = vmatpush2.bf16.msra.mxu0 0
        %1290 = vmatprep.mubr.bf16.mxu0 0
        %1291 = vmatmul.mubr.bf16.gmra.mxu0 %v1253
        %v1292 = vpop.f32.mrf.mxu0
        %v1293 = vadd.f32 %v1225, %v1292
        %v1294 = vpop.f32.mrf.mxu0
        %v1295 = vadd.f32 %v1225, %v1294
        %v1296 = vpop.f32.mrf.mxu0
        %v1297 = vadd.f32 %v1230, %v1296
        %v1298 = vpop.f32.mrf.mxu0
        %v1299 = vadd.f32 %v1230, %v1298
        %1300 = vmatprep.mubr.bf16.mxu0 0
        %1301 = vmatmul.mubr.bf16.gmra.mxu0 %v1256
        %v1302 = vpop.f32.mrf.mxu0
        %v1303 = vadd.f32 %v1235, %v1302
        %v1304 = vpop.f32.mrf.mxu0
        %v1305 = vadd.f32 %v1235, %v1304
        %v1306 = vpop.f32.mrf.mxu0
        %v1307 = vadd.f32 %v1240, %v1306
        %v1308 = vpop.f32.mrf.mxu0
        %v1309 = vadd.f32 %v1240, %v1308
        %1310 = vdwg.mxu0
        %1311 = vmatprep.subr.mxu0 0.0
        %1312 = vmatpush1.msra.mxu0 0.0
        %1313 = vmatprep.subr.mxu0 0.0
        %1314 = vmatpush1.msra.mxu0 0.0
        %1315 = vmatprep.subr.mxu0 0.0
        %1316 = vmatpush1.msra.mxu0 0.0
        %1317 = vmatprep.subr.mxu0 0.0
        %1318 = vmatpush1.msra.mxu0 0.0
        %1319 = vmatprep.subr.mxu0 0.0
        %1320 = vmatpush1.msra.mxu0 0.0
        %1321 = vmatprep.subr.mxu0 0.0
        %1322 = vmatpush1.msra.mxu0 0.0
        %1323 = vmatprep.subr.mxu0 0.0
        %1324 = vmatpush1.msra.mxu0 0.0
        %1325 = vmatprep.subr.mxu0 0.0
        %1326 = vmatpush1.msra.mxu0 0.0
        %1327 = vmatprep.subr.mxu0 0.0
        %1328 = vmatpush1.msra.mxu0 0.0
        %1329 = vmatprep.subr.mxu0 0.0
        %1330 = vmatpush1.msra.mxu0 0.0
        %1331 = vmatprep.subr.mxu0 0.0
        %1332 = vmatpush1.msra.mxu0 0.0
        %1333 = vmatprep.subr.mxu0 0.0
        %1334 = vmatpush1.msra.mxu0 0.0
        %1335 = vmatprep.subr.mxu0 %v1309
        %1336 = vmatpush1.msra.mxu0 %v1307
        %1337 = vmatprep.subr.mxu0 %v1305
        %1338 = vmatpush1.msra.mxu0 %v1303
        %1339 = vmatprep.subr.mxu0 %v1299
        %1340 = vmatpush1.msra.mxu0 %v1297
        %1341 = vmatprep.subr.mxu0 %v1295
        %1342 = vmatpush1.msra.mxu0 %v1293
        %1343 = vmatprep.subr.mxu0 0.0
        %1344 = vmatpush2.msra.mxu0 0.0
        %1345 = vmatprep.subr.mxu0 0.0
        %1346 = vmatpush2.msra.mxu0 0.0
        %1347 = vmatprep.subr.mxu0 0.0
        %1348 = vmatpush2.msra.mxu0 0.0
        %1349 = vmatprep.subr.mxu0 0.0
        %1350 = vmatpush2.msra.mxu0 0.0
        %1351 = vmatprep.subr.mxu0 0.0
        %1352 = vmatpush2.msra.mxu0 0.0
        %1353 = vmatprep.subr.mxu0 0.0
        %1354 = vmatpush2.msra.mxu0 0.0
        %1355 = vmatprep.subr.mxu0 0.0
        %1356 = vmatpush2.msra.mxu0 0.0
        %1357 = vmatprep.subr.mxu0 0.0
        %1358 = vmatpush2.msra.mxu0 0.0
        %1359 = vmatprep.subr.mxu0 0.0
        %1360 = vmatpush2.msra.mxu0 0.0
        %1361 = vmatprep.subr.mxu0 0.0
        %1362 = vmatpush2.msra.mxu0 0.0
        %1363 = vmatprep.subr.mxu0 0.0
        %1364 = vmatpush2.msra.mxu0 0.0
        %1365 = vmatprep.subr.mxu0 0.0
        %1366 = vmatpush2.msra.mxu0 0.0
        %1367 = vmatprep.subr.mxu0 0.0
        %1368 = vmatpush2.msra.mxu0 0.0
        %1369 = vmatprep.subr.mxu0 0.0
        %1370 = vmatpush2.msra.mxu0 0.0
        %1371 = vmatprep.subr.mxu0 0.0
        %1372 = vmatpush2.msra.mxu0 0.0
        %1373 = vmatprep.subr.mxu0 0.0
        %1374 = vmatpush2.msra.mxu0 0.0
        %1375 = vmatprep.mubr.f32.mxu0 0.0
        %1376 = vmatmul.mubr.f32.gmra.mxu0 %v712
        %v1377 = vpop.f32.mrf.mxu0
        %v1378 = vadd.f32 0.0, %v1377
        %v1379 = vpop.f32.mrf.mxu0
        %v1380 = vadd.f32 0.0, %v1379
        %1381 = vdwg.mxu0
        %1382 = vmatprep.subr.mxu0 0.0
        %1383 = vmatpush1.msra.mxu0 0.0
        %1384 = vmatprep.subr.mxu0 0.0
        %1385 = vmatpush1.msra.mxu0 0.0
        %1386 = vmatprep.subr.mxu0 0.0
        %1387 = vmatpush1.msra.mxu0 0.0
        %1388 = vmatprep.subr.mxu0 0.0
        %1389 = vmatpush1.msra.mxu0 0.0
        %1390 = vmatprep.subr.mxu0 0.0
        %1391 = vmatpush1.msra.mxu0 0.0
        %1392 = vmatprep.subr.mxu0 0.0
        %1393 = vmatpush1.msra.mxu0 0.0
        %1394 = vmatprep.subr.mxu0 0.0
        %1395 = vmatpush1.msra.mxu0 0.0
        %1396 = vmatprep.subr.mxu0 0.0
        %1397 = vmatpush1.msra.mxu0 0.0
        %1398 = vmatprep.subr.mxu0 0.0
        %1399 = vmatpush1.msra.mxu0 0.0
        %1400 = vmatprep.subr.mxu0 0.0
        %1401 = vmatpush1.msra.mxu0 0.0
        %1402 = vmatprep.subr.mxu0 0.0
        %1403 = vmatpush1.msra.mxu0 0.0
        %1404 = vmatprep.subr.mxu0 0.0
        %1405 = vmatpush1.msra.mxu0 0.0
        %1406 = vmatprep.subr.mxu0 0.0
        %1407 = vmatpush1.msra.mxu0 0.0
        %1408 = vmatprep.subr.mxu0 0.0
        %1409 = vmatpush1.msra.mxu0 0.0
        %1410 = vmatprep.subr.mxu0 0.0
        %1411 = vmatpush1.msra.mxu0 0.0
        %1412 = vmatprep.subr.mxu0 %v1380
        %1413 = vmatpush1.msra.mxu0 %v1378
        %1414 = vmatprep.subr.mxu0 0.0
        %1415 = vmatpush2.msra.mxu0 0.0
        %1416 = vmatprep.subr.mxu0 0.0
        %1417 = vmatpush2.msra.mxu0 0.0
        %1418 = vmatprep.subr.mxu0 0.0
        %1419 = vmatpush2.msra.mxu0 0.0
        %1420 = vmatprep.subr.mxu0 0.0
        %1421 = vmatpush2.msra.mxu0 0.0
        %1422 = vmatprep.subr.mxu0 0.0
        %1423 = vmatpush2.msra.mxu0 0.0
        %1424 = vmatprep.subr.mxu0 0.0
        %1425 = vmatpush2.msra.mxu0 0.0
        %1426 = vmatprep.subr.mxu0 0.0
        %1427 = vmatpush2.msra.mxu0 0.0
        %1428 = vmatprep.subr.mxu0 0.0
        %1429 = vmatpush2.msra.mxu0 0.0
        %1430 = vmatprep.subr.mxu0 0.0
        %1431 = vmatpush2.msra.mxu0 0.0
        %1432 = vmatprep.subr.mxu0 0.0
        %1433 = vmatpush2.msra.mxu0 0.0
        %1434 = vmatprep.subr.mxu0 0.0
        %1435 = vmatpush2.msra.mxu0 0.0
        %1436 = vmatprep.subr.mxu0 0.0
        %1437 = vmatpush2.msra.mxu0 0.0
        %1438 = vmatprep.subr.mxu0 0.0
        %1439 = vmatpush2.msra.mxu0 0.0
        %1440 = vmatprep.subr.mxu0 0.0
        %1441 = vmatpush2.msra.mxu0 0.0
        %1442 = vmatprep.subr.mxu0 0.0
        %1443 = vmatpush2.msra.mxu0 0.0
        %1444 = vmatprep.subr.mxu0 0.0
        %1445 = vmatpush2.msra.mxu0 0.0
        %1446 = vmatprep.mubr.f32.mxu0 0.0
        %1447 = vmatmul.mubr.f32.gmra.mxu0 %v787
        %v1448 = vpop.f32.mrf.mxu0
        %v1449 = vadd.f32 0.0, %v1448
        %v1450 = vpop.f32.mrf.mxu0
        %v1451 = vadd.f32 0.0, %v1450
        %1452 = vmatprep.mubr.f32.mxu0 0.0
        %1453 = vmatmul.mubr.f32.gmra.mxu0 %v790
        %v1454 = vpop.f32.mrf.mxu0
        %v1455 = vadd.f32 0.0, %v1454
        %v1456 = vpop.f32.mrf.mxu0
        %v1457 = vadd.f32 0.0, %v1456
        %1458 = vmatprep.mubr.f32.mxu0 0.0
        %1459 = vmatmul.mubr.f32.gmra.mxu0 %v793
        %v1460 = vpop.f32.mrf.mxu0
        %v1461 = vadd.f32 0.0, %v1460
        %v1462 = vpop.f32.mrf.mxu0
        %v1463 = vadd.f32 0.0, %v1462
        %1464 = vmatprep.mubr.f32.mxu0 0.0
        %1465 = vmatmul.mubr.f32.gmra.mxu0 %v796
        %v1466 = vpop.f32.mrf.mxu0
        %v1467 = vadd.f32 0.0, %v1466
        %v1468 = vpop.f32.mrf.mxu0
        %v1469 = vadd.f32 0.0, %v1468
        %1470 = vdwg.mxu0
        %v1471 = vsub.f32 %v1293, %v1449
        %v1472 = vsub.f32 %v1295, %v1451
        %v1473 = vsub.f32 %v1297, %v1455
        %v1474 = vsub.f32 %v1299, %v1457
        %v1475 = vsub.f32 %v1303, %v1461
        %v1476 = vsub.f32 %v1305, %v1463
        %v1477 = vsub.f32 %v1307, %v1467
        %v1478 = vsub.f32 %v1309, %v1469
        %v1479 = vmul.f32 %v1471, %v1471
        %v1480 = vmul.f32 %v1472, %v1472
        %v1481 = vmul.f32 %v1473, %v1473
        %v1482 = vmul.f32 %v1474, %v1474
        %v1483 = vmul.f32 %v1475, %v1475
        %v1484 = vmul.f32 %v1476, %v1476
        %v1485 = vmul.f32 %v1477, %v1477
        %v1486 = vmul.f32 %v1478, %v1478
        %1487 = vmatprep.subr.mxu0 0.0
        %1488 = vmatpush1.msra.mxu0 0.0
        %1489 = vmatprep.subr.mxu0 0.0
        %1490 = vmatpush1.msra.mxu0 0.0
        %1491 = vmatprep.subr.mxu0 0.0
        %1492 = vmatpush1.msra.mxu0 0.0
        %1493 = vmatprep.subr.mxu0 0.0
        %1494 = vmatpush1.msra.mxu0 0.0
        %1495 = vmatprep.subr.mxu0 0.0
        %1496 = vmatpush1.msra.mxu0 0.0
        %1497 = vmatprep.subr.mxu0 0.0
        %1498 = vmatpush1.msra.mxu0 0.0
        %1499 = vmatprep.subr.mxu0 0.0
        %1500 = vmatpush1.msra.mxu0 0.0
        %1501 = vmatprep.subr.mxu0 0.0
        %1502 = vmatpush1.msra.mxu0 0.0
        %1503 = vmatprep.subr.mxu0 0.0
        %1504 = vmatpush1.msra.mxu0 0.0
        %1505 = vmatprep.subr.mxu0 0.0
        %1506 = vmatpush1.msra.mxu0 0.0
        %1507 = vmatprep.subr.mxu0 0.0
        %1508 = vmatpush1.msra.mxu0 0.0
        %1509 = vmatprep.subr.mxu0 0.0
        %1510 = vmatpush1.msra.mxu0 0.0
        %1511 = vmatprep.subr.mxu0 %v1486
        %1512 = vmatpush1.msra.mxu0 %v1485
        %1513 = vmatprep.subr.mxu0 %v1484
        %1514 = vmatpush1.msra.mxu0 %v1483
        %1515 = vmatprep.subr.mxu0 %v1482
        %1516 = vmatpush1.msra.mxu0 %v1481
        %1517 = vmatprep.subr.mxu0 %v1480
        %1518 = vmatpush1.msra.mxu0 %v1479
        %1519 = vmatprep.subr.mxu0 0.0
        %1520 = vmatpush2.msra.mxu0 0.0
        %1521 = vmatprep.subr.mxu0 0.0
        %1522 = vmatpush2.msra.mxu0 0.0
        %1523 = vmatprep.subr.mxu0 0.0
        %1524 = vmatpush2.msra.mxu0 0.0
        %1525 = vmatprep.subr.mxu0 0.0
        %1526 = vmatpush2.msra.mxu0 0.0
        %1527 = vmatprep.subr.mxu0 0.0
        %1528 = vmatpush2.msra.mxu0 0.0
        %1529 = vmatprep.subr.mxu0 0.0
        %1530 = vmatpush2.msra.mxu0 0.0
        %1531 = vmatprep.subr.mxu0 0.0
        %1532 = vmatpush2.msra.mxu0 0.0
        %1533 = vmatprep.subr.mxu0 0.0
        %1534 = vmatpush2.msra.mxu0 0.0
        %1535 = vmatprep.subr.mxu0 0.0
        %1536 = vmatpush2.msra.mxu0 0.0
        %1537 = vmatprep.subr.mxu0 0.0
        %1538 = vmatpush2.msra.mxu0 0.0
        %1539 = vmatprep.subr.mxu0 0.0
        %1540 = vmatpush2.msra.mxu0 0.0
        %1541 = vmatprep.subr.mxu0 0.0
        %1542 = vmatpush2.msra.mxu0 0.0
        %1543 = vmatprep.subr.mxu0 0.0
        %1544 = vmatpush2.msra.mxu0 0.0
        %1545 = vmatprep.subr.mxu0 0.0
        %1546 = vmatpush2.msra.mxu0 0.0
        %1547 = vmatprep.subr.mxu0 0.0
        %1548 = vmatpush2.msra.mxu0 0.0
        %1549 = vmatprep.subr.mxu0 0.0
        %1550 = vmatpush2.msra.mxu0 0.0
        %1551 = vmatprep.mubr.f32.mxu0 0.0
        %1552 = vmatmul.mubr.f32.gmra.mxu0 %v712
        %v1553 = vpop.f32.mrf.mxu0
        %v1554 = vadd.f32 1e-05, %v1553
        %v1555 = vpop.f32.mrf.mxu0
        %v1556 = vadd.f32 1e-05, %v1555
        %1557 = vdwg.mxu0
        %v1558 = vrsqrt.pop %v1554
        %v1559 = vrsqrt.pop %v1556
        %1560 = vmatprep.subr.mxu0 0.0
        %1561 = vmatpush1.msra.mxu0 0.0
        %1562 = vmatprep.subr.mxu0 0.0
        %1563 = vmatpush1.msra.mxu0 0.0
        %1564 = vmatprep.subr.mxu0 0.0
        %1565 = vmatpush1.msra.mxu0 0.0
        %1566 = vmatprep.subr.mxu0 0.0
        %1567 = vmatpush1.msra.mxu0 0.0
        %1568 = vmatprep.subr.mxu0 0.0
        %1569 = vmatpush1.msra.mxu0 0.0
        %1570 = vmatprep.subr.mxu0 0.0
        %1571 = vmatpush1.msra.mxu0 0.0
        %1572 = vmatprep.subr.mxu0 0.0
        %1573 = vmatpush1.msra.mxu0 0.0
        %1574 = vmatprep.subr.mxu0 0.0
        %1575 = vmatpush1.msra.mxu0 0.0
        %1576 = vmatprep.subr.mxu0 0.0
        %1577 = vmatpush1.msra.mxu0 0.0
        %1578 = vmatprep.subr.mxu0 0.0
        %1579 = vmatpush1.msra.mxu0 0.0
        %1580 = vmatprep.subr.mxu0 0.0
        %1581 = vmatpush1.msra.mxu0 0.0
        %1582 = vmatprep.subr.mxu0 0.0
        %1583 = vmatpush1.msra.mxu0 0.0
        %1584 = vmatprep.subr.mxu0 0.0
        %1585 = vmatpush1.msra.mxu0 0.0
        %1586 = vmatprep.subr.mxu0 0.0
        %1587 = vmatpush1.msra.mxu0 0.0
        %1588 = vmatprep.subr.mxu0 0.0
        %1589 = vmatpush1.msra.mxu0 0.0
        %1590 = vmatprep.subr.mxu0 %v1559
        %1591 = vmatpush1.msra.mxu0 %v1558
        %1592 = vmatprep.subr.mxu0 0.0
        %1593 = vmatpush2.msra.mxu0 0.0
        %1594 = vmatprep.subr.mxu0 0.0
        %1595 = vmatpush2.msra.mxu0 0.0
        %1596 = vmatprep.subr.mxu0 0.0
        %1597 = vmatpush2.msra.mxu0 0.0
        %1598 = vmatprep.subr.mxu0 0.0
        %1599 = vmatpush2.msra.mxu0 0.0
        %1600 = vmatprep.subr.mxu0 0.0
        %1601 = vmatpush2.msra.mxu0 0.0
        %1602 = vmatprep.subr.mxu0 0.0
        %1603 = vmatpush2.msra.mxu0 0.0
        %1604 = vmatprep.subr.mxu0 0.0
        %1605 = vmatpush2.msra.mxu0 0.0
        %1606 = vmatprep.subr.mxu0 0.0
        %1607 = vmatpush2.msra.mxu0 0.0
        %1608 = vmatprep.subr.mxu0 0.0
        %1609 = vmatpush2.msra.mxu0 0.0
        %1610 = vmatprep.subr.mxu0 0.0
        %1611 = vmatpush2.msra.mxu0 0.0
        %1612 = vmatprep.subr.mxu0 0.0
        %1613 = vmatpush2.msra.mxu0 0.0
        %1614 = vmatprep.subr.mxu0 0.0
        %1615 = vmatpush2.msra.mxu0 0.0
        %1616 = vmatprep.subr.mxu0 0.0
        %1617 = vmatpush2.msra.mxu0 0.0
        %1618 = vmatprep.subr.mxu0 0.0
        %1619 = vmatpush2.msra.mxu0 0.0
        %1620 = vmatprep.subr.mxu0 0.0
        %1621 = vmatpush2.msra.mxu0 0.0
        %1622 = vmatprep.subr.mxu0 0.0
        %1623 = vmatpush2.msra.mxu0 0.0
        %1624 = vmatprep.mubr.f32.mxu0 0.0
        %1625 = vmatmul.mubr.f32.gmra.mxu0 %v787
        %v1626 = vpop.f32.mrf.mxu0
        %v1627 = vadd.f32 0.0, %v1626
        %v1628 = vpop.f32.mrf.mxu0
        %v1629 = vadd.f32 0.0, %v1628
        %1630 = vmatprep.mubr.f32.mxu0 0.0
        %1631 = vmatmul.mubr.f32.gmra.mxu0 %v790
        %v1632 = vpop.f32.mrf.mxu0
        %v1633 = vadd.f32 0.0, %v1632
        %v1634 = vpop.f32.mrf.mxu0
        %v1635 = vadd.f32 0.0, %v1634
        %1636 = vmatprep.mubr.f32.mxu0 0.0
        %1637 = vmatmul.mubr.f32.gmra.mxu0 %v793
        %v1638 = vpop.f32.mrf.mxu0
        %v1639 = vadd.f32 0.0, %v1638
        %v1640 = vpop.f32.mrf.mxu0
        %v1641 = vadd.f32 0.0, %v1640
        %1642 = vmatprep.mubr.f32.mxu0 0.0
        %1643 = vmatmul.mubr.f32.gmra.mxu0 %v796
        %v1644 = vpop.f32.mrf.mxu0
        %v1645 = vadd.f32 0.0, %v1644
        %v1646 = vpop.f32.mrf.mxu0
        %v1647 = vadd.f32 0.0, %v1646
        %1648 = vdwg.mxu0
        %s1649 = scalar_lea.vmem %s530, 64 [#allocation3]
        %v1650 = vld [vmem:[%s1649] sm:$0xff]
        %v1651 = vld [vmem:[%s1649 + $0x8] sm:$0xff]
        %v1652 = vld [vmem:[%s1649 + $0x10] sm:$0xff]
        %v1653 = vld [vmem:[%s1649 + $0x18] sm:$0xff]
        %v1654 = vld [vmem:[%s1649 + $0x20] sm:$0xff]
        %v1655 = vld [vmem:[%s1649 + $0x28] sm:$0xff]
        %v1656 = vld [vmem:[%s1649 + $0x30] sm:$0xff]
        %v1657 = vld [vmem:[%s1649 + $0x38] sm:$0xff]
        %v1658 = vunpack.c.l.bf16 %v1650
        %v1659 = vunpack.c.h.bf16 %v1650
        %v1660 = vunpack.c.l.bf16 %v1651
        %v1661 = vunpack.c.h.bf16 %v1651
        %v1662 = vunpack.c.l.bf16 %v1652
        %v1663 = vunpack.c.h.bf16 %v1652
        %v1664 = vunpack.c.l.bf16 %v1653
        %v1665 = vunpack.c.h.bf16 %v1653
        %v1666 = vunpack.c.l.bf16 %v1654
        %v1667 = vunpack.c.h.bf16 %v1654
        %v1668 = vunpack.c.l.bf16 %v1655
        %v1669 = vunpack.c.h.bf16 %v1655
        %v1670 = vunpack.c.l.bf16 %v1656
        %v1671 = vunpack.c.h.bf16 %v1656
        %v1672 = vunpack.c.l.bf16 %v1657
        %v1673 = vunpack.c.h.bf16 %v1657
        %v1674 = vadd.f32 %v1658, 1.0
        %v1675 = vadd.f32 %v1659, 1.0
        %v1676 = vadd.f32 %v1660, 1.0
        %v1677 = vadd.f32 %v1661, 1.0
        %v1678 = vadd.f32 %v1662, 1.0
        %v1679 = vadd.f32 %v1663, 1.0
        %v1680 = vadd.f32 %v1664, 1.0
        %v1681 = vadd.f32 %v1665, 1.0
        %s1682 = scalar_lea.vmem %s4, 32
        %v1683 = vld [vmem:[%s1682] sm:$0xff]
        %v1684 = vld [vmem:[%s1682 + $0x8] sm:$0xff]
        %v1685 = vld [vmem:[%s1682 + $0x10] sm:$0xff]
        %v1686 = vld [vmem:[%s1682 + $0x18] sm:$0xff]
        %1688 = vset.pattern.permute.xlu0 0
        %1689 = vperm.xlu0 %1688, %v1683
        %v1690 = vpop.permute.xlu0 %1689
        %1693 = vset.pattern.permute.xlu0 0
        %1694 = vperm.xlu0 %1693, %v1684
        %v1695 = vpop.permute.xlu0 %1694
        %1698 = vset.pattern.permute.xlu0 0
        %1699 = vperm.xlu0 %1698, %v1685
        %v1700 = vpop.permute.xlu0 %1699
        %1703 = vset.pattern.permute.xlu0 0
        %1704 = vperm.xlu0 %1703, %v1686
        %v1705 = vpop.permute.xlu0 %1704
        %v1707 = vmul.f32 %v1627, %v1690
        %v1708 = vmul.f32 %v1629, %v1690
        %v1709 = vmul.f32 %v1633, %v1695
        %v1710 = vmul.f32 %v1635, %v1695
        %v1711 = vmul.f32 %v1639, %v1700
        %v1712 = vmul.f32 %v1641, %v1700
        %v1713 = vmul.f32 %v1645, %v1705
        %v1714 = vmul.f32 %v1647, %v1705
        %v1715 = vmul.f32 %v1707, %v1674
        %v1716 = vmul.f32 %v1708, %v1675
        %v1717 = vmul.f32 %v1709, %v1676
        %v1718 = vmul.f32 %v1710, %v1677
        %v1719 = vmul.f32 %v1711, %v1678
        %v1720 = vmul.f32 %v1712, %v1679
        %v1721 = vmul.f32 %v1713, %v1680
        %v1722 = vmul.f32 %v1714, %v1681
        %s1723 = scalar_lea.vmem %s5, 32
        %v1724 = vld [vmem:[%s1723] sm:$0xff]
        %v1725 = vld [vmem:[%s1723 + $0x8] sm:$0xff]
        %v1726 = vld [vmem:[%s1723 + $0x10] sm:$0xff]
        %v1727 = vld [vmem:[%s1723 + $0x18] sm:$0xff]
        %1729 = vset.pattern.permute.xlu0 0
        %1730 = vperm.xlu0 %1729, %v1724
        %v1731 = vpop.permute.xlu0 %1730
        %1734 = vset.pattern.permute.xlu0 0
        %1735 = vperm.xlu0 %1734, %v1725
        %v1736 = vpop.permute.xlu0 %1735
        %1739 = vset.pattern.permute.xlu0 0
        %1740 = vperm.xlu0 %1739, %v1726
        %v1741 = vpop.permute.xlu0 %1740
        %1744 = vset.pattern.permute.xlu0 0
        %1745 = vperm.xlu0 %1744, %v1727
        %v1746 = vpop.permute.xlu0 %1745
        %v1748 = vmul.f32 %v1731, %v1674
        %v1749 = vmul.f32 %v1731, %v1675
        %v1750 = vmul.f32 %v1736, %v1676
        %v1751 = vmul.f32 %v1736, %v1677
        %v1752 = vmul.f32 %v1741, %v1678
        %v1753 = vmul.f32 %v1741, %v1679
        %v1754 = vmul.f32 %v1746, %v1680
        %v1755 = vmul.f32 %v1746, %v1681
        %v1756 = vadd.f32 %v1748, %v1666
        %v1757 = vadd.f32 %v1749, %v1667
        %v1758 = vadd.f32 %v1750, %v1668
        %v1759 = vadd.f32 %v1751, %v1669
        %v1760 = vadd.f32 %v1752, %v1670
        %v1761 = vadd.f32 %v1753, %v1671
        %v1762 = vadd.f32 %v1754, %v1672
        %v1763 = vadd.f32 %v1755, %v1673
        %v1764 = vmul.f32 %v1471, %v1715
        %v1765 = vmul.f32 %v1472, %v1716
        %v1766 = vmul.f32 %v1473, %v1717
        %v1767 = vmul.f32 %v1474, %v1718
        %v1768 = vmul.f32 %v1475, %v1719
        %v1769 = vmul.f32 %v1476, %v1720
        %v1770 = vmul.f32 %v1477, %v1721
        %v1771 = vmul.f32 %v1478, %v1722
        %v1772 = vadd.f32 %v1764, %v1756
        %v1773 = vadd.f32 %v1765, %v1757
        %v1774 = vadd.f32 %v1766, %v1758
        %v1775 = vadd.f32 %v1767, %v1759
        %v1776 = vadd.f32 %v1768, %v1760
        %v1777 = vadd.f32 %v1769, %v1761
        %v1778 = vadd.f32 %v1770, %v1762
        %v1779 = vadd.f32 %v1771, %v1763
        %v1780 = vmul.f32 %v1772, 0.2
        %v1781 = vmul.f32 %v1773, 0.2
        %v1782 = vmul.f32 %v1774, 0.2
        %v1783 = vmul.f32 %v1775, 0.2
        %v1784 = vmul.f32 %v1776, 0.2
        %v1785 = vmul.f32 %v1777, 0.2
        %v1786 = vmul.f32 %v1778, 0.2
        %v1787 = vmul.f32 %v1779, 0.2
        %v1788 = vmax.f32 %v1772, %v1780
        %v1789 = vmax.f32 %v1773, %v1781
        %v1790 = vmax.f32 %v1774, %v1782
        %v1791 = vmax.f32 %v1775, %v1783
        %v1792 = vmax.f32 %v1776, %v1784
        %v1793 = vmax.f32 %v1777, %v1785
        %v1794 = vmax.f32 %v1778, %v1786
        %v1795 = vmax.f32 %v1779, %v1787
        %s1796 = scalar_lea.vmem %s2, 16
        %v1797 = vld [vmem:[%s1796] sm:$0xf]
        %v1798 = vld [vmem:[%s1796 + $0x4] sm:$0xf]
        %v1799 = vld [vmem:[%s1796 + $0x8] sm:$0xf]
        %v1800 = vld [vmem:[%s1796 + $0xc] sm:$0xf]
        %v1801 = vpack.c.bf16 %v1790, %v1788
        %v1802 = vpack.c.bf16 %v1791, %v1789
        %v1803 = vpack.c.bf16 %v1794, %v1792
        %v1804 = vpack.c.bf16 %v1795, %v1793
        %s1805 = scalar_lea.vmem %s3, 64
        %v1806 = vld [vmem:[%s1805] sm:$0xff]
        %v1807 = vld [vmem:[%s1805 + $0x8] sm:$0xff]
        %v1808 = vld [vmem:[%s1805 + $0x10] sm:$0xff]
        %v1809 = vld [vmem:[%s1805 + $0x18] sm:$0xff]
        %1811 = vset.pattern.permute.xlu0 0
        %1812 = vperm.xlu0 %1811, %v1806
        %v1813 = vpop.permute.xlu0 %1812
        %1816 = vset.pattern.permute.xlu0 0
        %1817 = vperm.xlu0 %1816, %v1807
        %v1818 = vpop.permute.xlu0 %1817
        %1821 = vset.pattern.permute.xlu0 0
        %1822 = vperm.xlu0 %1821, %v1808
        %v1823 = vpop.permute.xlu0 %1822
        %1826 = vset.pattern.permute.xlu0 0
        %1827 = vperm.xlu0 %1826, %v1809
        %v1828 = vpop.permute.xlu0 %1827
        %v1834 = vunpack.c.l.b16 %v1797
        %v1835 = vunpack.c.l.b16 %v1798
        %v1836 = vunpack.c.l.b16 %v1799
        %v1837 = vunpack.c.l.b16 %v1800
        %v1838 = vpack.c.b16 %v1835, %v1834
        %v1839 = vpack.c.b16 %v1837, %v1836
        %v1841 = vsel %vm710, %v1838, 0
        %v1844 = vsel %vm710, %v1839, 0
        %1846 = vmatprep.subr.bf16.mxu0 0
        %1847 = vmatpush1.bf16.msra.mxu0 0
        %1848 = vmatprep.subr.bf16.mxu0 0
        %1849 = vmatpush1.bf16.msra.mxu0 0
        %1850 = vmatprep.subr.bf16.mxu0 0
        %1851 = vmatpush1.bf16.msra.mxu0 0
        %1852 = vmatprep.subr.bf16.mxu0 0
        %1853 = vmatpush1.bf16.msra.mxu0 0
        %1854 = vmatprep.subr.bf16.mxu0 0
        %1855 = vmatpush1.bf16.msra.mxu0 0
        %1856 = vmatprep.subr.bf16.mxu0 0
        %1857 = vmatpush1.bf16.msra.mxu0 0
        %1858 = vmatprep.subr.bf16.mxu0 %v1804
        %1859 = vmatpush1.bf16.msra.mxu0 %v1803
        %1860 = vmatprep.subr.bf16.mxu0 %v1802
        %1861 = vmatpush1.bf16.msra.mxu0 %v1801
        %1862 = vmatprep.subr.bf16.mxu0 0
        %1863 = vmatpush2.bf16.msra.mxu0 0
        %1864 = vmatprep.subr.bf16.mxu0 0
        %1865 = vmatpush2.bf16.msra.mxu0 0
        %1866 = vmatprep.subr.bf16.mxu0 0
        %1867 = vmatpush2.bf16.msra.mxu0 0
        %1868 = vmatprep.subr.bf16.mxu0 0
        %1869 = vmatpush2.bf16.msra.mxu0 0
        %1870 = vmatprep.subr.bf16.mxu0 0
        %1871 = vmatpush2.bf16.msra.mxu0 0
        %1872 = vmatprep.subr.bf16.mxu0 0
        %1873 = vmatpush2.bf16.msra.mxu0 0
        %1874 = vmatprep.subr.bf16.mxu0 0
        %1875 = vmatpush2.bf16.msra.mxu0 0
        %1876 = vmatprep.subr.bf16.mxu0 0
        %1877 = vmatpush2.bf16.msra.mxu0 0
        %1878 = vmatprep.mubr.bf16.mxu0 0
        %1879 = vmatmul.mubr.bf16.gmra.mxu0 %v1841
        %v1880 = vpop.f32.mrf.mxu0
        %v1881 = vadd.f32 %v1813, %v1880
        %v1882 = vpop.f32.mrf.mxu0
        %v1883 = vadd.f32 %v1813, %v1882
        %v1884 = vpop.f32.mrf.mxu0
        %v1885 = vadd.f32 %v1818, %v1884
        %v1886 = vpop.f32.mrf.mxu0
        %v1887 = vadd.f32 %v1818, %v1886
        %1888 = vmatprep.mubr.bf16.mxu0 0
        %1889 = vmatmul.mubr.bf16.gmra.mxu0 %v1844
        %v1890 = vpop.f32.mrf.mxu0
        %v1891 = vadd.f32 %v1823, %v1890
        %v1892 = vpop.f32.mrf.mxu0
        %v1893 = vadd.f32 %v1823, %v1892
        %v1894 = vpop.f32.mrf.mxu0
        %v1895 = vadd.f32 %v1828, %v1894
        %v1896 = vpop.f32.mrf.mxu0
        %v1897 = vadd.f32 %v1828, %v1896
        %1898 = vdwg.mxu0
        %1899 = vmatprep.subr.mxu0 0.0
        %1900 = vmatpush1.msra.mxu0 0.0
        %1901 = vmatprep.subr.mxu0 0.0
        %1902 = vmatpush1.msra.mxu0 0.0
        %1903 = vmatprep.subr.mxu0 0.0
        %1904 = vmatpush1.msra.mxu0 0.0
        %1905 = vmatprep.subr.mxu0 0.0
        %1906 = vmatpush1.msra.mxu0 0.0
        %1907 = vmatprep.subr.mxu0 0.0
        %1908 = vmatpush1.msra.mxu0 0.0
        %1909 = vmatprep.subr.mxu0 0.0
        %1910 = vmatpush1.msra.mxu0 0.0
        %1911 = vmatprep.subr.mxu0 0.0
        %1912 = vmatpush1.msra.mxu0 0.0
        %1913 = vmatprep.subr.mxu0 0.0
        %1914 = vmatpush1.msra.mxu0 0.0
        %1915 = vmatprep.subr.mxu0 0.0
        %1916 = vmatpush1.msra.mxu0 0.0
        %1917 = vmatprep.subr.mxu0 0.0
        %1918 = vmatpush1.msra.mxu0 0.0
        %1919 = vmatprep.subr.mxu0 0.0
        %1920 = vmatpush1.msra.mxu0 0.0
        %1921 = vmatprep.subr.mxu0 0.0
        %1922 = vmatpush1.msra.mxu0 0.0
        %1923 = vmatprep.subr.mxu0 %v1897
        %1924 = vmatpush1.msra.mxu0 %v1895
        %1925 = vmatprep.subr.mxu0 %v1893
        %1926 = vmatpush1.msra.mxu0 %v1891
        %1927 = vmatprep.subr.mxu0 %v1887
        %1928 = vmatpush1.msra.mxu0 %v1885
        %1929 = vmatprep.subr.mxu0 %v1883
        %1930 = vmatpush1.msra.mxu0 %v1881
        %1931 = vmatprep.subr.mxu0 0.0
        %1932 = vmatpush2.msra.mxu0 0.0
        %1933 = vmatprep.subr.mxu0 0.0
        %1934 = vmatpush2.msra.mxu0 0.0
        %1935 = vmatprep.subr.mxu0 0.0
        %1936 = vmatpush2.msra.mxu0 0.0
        %1937 = vmatprep.subr.mxu0 0.0
        %1938 = vmatpush2.msra.mxu0 0.0
        %1939 = vmatprep.subr.mxu0 0.0
        %1940 = vmatpush2.msra.mxu0 0.0
        %1941 = vmatprep.subr.mxu0 0.0
        %1942 = vmatpush2.msra.mxu0 0.0
        %1943 = vmatprep.subr.mxu0 0.0
        %1944 = vmatpush2.msra.mxu0 0.0
        %1945 = vmatprep.subr.mxu0 0.0
        %1946 = vmatpush2.msra.mxu0 0.0
        %1947 = vmatprep.subr.mxu0 0.0
        %1948 = vmatpush2.msra.mxu0 0.0
        %1949 = vmatprep.subr.mxu0 0.0
        %1950 = vmatpush2.msra.mxu0 0.0
        %1951 = vmatprep.subr.mxu0 0.0
        %1952 = vmatpush2.msra.mxu0 0.0
        %1953 = vmatprep.subr.mxu0 0.0
        %1954 = vmatpush2.msra.mxu0 0.0
        %1955 = vmatprep.subr.mxu0 0.0
        %1956 = vmatpush2.msra.mxu0 0.0
        %1957 = vmatprep.subr.mxu0 0.0
        %1958 = vmatpush2.msra.mxu0 0.0
        %1959 = vmatprep.subr.mxu0 0.0
        %1960 = vmatpush2.msra.mxu0 0.0
        %1961 = vmatprep.subr.mxu0 0.0
        %1962 = vmatpush2.msra.mxu0 0.0
        %1963 = vmatprep.mubr.f32.mxu0 0.0
        %1964 = vmatmul.mubr.f32.gmra.mxu0 %v712
        %v1965 = vpop.f32.mrf.mxu0
        %v1966 = vadd.f32 0.0, %v1965
        %v1967 = vpop.f32.mrf.mxu0
        %v1968 = vadd.f32 0.0, %v1967
        %1969 = vdwg.mxu0
        %1970 = vmatprep.subr.mxu0 0.0
        %1971 = vmatpush1.msra.mxu0 0.0
        %1972 = vmatprep.subr.mxu0 0.0
        %1973 = vmatpush1.msra.mxu0 0.0
        %1974 = vmatprep.subr.mxu0 0.0
        %1975 = vmatpush1.msra.mxu0 0.0
        %1976 = vmatprep.subr.mxu0 0.0
        %1977 = vmatpush1.msra.mxu0 0.0
        %1978 = vmatprep.subr.mxu0 0.0
        %1979 = vmatpush1.msra.mxu0 0.0
        %1980 = vmatprep.subr.mxu0 0.0
        %1981 = vmatpush1.msra.mxu0 0.0
        %1982 = vmatprep.subr.mxu0 0.0
        %1983 = vmatpush1.msra.mxu0 0.0
        %1984 = vmatprep.subr.mxu0 0.0
        %1985 = vmatpush1.msra.mxu0 0.0
        %1986 = vmatprep.subr.mxu0 0.0
        %1987 = vmatpush1.msra.mxu0 0.0
        %1988 = vmatprep.subr.mxu0 0.0
        %1989 = vmatpush1.msra.mxu0 0.0
        %1990 = vmatprep.subr.mxu0 0.0
        %1991 = vmatpush1.msra.mxu0 0.0
        %1992 = vmatprep.subr.mxu0 0.0
        %1993 = vmatpush1.msra.mxu0 0.0
        %1994 = vmatprep.subr.mxu0 0.0
        %1995 = vmatpush1.msra.mxu0 0.0
        %1996 = vmatprep.subr.mxu0 0.0
        %1997 = vmatpush1.msra.mxu0 0.0
        %1998 = vmatprep.subr.mxu0 0.0
        %1999 = vmatpush1.msra.mxu0 0.0
        %2000 = vmatprep.subr.mxu0 %v1968
        %2001 = vmatpush1.msra.mxu0 %v1966
        %2002 = vmatprep.subr.mxu0 0.0
        %2003 = vmatpush2.msra.mxu0 0.0
        %2004 = vmatprep.subr.mxu0 0.0
        %2005 = vmatpush2.msra.mxu0 0.0
        %2006 = vmatprep.subr.mxu0 0.0
        %2007 = vmatpush2.msra.mxu0 0.0
        %2008 = vmatprep.subr.mxu0 0.0
        %2009 = vmatpush2.msra.mxu0 0.0
        %2010 = vmatprep.subr.mxu0 0.0
        %2011 = vmatpush2.msra.mxu0 0.0
        %2012 = vmatprep.subr.mxu0 0.0
        %2013 = vmatpush2.msra.mxu0 0.0
        %2014 = vmatprep.subr.mxu0 0.0
        %2015 = vmatpush2.msra.mxu0 0.0
        %2016 = vmatprep.subr.mxu0 0.0
        %2017 = vmatpush2.msra.mxu0 0.0
        %2018 = vmatprep.subr.mxu0 0.0
        %2019 = vmatpush2.msra.mxu0 0.0
        %2020 = vmatprep.subr.mxu0 0.0
        %2021 = vmatpush2.msra.mxu0 0.0
        %2022 = vmatprep.subr.mxu0 0.0
        %2023 = vmatpush2.msra.mxu0 0.0
        %2024 = vmatprep.subr.mxu0 0.0
        %2025 = vmatpush2.msra.mxu0 0.0
        %2026 = vmatprep.subr.mxu0 0.0
        %2027 = vmatpush2.msra.mxu0 0.0
        %2028 = vmatprep.subr.mxu0 0.0
        %2029 = vmatpush2.msra.mxu0 0.0
        %2030 = vmatprep.subr.mxu0 0.0
        %2031 = vmatpush2.msra.mxu0 0.0
        %2032 = vmatprep.subr.mxu0 0.0
        %2033 = vmatpush2.msra.mxu0 0.0
        %2034 = vmatprep.mubr.f32.mxu0 0.0
        %2035 = vmatmul.mubr.f32.gmra.mxu0 %v787
        %v2036 = vpop.f32.mrf.mxu0
        %v2037 = vadd.f32 0.0, %v2036
        %v2038 = vpop.f32.mrf.mxu0
        %v2039 = vadd.f32 0.0, %v2038
        %2040 = vmatprep.mubr.f32.mxu0 0.0
        %2041 = vmatmul.mubr.f32.gmra.mxu0 %v790
        %v2042 = vpop.f32.mrf.mxu0
        %v2043 = vadd.f32 0.0, %v2042
        %v2044 = vpop.f32.mrf.mxu0
        %v2045 = vadd.f32 0.0, %v2044
        %2046 = vmatprep.mubr.f32.mxu0 0.0
        %2047 = vmatmul.mubr.f32.gmra.mxu0 %v793
        %v2048 = vpop.f32.mrf.mxu0
        %v2049 = vadd.f32 0.0, %v2048
        %v2050 = vpop.f32.mrf.mxu0
        %v2051 = vadd.f32 0.0, %v2050
        %2052 = vmatprep.mubr.f32.mxu0 0.0
        %2053 = vmatmul.mubr.f32.gmra.mxu0 %v796
        %v2054 = vpop.f32.mrf.mxu0
        %v2055 = vadd.f32 0.0, %v2054
        %v2056 = vpop.f32.mrf.mxu0
        %v2057 = vadd.f32 0.0, %v2056
        %2058 = vdwg.mxu0
        %v2059 = vsub.f32 %v1881, %v2037
        %v2060 = vsub.f32 %v1883, %v2039
        %v2061 = vsub.f32 %v1885, %v2043
        %v2062 = vsub.f32 %v1887, %v2045
        %v2063 = vsub.f32 %v1891, %v2049
        %v2064 = vsub.f32 %v1893, %v2051
        %v2065 = vsub.f32 %v1895, %v2055
        %v2066 = vsub.f32 %v1897, %v2057
        %v2067 = vmul.f32 %v2059, %v2059
        %v2068 = vmul.f32 %v2060, %v2060
        %v2069 = vmul.f32 %v2061, %v2061
        %v2070 = vmul.f32 %v2062, %v2062
        %v2071 = vmul.f32 %v2063, %v2063
        %v2072 = vmul.f32 %v2064, %v2064
        %v2073 = vmul.f32 %v2065, %v2065
        %v2074 = vmul.f32 %v2066, %v2066
        %2075 = vmatprep.subr.mxu0 0.0
        %2076 = vmatpush1.msra.mxu0 0.0
        %2077 = vmatprep.subr.mxu0 0.0
        %2078 = vmatpush1.msra.mxu0 0.0
        %2079 = vmatprep.subr.mxu0 0.0
        %2080 = vmatpush1.msra.mxu0 0.0
        %2081 = vmatprep.subr.mxu0 0.0
        %2082 = vmatpush1.msra.mxu0 0.0
        %2083 = vmatprep.subr.mxu0 0.0
        %2084 = vmatpush1.msra.mxu0 0.0
        %2085 = vmatprep.subr.mxu0 0.0
        %2086 = vmatpush1.msra.mxu0 0.0
        %2087 = vmatprep.subr.mxu0 0.0
        %2088 = vmatpush1.msra.mxu0 0.0
        %2089 = vmatprep.subr.mxu0 0.0
        %2090 = vmatpush1.msra.mxu0 0.0
        %2091 = vmatprep.subr.mxu0 0.0
        %2092 = vmatpush1.msra.mxu0 0.0
        %2093 = vmatprep.subr.mxu0 0.0
        %2094 = vmatpush1.msra.mxu0 0.0
        %2095 = vmatprep.subr.mxu0 0.0
        %2096 = vmatpush1.msra.mxu0 0.0
        %2097 = vmatprep.subr.mxu0 0.0
        %2098 = vmatpush1.msra.mxu0 0.0
        %2099 = vmatprep.subr.mxu0 %v2074
        %2100 = vmatpush1.msra.mxu0 %v2073
        %2101 = vmatprep.subr.mxu0 %v2072
        %2102 = vmatpush1.msra.mxu0 %v2071
        %2103 = vmatprep.subr.mxu0 %v2070
        %2104 = vmatpush1.msra.mxu0 %v2069
        %2105 = vmatprep.subr.mxu0 %v2068
        %2106 = vmatpush1.msra.mxu0 %v2067
        %2107 = vmatprep.subr.mxu0 0.0
        %2108 = vmatpush2.msra.mxu0 0.0
        %2109 = vmatprep.subr.mxu0 0.0
        %2110 = vmatpush2.msra.mxu0 0.0
        %2111 = vmatprep.subr.mxu0 0.0
        %2112 = vmatpush2.msra.mxu0 0.0
        %2113 = vmatprep.subr.mxu0 0.0
        %2114 = vmatpush2.msra.mxu0 0.0
        %2115 = vmatprep.subr.mxu0 0.0
        %2116 = vmatpush2.msra.mxu0 0.0
        %2117 = vmatprep.subr.mxu0 0.0
        %2118 = vmatpush2.msra.mxu0 0.0
        %2119 = vmatprep.subr.mxu0 0.0
        %2120 = vmatpush2.msra.mxu0 0.0
        %2121 = vmatprep.subr.mxu0 0.0
        %2122 = vmatpush2.msra.mxu0 0.0
        %2123 = vmatprep.subr.mxu0 0.0
        %2124 = vmatpush2.msra.mxu0 0.0
        %2125 = vmatprep.subr.mxu0 0.0
        %2126 = vmatpush2.msra.mxu0 0.0
        %2127 = vmatprep.subr.mxu0 0.0
        %2128 = vmatpush2.msra.mxu0 0.0
        %2129 = vmatprep.subr.mxu0 0.0
        %2130 = vmatpush2.msra.mxu0 0.0
        %2131 = vmatprep.subr.mxu0 0.0
        %2132 = vmatpush2.msra.mxu0 0.0
        %2133 = vmatprep.subr.mxu0 0.0
        %2134 = vmatpush2.msra.mxu0 0.0
        %2135 = vmatprep.subr.mxu0 0.0
        %2136 = vmatpush2.msra.mxu0 0.0
        %2137 = vmatprep.subr.mxu0 0.0
        %2138 = vmatpush2.msra.mxu0 0.0
        %2139 = vmatprep.mubr.f32.mxu0 0.0
        %2140 = vmatmul.mubr.f32.gmra.mxu0 %v712
        %v2141 = vpop.f32.mrf.mxu0
        %v2142 = vadd.f32 1e-05, %v2141
        %v2143 = vpop.f32.mrf.mxu0
        %v2144 = vadd.f32 1e-05, %v2143
        %2145 = vdwg.mxu0
        %v2146 = vrsqrt.pop %v2142
        %v2147 = vrsqrt.pop %v2144
        %2148 = vmatprep.subr.mxu0 0.0
        %2149 = vmatpush1.msra.mxu0 0.0
        %2150 = vmatprep.subr.mxu0 0.0
        %2151 = vmatpush1.msra.mxu0 0.0
        %2152 = vmatprep.subr.mxu0 0.0
        %2153 = vmatpush1.msra.mxu0 0.0
        %2154 = vmatprep.subr.mxu0 0.0
        %2155 = vmatpush1.msra.mxu0 0.0
        %2156 = vmatprep.subr.mxu0 0.0
        %2157 = vmatpush1.msra.mxu0 0.0
        %2158 = vmatprep.subr.mxu0 0.0
        %2159 = vmatpush1.msra.mxu0 0.0
        %2160 = vmatprep.subr.mxu0 0.0
        %2161 = vmatpush1.msra.mxu0 0.0
        %2162 = vmatprep.subr.mxu0 0.0
        %2163 = vmatpush1.msra.mxu0 0.0
        %2164 = vmatprep.subr.mxu0 0.0
        %2165 = vmatpush1.msra.mxu0 0.0
        %2166 = vmatprep.subr.mxu0 0.0
        %2167 = vmatpush1.msra.mxu0 0.0
        %2168 = vmatprep.subr.mxu0 0.0
        %2169 = vmatpush1.msra.mxu0 0.0
        %2170 = vmatprep.subr.mxu0 0.0
        %2171 = vmatpush1.msra.mxu0 0.0
        %2172 = vmatprep.subr.mxu0 0.0
        %2173 = vmatpush1.msra.mxu0 0.0
        %2174 = vmatprep.subr.mxu0 0.0
        %2175 = vmatpush1.msra.mxu0 0.0
        %2176 = vmatprep.subr.mxu0 0.0
        %2177 = vmatpush1.msra.mxu0 0.0
        %2178 = vmatprep.subr.mxu0 %v2147
        %2179 = vmatpush1.msra.mxu0 %v2146
        %2180 = vmatprep.subr.mxu0 0.0
        %2181 = vmatpush2.msra.mxu0 0.0
        %2182 = vmatprep.subr.mxu0 0.0
        %2183 = vmatpush2.msra.mxu0 0.0
        %2184 = vmatprep.subr.mxu0 0.0
        %2185 = vmatpush2.msra.mxu0 0.0
        %2186 = vmatprep.subr.mxu0 0.0
        %2187 = vmatpush2.msra.mxu0 0.0
        %2188 = vmatprep.subr.mxu0 0.0
        %2189 = vmatpush2.msra.mxu0 0.0
        %2190 = vmatprep.subr.mxu0 0.0
        %2191 = vmatpush2.msra.mxu0 0.0
        %2192 = vmatprep.subr.mxu0 0.0
        %2193 = vmatpush2.msra.mxu0 0.0
        %2194 = vmatprep.subr.mxu0 0.0
        %2195 = vmatpush2.msra.mxu0 0.0
        %2196 = vmatprep.subr.mxu0 0.0
        %2197 = vmatpush2.msra.mxu0 0.0
        %2198 = vmatprep.subr.mxu0 0.0
        %2199 = vmatpush2.msra.mxu0 0.0
        %2200 = vmatprep.subr.mxu0 0.0
        %2201 = vmatpush2.msra.mxu0 0.0
        %2202 = vmatprep.subr.mxu0 0.0
        %2203 = vmatpush2.msra.mxu0 0.0
        %2204 = vmatprep.subr.mxu0 0.0
        %2205 = vmatpush2.msra.mxu0 0.0
        %2206 = vmatprep.subr.mxu0 0.0
        %2207 = vmatpush2.msra.mxu0 0.0
        %2208 = vmatprep.subr.mxu0 0.0
        %2209 = vmatpush2.msra.mxu0 0.0
        %2210 = vmatprep.subr.mxu0 0.0
        %2211 = vmatpush2.msra.mxu0 0.0
        %2212 = vmatprep.mubr.f32.mxu0 0.0
        %2213 = vmatmul.mubr.f32.gmra.mxu0 %v787
        %v2214 = vpop.f32.mrf.mxu0
        %v2215 = vadd.f32 0.0, %v2214
        %v2216 = vpop.f32.mrf.mxu0
        %v2217 = vadd.f32 0.0, %v2216
        %2218 = vmatprep.mubr.f32.mxu0 0.0
        %2219 = vmatmul.mubr.f32.gmra.mxu0 %v790
        %v2220 = vpop.f32.mrf.mxu0
        %v2221 = vadd.f32 0.0, %v2220
        %v2222 = vpop.f32.mrf.mxu0
        %v2223 = vadd.f32 0.0, %v2222
        %2224 = vmatprep.mubr.f32.mxu0 0.0
        %2225 = vmatmul.mubr.f32.gmra.mxu0 %v793
        %v2226 = vpop.f32.mrf.mxu0
        %v2227 = vadd.f32 0.0, %v2226
        %v2228 = vpop.f32.mrf.mxu0
        %v2229 = vadd.f32 0.0, %v2228
        %2230 = vmatprep.mubr.f32.mxu0 0.0
        %2231 = vmatmul.mubr.f32.gmra.mxu0 %v796
        %v2232 = vpop.f32.mrf.mxu0
        %v2233 = vadd.f32 0.0, %v2232
        %v2234 = vpop.f32.mrf.mxu0
        %v2235 = vadd.f32 0.0, %v2234
        %2236 = vdwg.mxu0
        %s2237 = scalar_lea.vmem %s530, 128 [#allocation3]
        %v2238 = vld [vmem:[%s2237] sm:$0xff]
        %v2239 = vld [vmem:[%s2237 + $0x8] sm:$0xff]
        %v2240 = vld [vmem:[%s2237 + $0x10] sm:$0xff]
        %v2241 = vld [vmem:[%s2237 + $0x18] sm:$0xff]
        %v2242 = vld [vmem:[%s2237 + $0x20] sm:$0xff]
        %v2243 = vld [vmem:[%s2237 + $0x28] sm:$0xff]
        %v2244 = vld [vmem:[%s2237 + $0x30] sm:$0xff]
        %v2245 = vld [vmem:[%s2237 + $0x38] sm:$0xff]
        %v2246 = vunpack.c.l.bf16 %v2238
        %v2247 = vunpack.c.h.bf16 %v2238
        %v2248 = vunpack.c.l.bf16 %v2239
        %v2249 = vunpack.c.h.bf16 %v2239
        %v2250 = vunpack.c.l.bf16 %v2240
        %v2251 = vunpack.c.h.bf16 %v2240
        %v2252 = vunpack.c.l.bf16 %v2241
        %v2253 = vunpack.c.h.bf16 %v2241
        %v2254 = vunpack.c.l.bf16 %v2242
        %v2255 = vunpack.c.h.bf16 %v2242
        %v2256 = vunpack.c.l.bf16 %v2243
        %v2257 = vunpack.c.h.bf16 %v2243
        %v2258 = vunpack.c.l.bf16 %v2244
        %v2259 = vunpack.c.h.bf16 %v2244
        %v2260 = vunpack.c.l.bf16 %v2245
        %v2261 = vunpack.c.h.bf16 %v2245
        %v2262 = vadd.f32 %v2246, 1.0
        %v2263 = vadd.f32 %v2247, 1.0
        %v2264 = vadd.f32 %v2248, 1.0
        %v2265 = vadd.f32 %v2249, 1.0
        %v2266 = vadd.f32 %v2250, 1.0
        %v2267 = vadd.f32 %v2251, 1.0
        %v2268 = vadd.f32 %v2252, 1.0
        %v2269 = vadd.f32 %v2253, 1.0
        %s2270 = scalar_lea.vmem %s4, 64
        %v2271 = vld [vmem:[%s2270] sm:$0xff]
        %v2272 = vld [vmem:[%s2270 + $0x8] sm:$0xff]
        %v2273 = vld [vmem:[%s2270 + $0x10] sm:$0xff]
        %v2274 = vld [vmem:[%s2270 + $0x18] sm:$0xff]
        %2276 = vset.pattern.permute.xlu0 0
        %2277 = vperm.xlu0 %2276, %v2271
        %v2278 = vpop.permute.xlu0 %2277
        %2281 = vset.pattern.permute.xlu0 0
        %2282 = vperm.xlu0 %2281, %v2272
        %v2283 = vpop.permute.xlu0 %2282
        %2286 = vset.pattern.permute.xlu0 0
        %2287 = vperm.xlu0 %2286, %v2273
        %v2288 = vpop.permute.xlu0 %2287
        %2291 = vset.pattern.permute.xlu0 0
        %2292 = vperm.xlu0 %2291, %v2274
        %v2293 = vpop.permute.xlu0 %2292
        %v2295 = vmul.f32 %v2215, %v2278
        %v2296 = vmul.f32 %v2217, %v2278
        %v2297 = vmul.f32 %v2221, %v2283
        %v2298 = vmul.f32 %v2223, %v2283
        %v2299 = vmul.f32 %v2227, %v2288
        %v2300 = vmul.f32 %v2229, %v2288
        %v2301 = vmul.f32 %v2233, %v2293
        %v2302 = vmul.f32 %v2235, %v2293
        %v2303 = vmul.f32 %v2295, %v2262
        %v2304 = vmul.f32 %v2296, %v2263
        %v2305 = vmul.f32 %v2297, %v2264
        %v2306 = vmul.f32 %v2298, %v2265
        %v2307 = vmul.f32 %v2299, %v2266
        %v2308 = vmul.f32 %v2300, %v2267
        %v2309 = vmul.f32 %v2301, %v2268
        %v2310 = vmul.f32 %v2302, %v2269
        %s2311 = scalar_lea.vmem %s5, 64
        %v2312 = vld [vmem:[%s2311] sm:$0xff]
        %v2313 = vld [vmem:[%s2311 + $0x8] sm:$0xff]
        %v2314 = vld [vmem:[%s2311 + $0x10] sm:$0xff]
        %v2315 = vld [vmem:[%s2311 + $0x18] sm:$0xff]
        %2317 = vset.pattern.permute.xlu0 0
        %2318 = vperm.xlu0 %2317, %v2312
        %v2319 = vpop.permute.xlu0 %2318
        %2322 = vset.pattern.permute.xlu0 0
        %2323 = vperm.xlu0 %2322, %v2313
        %v2324 = vpop.permute.xlu0 %2323
        %2327 = vset.pattern.permute.xlu0 0
        %2328 = vperm.xlu0 %2327, %v2314
        %v2329 = vpop.permute.xlu0 %2328
        %2332 = vset.pattern.permute.xlu0 0
        %2333 = vperm.xlu0 %2332, %v2315
        %v2334 = vpop.permute.xlu0 %2333
        %v2336 = vmul.f32 %v2319, %v2262
        %v2337 = vmul.f32 %v2319, %v2263
        %v2338 = vmul.f32 %v2324, %v2264
        %v2339 = vmul.f32 %v2324, %v2265
        %v2340 = vmul.f32 %v2329, %v2266
        %v2341 = vmul.f32 %v2329, %v2267
        %v2342 = vmul.f32 %v2334, %v2268
        %v2343 = vmul.f32 %v2334, %v2269
        %v2344 = vadd.f32 %v2336, %v2254
        %v2345 = vadd.f32 %v2337, %v2255
        %v2346 = vadd.f32 %v2338, %v2256
        %v2347 = vadd.f32 %v2339, %v2257
        %v2348 = vadd.f32 %v2340, %v2258
        %v2349 = vadd.f32 %v2341, %v2259
        %v2350 = vadd.f32 %v2342, %v2260
        %v2351 = vadd.f32 %v2343, %v2261
        %v2352 = vmul.f32 %v2059, %v2303
        %v2353 = vmul.f32 %v2060, %v2304
        %v2354 = vmul.f32 %v2061, %v2305
        %v2355 = vmul.f32 %v2062, %v2306
        %v2356 = vmul.f32 %v2063, %v2307
        %v2357 = vmul.f32 %v2064, %v2308
        %v2358 = vmul.f32 %v2065, %v2309
        %v2359 = vmul.f32 %v2066, %v2310
        %v2360 = vadd.f32 %v2352, %v2344
        %v2361 = vadd.f32 %v2353, %v2345
        %v2362 = vadd.f32 %v2354, %v2346
        %v2363 = vadd.f32 %v2355, %v2347
        %v2364 = vadd.f32 %v2356, %v2348
        %v2365 = vadd.f32 %v2357, %v2349
        %v2366 = vadd.f32 %v2358, %v2350
        %v2367 = vadd.f32 %v2359, %v2351
        %v2368 = vmul.f32 %v2360, 0.2
        %v2369 = vmul.f32 %v2361, 0.2
        %v2370 = vmul.f32 %v2362, 0.2
        %v2371 = vmul.f32 %v2363, 0.2
        %v2372 = vmul.f32 %v2364, 0.2
        %v2373 = vmul.f32 %v2365, 0.2
        %v2374 = vmul.f32 %v2366, 0.2
        %v2375 = vmul.f32 %v2367, 0.2
        %v2376 = vmax.f32 %v2360, %v2368
        %v2377 = vmax.f32 %v2361, %v2369
        %v2378 = vmax.f32 %v2362, %v2370
        %v2379 = vmax.f32 %v2363, %v2371
        %v2380 = vmax.f32 %v2364, %v2372
        %v2381 = vmax.f32 %v2365, %v2373
        %v2382 = vmax.f32 %v2366, %v2374
        %v2383 = vmax.f32 %v2367, %v2375
        %s2384 = scalar_lea.vmem %s2, 32
        %v2385 = vld [vmem:[%s2384] sm:$0xf]
        %v2386 = vld [vmem:[%s2384 + $0x4] sm:$0xf]
        %v2387 = vld [vmem:[%s2384 + $0x8] sm:$0xf]
        %v2388 = vld [vmem:[%s2384 + $0xc] sm:$0xf]
        %v2389 = vpack.c.bf16 %v2378, %v2376
        %v2390 = vpack.c.bf16 %v2379, %v2377
        %v2391 = vpack.c.bf16 %v2382, %v2380
        %v2392 = vpack.c.bf16 %v2383, %v2381
        %s2393 = scalar_lea.vmem %s3, 96
        %v2394 = vld [vmem:[%s2393] sm:$0xff]
        %v2395 = vld [vmem:[%s2393 + $0x8] sm:$0xff]
        %v2396 = vld [vmem:[%s2393 + $0x10] sm:$0xff]
        %v2397 = vld [vmem:[%s2393 + $0x18] sm:$0xff]
        %2399 = vset.pattern.permute.xlu0 0
        %2400 = vperm.xlu0 %2399, %v2394
        %v2401 = vpop.permute.xlu0 %2400
        %2404 = vset.pattern.permute.xlu0 0
        %2405 = vperm.xlu0 %2404, %v2395
        %v2406 = vpop.permute.xlu0 %2405
        %2409 = vset.pattern.permute.xlu0 0
        %2410 = vperm.xlu0 %2409, %v2396
        %v2411 = vpop.permute.xlu0 %2410
        %2414 = vset.pattern.permute.xlu0 0
        %2415 = vperm.xlu0 %2414, %v2397
        %v2416 = vpop.permute.xlu0 %2415
        %v2422 = vunpack.c.l.b16 %v2385
        %v2423 = vunpack.c.l.b16 %v2386
        %v2424 = vunpack.c.l.b16 %v2387
        %v2425 = vunpack.c.l.b16 %v2388
        %v2426 = vpack.c.b16 %v2423, %v2422
        %v2427 = vpack.c.b16 %v2425, %v2424
        %v2429 = vsel %vm710, %v2426, 0
        %v2432 = vsel %vm710, %v2427, 0
        %2434 = vmatprep.subr.bf16.mxu0 0
        %2435 = vmatpush1.bf16.msra.mxu0 0
        %2436 = vmatprep.subr.bf16.mxu0 0
        %2437 = vmatpush1.bf16.msra.mxu0 0
        %2438 = vmatprep.subr.bf16.mxu0 0
        %2439 = vmatpush1.bf16.msra.mxu0 0
        %2440 = vmatprep.subr.bf16.mxu0 0
        %2441 = vmatpush1.bf16.msra.mxu0 0
        %2442 = vmatprep.subr.bf16.mxu0 0
        %2443 = vmatpush1.bf16.msra.mxu0 0
        %2444 = vmatprep.subr.bf16.mxu0 0
        %2445 = vmatpush1.bf16.msra.mxu0 0
        %2446 = vmatprep.subr.bf16.mxu0 %v2392
        %2447 = vmatpush1.bf16.msra.mxu0 %v2391
        %2448 = vmatprep.subr.bf16.mxu0 %v2390
        %2449 = vmatpush1.bf16.msra.mxu0 %v2389
        %2450 = vmatprep.subr.bf16.mxu0 0
        %2451 = vmatpush2.bf16.msra.mxu0 0
        %2452 = vmatprep.subr.bf16.mxu0 0
        %2453 = vmatpush2.bf16.msra.mxu0 0
        %2454 = vmatprep.subr.bf16.mxu0 0
        %2455 = vmatpush2.bf16.msra.mxu0 0
        %2456 = vmatprep.subr.bf16.mxu0 0
        %2457 = vmatpush2.bf16.msra.mxu0 0
        %2458 = vmatprep.subr.bf16.mxu0 0
        %2459 = vmatpush2.bf16.msra.mxu0 0
        %2460 = vmatprep.subr.bf16.mxu0 0
        %2461 = vmatpush2.bf16.msra.mxu0 0
        %2462 = vmatprep.subr.bf16.mxu0 0
        %2463 = vmatpush2.bf16.msra.mxu0 0
        %2464 = vmatprep.subr.bf16.mxu0 0
        %2465 = vmatpush2.bf16.msra.mxu0 0
        %2466 = vmatprep.mubr.bf16.mxu0 0
        %2467 = vmatmul.mubr.bf16.gmra.mxu0 %v2429
        %v2468 = vpop.f32.mrf.mxu0
        %v2469 = vadd.f32 %v2401, %v2468
        %v2470 = vpop.f32.mrf.mxu0
        %v2471 = vadd.f32 %v2401, %v2470
        %v2472 = vpop.f32.mrf.mxu0
        %v2473 = vadd.f32 %v2406, %v2472
        %v2474 = vpop.f32.mrf.mxu0
        %v2475 = vadd.f32 %v2406, %v2474
        %2476 = vmatprep.mubr.bf16.mxu0 0
        %2477 = vmatmul.mubr.bf16.gmra.mxu0 %v2432
        %v2478 = vpop.f32.mrf.mxu0
        %v2479 = vadd.f32 %v2411, %v2478
        %v2480 = vpop.f32.mrf.mxu0
        %v2481 = vadd.f32 %v2411, %v2480
        %v2482 = vpop.f32.mrf.mxu0
        %v2483 = vadd.f32 %v2416, %v2482
        %v2484 = vpop.f32.mrf.mxu0
        %v2485 = vadd.f32 %v2416, %v2484
        %2486 = vdwg.mxu0
        %2487 = vmatprep.subr.mxu0 0.0
        %2488 = vmatpush1.msra.mxu0 0.0
        %2489 = vmatprep.subr.mxu0 0.0
        %2490 = vmatpush1.msra.mxu0 0.0
        %2491 = vmatprep.subr.mxu0 0.0
        %2492 = vmatpush1.msra.mxu0 0.0
        %2493 = vmatprep.subr.mxu0 0.0
        %2494 = vmatpush1.msra.mxu0 0.0
        %2495 = vmatprep.subr.mxu0 0.0
        %2496 = vmatpush1.msra.mxu0 0.0
        %2497 = vmatprep.subr.mxu0 0.0
        %2498 = vmatpush1.msra.mxu0 0.0
        %2499 = vmatprep.subr.mxu0 0.0
        %2500 = vmatpush1.msra.mxu0 0.0
        %2501 = vmatprep.subr.mxu0 0.0
        %2502 = vmatpush1.msra.mxu0 0.0
        %2503 = vmatprep.subr.mxu0 0.0
        %2504 = vmatpush1.msra.mxu0 0.0
        %2505 = vmatprep.subr.mxu0 0.0
        %2506 = vmatpush1.msra.mxu0 0.0
        %2507 = vmatprep.subr.mxu0 0.0
        %2508 = vmatpush1.msra.mxu0 0.0
        %2509 = vmatprep.subr.mxu0 0.0
        %2510 = vmatpush1.msra.mxu0 0.0
        %2511 = vmatprep.subr.mxu0 %v2485
        %2512 = vmatpush1.msra.mxu0 %v2483
        %2513 = vmatprep.subr.mxu0 %v2481
        %2514 = vmatpush1.msra.mxu0 %v2479
        %2515 = vmatprep.subr.mxu0 %v2475
        %2516 = vmatpush1.msra.mxu0 %v2473
        %2517 = vmatprep.subr.mxu0 %v2471
        %2518 = vmatpush1.msra.mxu0 %v2469
        %2519 = vmatprep.subr.mxu0 0.0
        %2520 = vmatpush2.msra.mxu0 0.0
        %2521 = vmatprep.subr.mxu0 0.0
        %2522 = vmatpush2.msra.mxu0 0.0
        %2523 = vmatprep.subr.mxu0 0.0
        %2524 = vmatpush2.msra.mxu0 0.0
        %2525 = vmatprep.subr.mxu0 0.0
        %2526 = vmatpush2.msra.mxu0 0.0
        %2527 = vmatprep.subr.mxu0 0.0
        %2528 = vmatpush2.msra.mxu0 0.0
        %2529 = vmatprep.subr.mxu0 0.0
        %2530 = vmatpush2.msra.mxu0 0.0
        %2531 = vmatprep.subr.mxu0 0.0
        %2532 = vmatpush2.msra.mxu0 0.0
        %2533 = vmatprep.subr.mxu0 0.0
        %2534 = vmatpush2.msra.mxu0 0.0
        %2535 = vmatprep.subr.mxu0 0.0
        %2536 = vmatpush2.msra.mxu0 0.0
        %2537 = vmatprep.subr.mxu0 0.0
        %2538 = vmatpush2.msra.mxu0 0.0
        %2539 = vmatprep.subr.mxu0 0.0
        %2540 = vmatpush2.msra.mxu0 0.0
        %2541 = vmatprep.subr.mxu0 0.0
        %2542 = vmatpush2.msra.mxu0 0.0
        %2543 = vmatprep.subr.mxu0 0.0
        %2544 = vmatpush2.msra.mxu0 0.0
        %2545 = vmatprep.subr.mxu0 0.0
        %2546 = vmatpush2.msra.mxu0 0.0
        %2547 = vmatprep.subr.mxu0 0.0
        %2548 = vmatpush2.msra.mxu0 0.0
        %2549 = vmatprep.subr.mxu0 0.0
        %2550 = vmatpush2.msra.mxu0 0.0
        %2551 = vmatprep.mubr.f32.mxu0 0.0
        %2552 = vmatmul.mubr.f32.gmra.mxu0 %v712
        %v2553 = vpop.f32.mrf.mxu0
        %v2554 = vadd.f32 0.0, %v2553
        %v2555 = vpop.f32.mrf.mxu0
        %v2556 = vadd.f32 0.0, %v2555
        %2557 = vdwg.mxu0
        %2558 = vmatprep.subr.mxu0 0.0
        %2559 = vmatpush1.msra.mxu0 0.0
        %2560 = vmatprep.subr.mxu0 0.0
        %2561 = vmatpush1.msra.mxu0 0.0
        %2562 = vmatprep.subr.mxu0 0.0
        %2563 = vmatpush1.msra.mxu0 0.0
        %2564 = vmatprep.subr.mxu0 0.0
        %2565 = vmatpush1.msra.mxu0 0.0
        %2566 = vmatprep.subr.mxu0 0.0
        %2567 = vmatpush1.msra.mxu0 0.0
        %2568 = vmatprep.subr.mxu0 0.0
        %2569 = vmatpush1.msra.mxu0 0.0
        %2570 = vmatprep.subr.mxu0 0.0
        %2571 = vmatpush1.msra.mxu0 0.0
        %2572 = vmatprep.subr.mxu0 0.0
        %2573 = vmatpush1.msra.mxu0 0.0
        %2574 = vmatprep.subr.mxu0 0.0
        %2575 = vmatpush1.msra.mxu0 0.0
        %2576 = vmatprep.subr.mxu0 0.0
        %2577 = vmatpush1.msra.mxu0 0.0
        %2578 = vmatprep.subr.mxu0 0.0
        %2579 = vmatpush1.msra.mxu0 0.0
        %2580 = vmatprep.subr.mxu0 0.0
        %2581 = vmatpush1.msra.mxu0 0.0
        %2582 = vmatprep.subr.mxu0 0.0
        %2583 = vmatpush1.msra.mxu0 0.0
        %2584 = vmatprep.subr.mxu0 0.0
        %2585 = vmatpush1.msra.mxu0 0.0
        %2586 = vmatprep.subr.mxu0 0.0
        %2587 = vmatpush1.msra.mxu0 0.0
        %2588 = vmatprep.subr.mxu0 %v2556
        %2589 = vmatpush1.msra.mxu0 %v2554
        %2590 = vmatprep.subr.mxu0 0.0
        %2591 = vmatpush2.msra.mxu0 0.0
        %2592 = vmatprep.subr.mxu0 0.0
        %2593 = vmatpush2.msra.mxu0 0.0
        %2594 = vmatprep.subr.mxu0 0.0
        %2595 = vmatpush2.msra.mxu0 0.0
        %2596 = vmatprep.subr.mxu0 0.0
        %2597 = vmatpush2.msra.mxu0 0.0
        %2598 = vmatprep.subr.mxu0 0.0
        %2599 = vmatpush2.msra.mxu0 0.0
        %2600 = vmatprep.subr.mxu0 0.0
        %2601 = vmatpush2.msra.mxu0 0.0
        %2602 = vmatprep.subr.mxu0 0.0
        %2603 = vmatpush2.msra.mxu0 0.0
        %2604 = vmatprep.subr.mxu0 0.0
        %2605 = vmatpush2.msra.mxu0 0.0
        %2606 = vmatprep.subr.mxu0 0.0
        %2607 = vmatpush2.msra.mxu0 0.0
        %2608 = vmatprep.subr.mxu0 0.0
        %2609 = vmatpush2.msra.mxu0 0.0
        %2610 = vmatprep.subr.mxu0 0.0
        %2611 = vmatpush2.msra.mxu0 0.0
        %2612 = vmatprep.subr.mxu0 0.0
        %2613 = vmatpush2.msra.mxu0 0.0
        %2614 = vmatprep.subr.mxu0 0.0
        %2615 = vmatpush2.msra.mxu0 0.0
        %2616 = vmatprep.subr.mxu0 0.0
        %2617 = vmatpush2.msra.mxu0 0.0
        %2618 = vmatprep.subr.mxu0 0.0
        %2619 = vmatpush2.msra.mxu0 0.0
        %2620 = vmatprep.subr.mxu0 0.0
        %2621 = vmatpush2.msra.mxu0 0.0
        %2622 = vmatprep.mubr.f32.mxu0 0.0
        %2623 = vmatmul.mubr.f32.gmra.mxu0 %v787
        %v2624 = vpop.f32.mrf.mxu0
        %v2625 = vadd.f32 0.0, %v2624
        %v2626 = vpop.f32.mrf.mxu0
        %v2627 = vadd.f32 0.0, %v2626
        %2628 = vmatprep.mubr.f32.mxu0 0.0
        %2629 = vmatmul.mubr.f32.gmra.mxu0 %v790
        %v2630 = vpop.f32.mrf.mxu0
        %v2631 = vadd.f32 0.0, %v2630
        %v2632 = vpop.f32.mrf.mxu0
        %v2633 = vadd.f32 0.0, %v2632
        %2634 = vmatprep.mubr.f32.mxu0 0.0
        %2635 = vmatmul.mubr.f32.gmra.mxu0 %v793
        %v2636 = vpop.f32.mrf.mxu0
        %v2637 = vadd.f32 0.0, %v2636
        %v2638 = vpop.f32.mrf.mxu0
        %v2639 = vadd.f32 0.0, %v2638
        %2640 = vmatprep.mubr.f32.mxu0 0.0
        %2641 = vmatmul.mubr.f32.gmra.mxu0 %v796
        %v2642 = vpop.f32.mrf.mxu0
        %v2643 = vadd.f32 0.0, %v2642
        %v2644 = vpop.f32.mrf.mxu0
        %v2645 = vadd.f32 0.0, %v2644
        %2646 = vdwg.mxu0
        %v2647 = vsub.f32 %v2469, %v2625
        %v2648 = vsub.f32 %v2471, %v2627
        %v2649 = vsub.f32 %v2473, %v2631
        %v2650 = vsub.f32 %v2475, %v2633
        %v2651 = vsub.f32 %v2479, %v2637
        %v2652 = vsub.f32 %v2481, %v2639
        %v2653 = vsub.f32 %v2483, %v2643
        %v2654 = vsub.f32 %v2485, %v2645
        %v2655 = vmul.f32 %v2647, %v2647
        %v2656 = vmul.f32 %v2648, %v2648
        %v2657 = vmul.f32 %v2649, %v2649
        %v2658 = vmul.f32 %v2650, %v2650
        %v2659 = vmul.f32 %v2651, %v2651
        %v2660 = vmul.f32 %v2652, %v2652
        %v2661 = vmul.f32 %v2653, %v2653
        %v2662 = vmul.f32 %v2654, %v2654
        %2663 = vmatprep.subr.mxu0 0.0
        %2664 = vmatpush1.msra.mxu0 0.0
        %2665 = vmatprep.subr.mxu0 0.0
        %2666 = vmatpush1.msra.mxu0 0.0
        %2667 = vmatprep.subr.mxu0 0.0
        %2668 = vmatpush1.msra.mxu0 0.0
        %2669 = vmatprep.subr.mxu0 0.0
        %2670 = vmatpush1.msra.mxu0 0.0
        %2671 = vmatprep.subr.mxu0 0.0
        %2672 = vmatpush1.msra.mxu0 0.0
        %2673 = vmatprep.subr.mxu0 0.0
        %2674 = vmatpush1.msra.mxu0 0.0
        %2675 = vmatprep.subr.mxu0 0.0
        %2676 = vmatpush1.msra.mxu0 0.0
        %2677 = vmatprep.subr.mxu0 0.0
        %2678 = vmatpush1.msra.mxu0 0.0
        %2679 = vmatprep.subr.mxu0 0.0
        %2680 = vmatpush1.msra.mxu0 0.0
        %2681 = vmatprep.subr.mxu0 0.0
        %2682 = vmatpush1.msra.mxu0 0.0
        %2683 = vmatprep.subr.mxu0 0.0
        %2684 = vmatpush1.msra.mxu0 0.0
        %2685 = vmatprep.subr.mxu0 0.0
        %2686 = vmatpush1.msra.mxu0 0.0
        %2687 = vmatprep.subr.mxu0 %v2662
        %2688 = vmatpush1.msra.mxu0 %v2661
        %2689 = vmatprep.subr.mxu0 %v2660
        %2690 = vmatpush1.msra.mxu0 %v2659
        %2691 = vmatprep.subr.mxu0 %v2658
        %2692 = vmatpush1.msra.mxu0 %v2657
        %2693 = vmatprep.subr.mxu0 %v2656
        %2694 = vmatpush1.msra.mxu0 %v2655
        %2695 = vmatprep.subr.mxu0 0.0
        %2696 = vmatpush2.msra.mxu0 0.0
        %2697 = vmatprep.subr.mxu0 0.0
        %2698 = vmatpush2.msra.mxu0 0.0
        %2699 = vmatprep.subr.mxu0 0.0
        %2700 = vmatpush2.msra.mxu0 0.0
        %2701 = vmatprep.subr.mxu0 0.0
        %2702 = vmatpush2.msra.mxu0 0.0
        %2703 = vmatprep.subr.mxu0 0.0
        %2704 = vmatpush2.msra.mxu0 0.0
        %2705 = vmatprep.subr.mxu0 0.0
        %2706 = vmatpush2.msra.mxu0 0.0
        %2707 = vmatprep.subr.mxu0 0.0
        %2708 = vmatpush2.msra.mxu0 0.0
        %2709 = vmatprep.subr.mxu0 0.0
        %2710 = vmatpush2.msra.mxu0 0.0
        %2711 = vmatprep.subr.mxu0 0.0
        %2712 = vmatpush2.msra.mxu0 0.0
        %2713 = vmatprep.subr.mxu0 0.0
        %2714 = vmatpush2.msra.mxu0 0.0
        %2715 = vmatprep.subr.mxu0 0.0
        %2716 = vmatpush2.msra.mxu0 0.0
        %2717 = vmatprep.subr.mxu0 0.0
        %2718 = vmatpush2.msra.mxu0 0.0
        %2719 = vmatprep.subr.mxu0 0.0
        %2720 = vmatpush2.msra.mxu0 0.0
        %2721 = vmatprep.subr.mxu0 0.0
        %2722 = vmatpush2.msra.mxu0 0.0
        %2723 = vmatprep.subr.mxu0 0.0
        %2724 = vmatpush2.msra.mxu0 0.0
        %2725 = vmatprep.subr.mxu0 0.0
        %2726 = vmatpush2.msra.mxu0 0.0
        %2727 = vmatprep.mubr.f32.mxu0 0.0
        %2728 = vmatmul.mubr.f32.gmra.mxu0 %v712
        %v2729 = vpop.f32.mrf.mxu0
        %v2730 = vadd.f32 1e-05, %v2729
        %v2731 = vpop.f32.mrf.mxu0
        %v2732 = vadd.f32 1e-05, %v2731
        %2733 = vdwg.mxu0
        %v2734 = vrsqrt.pop %v2730
        %v2735 = vrsqrt.pop %v2732
        %2736 = vmatprep.subr.mxu0 0.0
        %2737 = vmatpush1.msra.mxu0 0.0
        %2738 = vmatprep.subr.mxu0 0.0
        %2739 = vmatpush1.msra.mxu0 0.0
        %2740 = vmatprep.subr.mxu0 0.0
        %2741 = vmatpush1.msra.mxu0 0.0
        %2742 = vmatprep.subr.mxu0 0.0
        %2743 = vmatpush1.msra.mxu0 0.0
        %2744 = vmatprep.subr.mxu0 0.0
        %2745 = vmatpush1.msra.mxu0 0.0
        %2746 = vmatprep.subr.mxu0 0.0
        %2747 = vmatpush1.msra.mxu0 0.0
        %2748 = vmatprep.subr.mxu0 0.0
        %2749 = vmatpush1.msra.mxu0 0.0
        %2750 = vmatprep.subr.mxu0 0.0
        %2751 = vmatpush1.msra.mxu0 0.0
        %2752 = vmatprep.subr.mxu0 0.0
        %2753 = vmatpush1.msra.mxu0 0.0
        %2754 = vmatprep.subr.mxu0 0.0
        %2755 = vmatpush1.msra.mxu0 0.0
        %2756 = vmatprep.subr.mxu0 0.0
        %2757 = vmatpush1.msra.mxu0 0.0
        %2758 = vmatprep.subr.mxu0 0.0
        %2759 = vmatpush1.msra.mxu0 0.0
        %2760 = vmatprep.subr.mxu0 0.0
        %2761 = vmatpush1.msra.mxu0 0.0
        %2762 = vmatprep.subr.mxu0 0.0
        %2763 = vmatpush1.msra.mxu0 0.0
        %2764 = vmatprep.subr.mxu0 0.0
        %2765 = vmatpush1.msra.mxu0 0.0
        %2766 = vmatprep.subr.mxu0 %v2735
        %2767 = vmatpush1.msra.mxu0 %v2734
        %2768 = vmatprep.subr.mxu0 0.0
        %2769 = vmatpush2.msra.mxu0 0.0
        %2770 = vmatprep.subr.mxu0 0.0
        %2771 = vmatpush2.msra.mxu0 0.0
        %2772 = vmatprep.subr.mxu0 0.0
        %2773 = vmatpush2.msra.mxu0 0.0
        %2774 = vmatprep.subr.mxu0 0.0
        %2775 = vmatpush2.msra.mxu0 0.0
        %2776 = vmatprep.subr.mxu0 0.0
        %2777 = vmatpush2.msra.mxu0 0.0
        %2778 = vmatprep.subr.mxu0 0.0
        %2779 = vmatpush2.msra.mxu0 0.0
        %2780 = vmatprep.subr.mxu0 0.0
        %2781 = vmatpush2.msra.mxu0 0.0
        %2782 = vmatprep.subr.mxu0 0.0
        %2783 = vmatpush2.msra.mxu0 0.0
        %2784 = vmatprep.subr.mxu0 0.0
        %2785 = vmatpush2.msra.mxu0 0.0
        %2786 = vmatprep.subr.mxu0 0.0
        %2787 = vmatpush2.msra.mxu0 0.0
        %2788 = vmatprep.subr.mxu0 0.0
        %2789 = vmatpush2.msra.mxu0 0.0
        %2790 = vmatprep.subr.mxu0 0.0
        %2791 = vmatpush2.msra.mxu0 0.0
        %2792 = vmatprep.subr.mxu0 0.0
        %2793 = vmatpush2.msra.mxu0 0.0
        %2794 = vmatprep.subr.mxu0 0.0
        %2795 = vmatpush2.msra.mxu0 0.0
        %2796 = vmatprep.subr.mxu0 0.0
        %2797 = vmatpush2.msra.mxu0 0.0
        %2798 = vmatprep.subr.mxu0 0.0
        %2799 = vmatpush2.msra.mxu0 0.0
        %2800 = vmatprep.mubr.f32.mxu0 0.0
        %2801 = vmatmul.mubr.f32.gmra.mxu0 %v787
        %v2802 = vpop.f32.mrf.mxu0
        %v2803 = vadd.f32 0.0, %v2802
        %v2804 = vpop.f32.mrf.mxu0
        %v2805 = vadd.f32 0.0, %v2804
        %2806 = vmatprep.mubr.f32.mxu0 0.0
        %2807 = vmatmul.mubr.f32.gmra.mxu0 %v790
        %v2808 = vpop.f32.mrf.mxu0
        %v2809 = vadd.f32 0.0, %v2808
        %v2810 = vpop.f32.mrf.mxu0
        %v2811 = vadd.f32 0.0, %v2810
        %2812 = vmatprep.mubr.f32.mxu0 0.0
        %2813 = vmatmul.mubr.f32.gmra.mxu0 %v793
        %v2814 = vpop.f32.mrf.mxu0
        %v2815 = vadd.f32 0.0, %v2814
        %v2816 = vpop.f32.mrf.mxu0
        %v2817 = vadd.f32 0.0, %v2816
        %2818 = vmatprep.mubr.f32.mxu0 0.0
        %2819 = vmatmul.mubr.f32.gmra.mxu0 %v796
        %v2820 = vpop.f32.mrf.mxu0
        %v2821 = vadd.f32 0.0, %v2820
        %v2822 = vpop.f32.mrf.mxu0
        %v2823 = vadd.f32 0.0, %v2822
        %2824 = vdwg.mxu0
        %s2825 = scalar_lea.vmem %s530, 192 [#allocation3]
        %v2826 = vld [vmem:[%s2825] sm:$0xff]
        %v2827 = vld [vmem:[%s2825 + $0x8] sm:$0xff]
        %v2828 = vld [vmem:[%s2825 + $0x10] sm:$0xff]
        %v2829 = vld [vmem:[%s2825 + $0x18] sm:$0xff]
        %v2830 = vld [vmem:[%s2825 + $0x20] sm:$0xff]
        %v2831 = vld [vmem:[%s2825 + $0x28] sm:$0xff]
        %v2832 = vld [vmem:[%s2825 + $0x30] sm:$0xff]
        %v2833 = vld [vmem:[%s2825 + $0x38] sm:$0xff]
        %v2834 = vunpack.c.l.bf16 %v2826
        %v2835 = vunpack.c.h.bf16 %v2826
        %v2836 = vunpack.c.l.bf16 %v2827
        %v2837 = vunpack.c.h.bf16 %v2827
        %v2838 = vunpack.c.l.bf16 %v2828
        %v2839 = vunpack.c.h.bf16 %v2828
        %v2840 = vunpack.c.l.bf16 %v2829
        %v2841 = vunpack.c.h.bf16 %v2829
        %v2842 = vunpack.c.l.bf16 %v2830
        %v2843 = vunpack.c.h.bf16 %v2830
        %v2844 = vunpack.c.l.bf16 %v2831
        %v2845 = vunpack.c.h.bf16 %v2831
        %v2846 = vunpack.c.l.bf16 %v2832
        %v2847 = vunpack.c.h.bf16 %v2832
        %v2848 = vunpack.c.l.bf16 %v2833
        %v2849 = vunpack.c.h.bf16 %v2833
        %v2850 = vadd.f32 %v2834, 1.0
        %v2851 = vadd.f32 %v2835, 1.0
        %v2852 = vadd.f32 %v2836, 1.0
        %v2853 = vadd.f32 %v2837, 1.0
        %v2854 = vadd.f32 %v2838, 1.0
        %v2855 = vadd.f32 %v2839, 1.0
        %v2856 = vadd.f32 %v2840, 1.0
        %v2857 = vadd.f32 %v2841, 1.0
        %s2858 = scalar_lea.vmem %s4, 96
        %v2859 = vld [vmem:[%s2858] sm:$0xff]
        %v2860 = vld [vmem:[%s2858 + $0x8] sm:$0xff]
        %v2861 = vld [vmem:[%s2858 + $0x10] sm:$0xff]
        %v2862 = vld [vmem:[%s2858 + $0x18] sm:$0xff]
        %2864 = vset.pattern.permute.xlu0 0
        %2865 = vperm.xlu0 %2864, %v2859
        %v2866 = vpop.permute.xlu0 %2865
        %2869 = vset.pattern.permute.xlu0 0
        %2870 = vperm.xlu0 %2869, %v2860
        %v2871 = vpop.permute.xlu0 %2870
        %2874 = vset.pattern.permute.xlu0 0
        %2875 = vperm.xlu0 %2874, %v2861
        %v2876 = vpop.permute.xlu0 %2875
        %2879 = vset.pattern.permute.xlu0 0
        %2880 = vperm.xlu0 %2879, %v2862
        %v2881 = vpop.permute.xlu0 %2880
        %v2883 = vmul.f32 %v2803, %v2866
        %v2884 = vmul.f32 %v2805, %v2866
        %v2885 = vmul.f32 %v2809, %v2871
        %v2886 = vmul.f32 %v2811, %v2871
        %v2887 = vmul.f32 %v2815, %v2876
        %v2888 = vmul.f32 %v2817, %v2876
        %v2889 = vmul.f32 %v2821, %v2881
        %v2890 = vmul.f32 %v2823, %v2881
        %v2891 = vmul.f32 %v2883, %v2850
        %v2892 = vmul.f32 %v2884, %v2851
        %v2893 = vmul.f32 %v2885, %v2852
        %v2894 = vmul.f32 %v2886, %v2853
        %v2895 = vmul.f32 %v2887, %v2854
        %v2896 = vmul.f32 %v2888, %v2855
        %v2897 = vmul.f32 %v2889, %v2856
        %v2898 = vmul.f32 %v2890, %v2857
        %s2899 = scalar_lea.vmem %s5, 96
        %v2900 = vld [vmem:[%s2899] sm:$0xff]
        %v2901 = vld [vmem:[%s2899 + $0x8] sm:$0xff]
        %v2902 = vld [vmem:[%s2899 + $0x10] sm:$0xff]
        %v2903 = vld [vmem:[%s2899 + $0x18] sm:$0xff]
        %2905 = vset.pattern.permute.xlu0 0
        %2906 = vperm.xlu0 %2905, %v2900
        %v2907 = vpop.permute.xlu0 %2906
        %2910 = vset.pattern.permute.xlu0 0
        %2911 = vperm.xlu0 %2910, %v2901
        %v2912 = vpop.permute.xlu0 %2911
        %2915 = vset.pattern.permute.xlu0 0
        %2916 = vperm.xlu0 %2915, %v2902
        %v2917 = vpop.permute.xlu0 %2916
        %2920 = vset.pattern.permute.xlu0 0
        %2921 = vperm.xlu0 %2920, %v2903
        %v2922 = vpop.permute.xlu0 %2921
        %v2924 = vmul.f32 %v2907, %v2850
        %v2925 = vmul.f32 %v2907, %v2851
        %v2926 = vmul.f32 %v2912, %v2852
        %v2927 = vmul.f32 %v2912, %v2853
        %v2928 = vmul.f32 %v2917, %v2854
        %v2929 = vmul.f32 %v2917, %v2855
        %v2930 = vmul.f32 %v2922, %v2856
        %v2931 = vmul.f32 %v2922, %v2857
        %v2932 = vadd.f32 %v2924, %v2842
        %v2933 = vadd.f32 %v2925, %v2843
        %v2934 = vadd.f32 %v2926, %v2844
        %v2935 = vadd.f32 %v2927, %v2845
        %v2936 = vadd.f32 %v2928, %v2846
        %v2937 = vadd.f32 %v2929, %v2847
        %v2938 = vadd.f32 %v2930, %v2848
        %v2939 = vadd.f32 %v2931, %v2849
        %v2940 = vmul.f32 %v2647, %v2891
        %v2941 = vmul.f32 %v2648, %v2892
        %v2942 = vmul.f32 %v2649, %v2893
        %v2943 = vmul.f32 %v2650, %v2894
        %v2944 = vmul.f32 %v2651, %v2895
        %v2945 = vmul.f32 %v2652, %v2896
        %v2946 = vmul.f32 %v2653, %v2897
        %v2947 = vmul.f32 %v2654, %v2898
        %v2948 = vadd.f32 %v2940, %v2932
        %v2949 = vadd.f32 %v2941, %v2933
        %v2950 = vadd.f32 %v2942, %v2934
        %v2951 = vadd.f32 %v2943, %v2935
        %v2952 = vadd.f32 %v2944, %v2936
        %v2953 = vadd.f32 %v2945, %v2937
        %v2954 = vadd.f32 %v2946, %v2938
        %v2955 = vadd.f32 %v2947, %v2939
        %v2956 = vmul.f32 %v2948, 0.2
        %v2957 = vmul.f32 %v2949, 0.2
        %v2958 = vmul.f32 %v2950, 0.2
        %v2959 = vmul.f32 %v2951, 0.2
        %v2960 = vmul.f32 %v2952, 0.2
        %v2961 = vmul.f32 %v2953, 0.2
        %v2962 = vmul.f32 %v2954, 0.2
        %v2963 = vmul.f32 %v2955, 0.2
        %v2964 = vmax.f32 %v2948, %v2956
        %v2965 = vmax.f32 %v2949, %v2957
        %v2966 = vmax.f32 %v2950, %v2958
        %v2967 = vmax.f32 %v2951, %v2959
        %v2968 = vmax.f32 %v2952, %v2960
        %v2969 = vmax.f32 %v2953, %v2961
        %v2970 = vmax.f32 %v2954, %v2962
        %v2971 = vmax.f32 %v2955, %v2963
        %v2972 = vpack.c.bf16 %v2966, %v2964
        %v2973 = vpack.c.bf16 %v2967, %v2965
        %v2974 = vpack.c.bf16 %v2970, %v2968
        %v2975 = vpack.c.bf16 %v2971, %v2969
        %v2980 = vunpack.c.l.b16 %v2972
        %v2981 = vunpack.c.l.b16 %v2973
        %v2982 = vunpack.c.h.b16 %v2972
        %v2983 = vunpack.c.h.b16 %v2973
        %v2984 = vunpack.c.l.b16 %v2974
        %v2985 = vunpack.c.l.b16 %v2975
        %v2986 = vunpack.c.h.b16 %v2974
        %v2987 = vunpack.c.h.b16 %v2975
        %v2988 = vpack.c.b16 %v2981, %v2980
        %v2989 = vpack.c.b16 %v2983, %v2982
        %v2990 = vpack.c.b16 %v2985, %v2984
        %v2991 = vpack.c.b16 %v2987, %v2986
        %2996 = vst [vmem:[%s566] sm:$0xff] %v2988
        %2997 = vst [vmem:[%s566 + $0x8] sm:$0xff] %v2989
        %2998 = vst [vmem:[%s566 + $0x10] sm:$0xff] %v2990
        %2999 = vst [vmem:[%s566 + $0x18] sm:$0xff] %v2991
        %s3000 = sand.u32 %s230, 1
        %s3001 = scalar_lea.sflag [#allocation5], %s3000
        %s3002 = sand.u32 %s230, 1
        %s3003 = smul.addr %s3002, 32
        %s3004 = scalar_lea.vmem [#allocation4], %s3003
        // Predicated region
        $region133: #{network_with_input_encoding.1} parent=123 // pred_check
          %p3005 = pneg %p240
        $region134: #{network_with_input_encoding.1} parent=123 // pred_check_branch
          %3007 = sbr.rel (%p3005) target = $region136
        $region135: #{network_with_input_encoding.1} parent=123 // pred_region
          %s3008 = smul.u32 2, %s23
          %s3010 = ssub.s32 512, 512
          %3011 = vsyncadd %s3001, %s3010
          %s3012 = smul.addr %s3008, 64
          %s3013 = scalar_lea.hbm %s9, %s3012
          %s3014 = sshll.u32 %s3004, 4
          %s3015 = int_to_ptr.vmem [resolvable:$true] %s3014
          %3020 = dma.vmem_to_hbm [thread:$0]  %s3015, 512, %s3013, %s3001, 128, 512, 8
        $region136: #{network_with_input_encoding.1} parent=123 // pred_fallthru
          _
      $region124: #{network_with_input_encoding.1} parent=5 // pred_fallthru
        _
      %p3021 = scmp.le.s32.totalorder 2, %s18
      // Predicated region
      $region137: #{network_with_input_encoding.1} parent=5 // pred_check
        %p3022 = pneg %p3021
      $region138: #{network_with_input_encoding.1} parent=5 // pred_check_branch
        %3024 = sbr.rel (%p3022) target = $region140
      $region139: #{network_with_input_encoding.1} parent=5 // pred_region
        %s3025 = ssub.s32 %s18, 2
        // Predicated region
        $region141: #{network_with_input_encoding.1} parent=139 // pred_check
          %p3026 = pneg %p246
        $region142: #{network_with_input_encoding.1} parent=139 // pred_check_branch
          %3028 = sbr.rel (%p3026) target = $region144
        $region143: #{network_with_input_encoding.1} parent=139 // pred_region
          %s3029 = sand.u32 %s231, 1
          %s3030 = scalar_lea.sflag [#allocation5], %s3029
          %s3031 = sand.u32 %s231, 1
          %s3032 = smul.addr %s3031, 32
          %s3033 = scalar_lea.vmem [#allocation4], %s3032
          %3034 = dma.done %s3030, 512
        $region144: #{network_with_input_encoding.1} parent=139 // pred_fallthru
          _
      $region140: #{network_with_input_encoding.1} parent=5 // pred_fallthru
        _
    $region6: #{network_with_input_encoding.1} parent=1 // loop_footer
      %s22 = sadd.s32 1, %s18
    $region7: #{network_with_input_encoding.1} parent=1 // loop_footer_branch
      %17 = sbr.rel target = $region3
    $region8: #{network_with_input_encoding.1} parent=1 // loop_exit
      _
    %3035 = vsyncpa [#allocation5], 1
    %s3036 = scalar_lea.sflag [#allocation5], 1
    %3037 = vsyncpa %s3036, 1

</llo_original>
